<compile_context>
chip_gen: v6e
topology: v6e:2x2x1
jax: 0.10.0
libtpu: 0.0.40
codegen_flags: <defaults>
</compile_context>

<pallas_src>
import numpy as np
import jax
import jax.numpy as jnp
from jax.experimental import pallas as pl
from jax.experimental.pallas import tpu as pltpu

# ----------------------------- model hyperparameters -----------------------------
BATCH = 2
SEQ = 8            # sequence_size (max_text_len)
N_IMG = 16         # number of vision tokens produced by the vision encoder
VISION_DIM = 1024  # self.vision_dim
TEXT_DIM = 768     # CLIP ViT-L/14 text hidden size
HIDDEN = 32        # hidden_size
NUM_HEADS = 4
BLOCKS = 2         # blocks_num
PROJ_D1 = 128      # proj_mlp hidden
PROJ_D2 = 10       # proj_mlp output
HEAD_D1 = 64       # mlp_head hidden
EPS = 1e-5
PACK_COLS = 128    # lane width of the packed small-parameter buffer


# ----------------------------- packed small-parameter layout -----------------------------
def _round8(n):
    return ((n + 7) // 8) * 8


def _build_layout():
    """Static layout plan: name -> (row_offset, n_rows, n_cols) inside the (R, 128) f32 pack."""
    layout = {}
    row = 0
    vecs = [("v_b", HIDDEN), ("v_g", HIDDEN), ("v_be", HIDDEN),
            ("t_b", HIDDEN), ("t_g", HIDDEN), ("t_be", HIDDEN),
            ("ln_g", HIDDEN), ("ln_b", HIDDEN)]
    for blk in range(BLOCKS):
        vecs += [(f"bq{blk}", HIDDEN), (f"bkv{blk}", 2 * HIDDEN), (f"bo{blk}", HIDDEN)]
    vecs += [("m_g1", HIDDEN), ("m_b1", HIDDEN), ("m_bi1", PROJ_D1),
             ("m_g2", PROJ_D1), ("m_b2", PROJ_D1), ("m_bi2", PROJ_D2),
             ("h_b1", HEAD_D1), ("h_g", HEAD_D1), ("h_be", HEAD_D1), ("h_b2", 1)]
    for name, cols in vecs:
        layout[name] = (row, 1, cols)
        row += 1
    row = _round8(row)

    mats = []
    for blk in range(BLOCKS):
        mats += [(f"wq{blk}", (HIDDEN, HIDDEN)),
                 (f"wkv{blk}", (HIDDEN, 2 * HIDDEN)),
                 (f"wo{blk}", (HIDDEN, HIDDEN))]
    mats += [("m_w1", (HIDDEN, PROJ_D1)), ("m_w2", (PROJ_D1, PROJ_D2)),
             ("h_w1", (PROJ_D2, HEAD_D1)), ("h_w2", (HEAD_D1, 1))]
    for name, (r, c) in mats:
        layout[name] = (row, r, c)
        row += _round8(r)
    return layout, _round8(row)


_LAYOUT, _PACK_ROWS = _build_layout()


def pack_params(values):
    buf = np.zeros((_PACK_ROWS, PACK_COLS), np.float32)
    for name, (row, r, c) in _LAYOUT.items():
        buf[row:row + r, :c] = np.asarray(values[name], np.float32).reshape(r, c)
    return jnp.asarray(buf)


# ----------------------------- in-kernel helpers -----------------------------
def _ln(y, gamma, beta):
    mu = jnp.mean(y, axis=-1, keepdims=True)
    var = jnp.mean((y - mu) ** 2, axis=-1, keepdims=True)
    return (y - mu) * jax.lax.rsqrt(var + EPS) * gamma + beta


def _gelu(x):
    # exact (erf-based) GELU, matching nn.GELU() default
    return 0.5 * x * (1.0 + jax.lax.erf(x * 0.7071067811865476))


# ----------------------------- fused forward kernel -----------------------------
def _fused_kernel(img_ref, txt_ref, mask_ref, vw_ref, tw_ref, pk_ref, o_ref):
    B, S, N, H, nh = BATCH, SEQ, N_IMG, HIDDEN, NUM_HEADS
    dh = H // nh
    scale = 1.0 / (dh ** 0.5)

    def g(name):  # static carve-out from the packed parameter buffer
        row, r, c = _LAYOUT[name]
        return pk_ref[row:row + r, :c]

    # ---- vision / text projections: in-kernel bf16 cast, f32 MXU accumulation, LayerNorm ----
    img = img_ref[...].reshape(B * N, VISION_DIM).astype(jnp.bfloat16)
    txt = txt_ref[...].reshape(B * S, TEXT_DIM).astype(jnp.bfloat16)
    img_h = jnp.dot(img, vw_ref[...], preferred_element_type=jnp.float32) + g("v_b")
    img_h = _ln(img_h, g("v_g"), g("v_be"))                                   # (B*N, H) f32
    txt_h = jnp.dot(txt, tw_ref[...], preferred_element_type=jnp.float32) + g("t_b")
    txt_h = _ln(txt_h, g("t_g"), g("t_be"))                                   # (B*S, H) f32

    lng, lnb = g("ln_g"), g("ln_b")

    x = txt_h                                                                  # (B*S, H)
    for blk in range(BLOCKS):                                                  # static unroll
        # Q projection (softmax scale folded into Q) and fused K/V projection (one matmul).
        Q = (jnp.dot(x, g(f"wq{blk}"), preferred_element_type=jnp.float32)
             + g(f"bq{blk}")) * scale                                          # (B*S, H)
        KV = (jnp.dot(img_h, g(f"wkv{blk}"), preferred_element_type=jnp.float32)
              + g(f"bkv{blk}"))                                                # (B*N, 2H)
        K3 = KV[:, :H].reshape(B, N, H)
        V3 = KV[:, H:].reshape(B, N, H)
        Q3 = Q.reshape(B, S, H)
        Kt = jnp.swapaxes(K3, 1, 2)                # (B, H, N): ONE transpose per block,
                                                   # head slices are sublane-aligned (dh=8)

        # all-head scores stacked along the sublane axis -> one merged softmax for 4 heads
        scores = [jnp.einsum('bqd,bdk->bqk',
                             Q3[:, :, h * dh:(h + 1) * dh],
                             Kt[:, h * dh:(h + 1) * dh, :],
                             preferred_element_type=jnp.float32)
                  for h in range(nh)]
        s_all = jnp.concatenate(scores, axis=1)                                # (B, nh*S, N)
        s_all = s_all - jnp.max(s_all, axis=-1, keepdims=True)
        e = jnp.exp(s_all)
        p_all = e * pl.reciprocal(jnp.sum(e, axis=-1, keepdims=True), approx=True)

        # per-head values, packed back into lane offsets -> ONE K=32 output-projection matmul
        outs = [jnp.einsum('bqk,bkd->bqd',
                           p_all[:, h * S:(h + 1) * S, :],
                           V3[:, :, h * dh:(h + 1) * dh],
                           preferred_element_type=jnp.float32)
                for h in range(nh)]
        attn = jnp.concatenate(outs, axis=-1).reshape(B * S, H)                # (B*S, H)
        attn = jnp.dot(attn, g(f"wo{blk}"), preferred_element_type=jnp.float32) + g(f"bo{blk}")
        x = _ln(attn + x, lng, lnb)                # residual + shared post-residual LayerNorm

    # ---- proj_mlp: LN -> Linear(32->128) -> GELU -> LN -> Linear(128->10) ----
    hmid = _ln(x, g("m_g1"), g("m_b1"))
    hmid = jnp.dot(hmid, g("m_w1"), preferred_element_type=jnp.float32) + g("m_bi1")
    hmid = _gelu(hmid)
    hmid = _ln(hmid, g("m_g2"), g("m_b2"))
    proj = jnp.dot(hmid, g("m_w2"), preferred_element_type=jnp.float32) + g("m_bi2")   # (B*S, 10)

    # ---- masked mean pooling over the sequence (mask cast in-kernel; B=2 static unroll) ----
    mask_f = mask_ref[...].astype(jnp.float32)                                 # (B, S)
    pooled_rows = []
    for b in range(B):
        mrow = mask_f[b:b + 1, :]                                              # (1, S)
        blockp = proj[b * S:(b + 1) * S, :]                                    # (S, 10)
        num = jnp.dot(mrow, blockp, preferred_element_type=jnp.float32)        # (1, 10)
        den = jnp.maximum(jnp.sum(mrow), 1.0)                                  # clamp(min=1.0)
        pooled_rows.append(num / den)
    pooled = jnp.concatenate(pooled_rows, axis=0)                              # (B, 10)

    # ---- mlp_head: Linear(10->64) -> LN -> GELU -> Linear(64->1) ----
    hh = jnp.dot(pooled, g("h_w1"), preferred_element_type=jnp.float32) + g("h_b1")
    hh = _ln(hh, g("h_g"), g("h_be"))
    hh = _gelu(hh)
    o_ref[...] = jnp.dot(hh, g("h_w2"), preferred_element_type=jnp.float32) + g("h_b2")


def _full_spec(shape):
    nd = len(shape)
    return pl.BlockSpec(shape, lambda *_, _nd=nd: (0,) * _nd)


def fused_forward(params, image_features, text_embeddings, attention_mask):
    """Single pallas_call for the whole post-encoder model; all intermediates live in VMEM."""
    args = (image_features, text_embeddings, attention_mask,
            params["vision_w"], params["text_w"], params["packed"])
    return pl.pallas_call(
        _fused_kernel,
        out_shape=jax.ShapeDtypeStruct((BATCH, 1), jnp.float32),
        grid=(1,),
        in_specs=[_full_spec(a.shape) for a in args],
        out_specs=_full_spec((BATCH, 1)),
        compiler_params=pltpu.CompilerParams(dimension_semantics=("arbitrary",)),
    )(*args)


# ----------------------------- parameter initialization (mirrors init_weights) -----------------------------
def init_params(key):
    keys = iter(jax.random.split(key, 32))

    def kaiming(din, dout):                 # kaiming_normal_(nonlinearity='relu'), fan_in mode
        return jax.random.normal(next(keys), (din, dout), jnp.float32) * np.sqrt(2.0 / din)

    def xavier(din, dout):                  # xavier_normal_(gain=1.0)
        return jax.random.normal(next(keys), (din, dout), jnp.float32) * np.sqrt(2.0 / (din + dout))

    small = {}
    # vision / text projections (big weights kept bf16 for MXU; biases/LN in the packed buffer)
    vision_w = kaiming(VISION_DIM, HIDDEN)
    text_w = kaiming(TEXT_DIM, HIDDEN)
    small["v_b"] = np.zeros(HIDDEN); small["v_g"] = np.ones(HIDDEN); small["v_be"] = np.zeros(HIDDEN)
    small["t_b"] = np.zeros(HIDDEN); small["t_g"] = np.ones(HIDDEN); small["t_be"] = np.zeros(HIDDEN)
    small["ln_g"] = np.ones(HIDDEN); small["ln_b"] = np.zeros(HIDDEN)     # shared post-residual LN

    for blk in range(BLOCKS):
        wq, wk, wv, wo = (xavier(HIDDEN, HIDDEN) for _ in range(4))
        small[f"wq{blk}"] = wq
        small[f"wkv{blk}"] = jnp.concatenate([wk, wv], axis=1)            # fused K/V projection
        small[f"wo{blk}"] = wo
        small[f"bq{blk}"] = np.zeros(HIDDEN)
        small[f"bkv{blk}"] = np.zeros(2 * HIDDEN)
        small[f"bo{blk}"] = np.zeros(HIDDEN)

    small["m_g1"] = np.ones(HIDDEN); small["m_b1"] = np.zeros(HIDDEN)
    small["m_w1"] = kaiming(HIDDEN, PROJ_D1); small["m_bi1"] = np.zeros(PROJ_D1)
    small["m_g2"] = np.ones(PROJ_D1); small["m_b2"] = np.zeros(PROJ_D1)
    small["m_w2"] = kaiming(PROJ_D1, PROJ_D2); small["m_bi2"] = np.zeros(PROJ_D2)

    small["h_w1"] = kaiming(PROJ_D2, HEAD_D1); small["h_b1"] = np.zeros(HEAD_D1)
    small["h_g"] = np.ones(HEAD_D1); small["h_be"] = np.zeros(HEAD_D1)
    # final layer: normal(std=0.01), bias filled with 0.1
    small["h_w2"] = jax.random.normal(next(keys), (HEAD_D1, 1), jnp.float32) * 0.01
    small["h_b2"] = np.full((1,), 0.1)

    return {"vision_w": vision_w.astype(jnp.bfloat16),
            "text_w": text_w.astype(jnp.bfloat16),
            "packed": pack_params(small)}


# ----------------------------- forward (thin glue around the fused Pallas kernel) -----------------------------
def forward(params, image_features, text_embeddings, attention_mask, labels):
    # Inputs are passed to the kernel untouched (no wrapper casts / reshapes).
    logits = fused_forward(params, image_features, text_embeddings, attention_mask)   # (B, 1)

    # BCE-with-logits loss + binary accuracy (plain JAX glue)
    loss = jnp.mean(jnp.maximum(logits, 0.0) - logits * labels + jnp.log1p(jnp.exp(-jnp.abs(logits))))
    preds = jax.nn.sigmoid(logits)
    acc = jnp.mean(((preds >= 0.5).astype(jnp.float32) == labels).astype(jnp.float32))
    return {"answer_accuracy": acc, "loss_answer": loss,
            "answer_predictions": preds, "answer_labels": labels}


# ----------------------------- main -----------------------------
if __name__ == "__main__":
    key = jax.random.PRNGKey(0)
    k_param, k_img, k_txt = jax.random.split(key, 3)

    params = init_params(k_param)

    # synthetic encoder outputs (the pretrained CLIP encoders themselves are untranslated)
    image_features = jax.random.normal(k_img, (BATCH, N_IMG, VISION_DIM), jnp.float32)
    text_embeddings = jax.random.normal(k_txt, (BATCH, SEQ, TEXT_DIM), jnp.float32)

    # attention mask: first example uses the full sequence, second is padded after 5 tokens
    attention_mask = jnp.array(
        [[1] * SEQ,
         [1] * 5 + [0] * (SEQ - 5)], dtype=jnp.int32)

    # answers: ['yes', 'no'] -> [[1.], [0.]]
    labels = jnp.array([[1.0], [0.0]], jnp.float32)

    fwd = jax.jit(forward)
    out = fwd(params, image_features, text_embeddings, attention_mask, labels)
    out = jax.block_until_ready(out)

    assert out["answer_predictions"].shape == (BATCH, 1)
    assert bool(jnp.isfinite(out["loss_answer"]))
    assert bool(jnp.all(jnp.isfinite(out["answer_predictions"])))
    print("KERNEL_OK")
</pallas_src>

<mosaic_0001>
module attributes {stable_mosaic.version = 11 : i64} {
  func.func @_fused_kernel(%arg0: i32, %arg1: memref<2x16x1024xf32, #tpu.memory_space<vmem>>, %arg2: memref<2x8x768xf32, #tpu.memory_space<vmem>>, %arg3: memref<2x8xi32, #tpu.memory_space<vmem>>, %arg4: memref<1024x32xbf16, #tpu.memory_space<vmem>>, %arg5: memref<768x32xbf16, #tpu.memory_space<vmem>>, %arg6: memref<456x128xf32, #tpu.memory_space<vmem>>, %arg7: memref<2x1xf32, #tpu.memory_space<vmem>>) attributes {dimension_semantics = [#tpu.dimension_semantics<arbitrary>], iteration_bounds = array<i64: 1>, scalar_prefetch = 0 : i64, scratch_operands = 0 : i64, tpu.core_type = #tpu.core_type<tc>, window_params = [{pipeline_mode = #tpu.pipeline_mode<synchronous>, transform_indices = @transform_0, window_bounds = array<i64: 2, 16, 1024>}, {pipeline_mode = #tpu.pipeline_mode<synchronous>, transform_indices = @transform_1, window_bounds = array<i64: 2, 8, 768>}, {pipeline_mode = #tpu.pipeline_mode<synchronous>, transform_indices = @transform_2, window_bounds = array<i64: 2, 8>}, {pipeline_mode = #tpu.pipeline_mode<synchronous>, transform_indices = @transform_3, window_bounds = array<i64: 1024, 32>}, {pipeline_mode = #tpu.pipeline_mode<synchronous>, transform_indices = @transform_4, window_bounds = array<i64: 768, 32>}, {pipeline_mode = #tpu.pipeline_mode<synchronous>, transform_indices = @transform_5, window_bounds = array<i64: 456, 128>}, {pipeline_mode = #tpu.pipeline_mode<synchronous>, transform_indices = @transform_6, window_bounds = array<i64: 2, 1>}]} {
    %c0 = arith.constant 0 : index
    %c0_0 = arith.constant 0 : index
    %c0_1 = arith.constant 0 : index
    %0 = vector.load %arg1[%c0, %c0_0, %c0_1] : memref<2x16x1024xf32, #tpu.memory_space<vmem>>, vector<2x16x1024xf32>
    %1 = vector.shape_cast %0 : vector<2x16x1024xf32> to vector<32x1024xf32>
    %2 = arith.truncf %1 : vector<32x1024xf32> to vector<32x1024xbf16>
    %c0_2 = arith.constant 0 : index
    %c0_3 = arith.constant 0 : index
    %c0_4 = arith.constant 0 : index
    %3 = vector.load %arg2[%c0_2, %c0_3, %c0_4] : memref<2x8x768xf32, #tpu.memory_space<vmem>>, vector<2x8x768xf32>
    %4 = vector.shape_cast %3 : vector<2x8x768xf32> to vector<16x768xf32>
    %5 = arith.truncf %4 : vector<16x768xf32> to vector<16x768xbf16>
    %c0_5 = arith.constant 0 : index
    %c0_6 = arith.constant 0 : index
    %6 = vector.load %arg4[%c0_5, %c0_6] : memref<1024x32xbf16, #tpu.memory_space<vmem>>, vector<1024x32xbf16>
    %cst = arith.constant dense<0.000000e+00> : vector<32x32xf32>
    %7 = tpu.matmul %2, %6, %cst {dimension_numbers = #tpu.dot_dimension_numbers<[1], [0], [0], [1], [0, 0, 1, 1], [], []>} : vector<32x1024xbf16>, vector<1024x32xbf16>, vector<32x32xf32> -> vector<32x32xf32>
    %c0_7 = arith.constant 0 : index
    %c0_8 = arith.constant 0 : index
    %8 = vector.load %arg6[%c0_7, %c0_8] : memref<456x128xf32, #tpu.memory_space<vmem>>, vector<1x32xf32>
    %9 = vector.broadcast %8 : vector<1x32xf32> to vector<32x32xf32>
    %10 = arith.addf %7, %9 : vector<32x32xf32>
    %c1 = arith.constant 1 : index
    %c0_9 = arith.constant 0 : index
    %11 = vector.load %arg6[%c1, %c0_9] : memref<456x128xf32, #tpu.memory_space<vmem>>, vector<1x32xf32>
    %c2 = arith.constant 2 : index
    %c0_10 = arith.constant 0 : index
    %12 = vector.load %arg6[%c2, %c0_10] : memref<456x128xf32, #tpu.memory_space<vmem>>, vector<1x32xf32>
    %cst_11 = arith.constant dense<0.000000e+00> : vector<32xf32>
    %13 = vector.multi_reduction <add>, %10, %cst_11 [1] : vector<32x32xf32> to vector<32xf32>
    %14 = vector.shape_cast %13 : vector<32xf32> to vector<32x1xf32>
    %cst_12 = arith.constant 3.200000e+01 : f32
    %15 = vector.broadcast %cst_12 : f32 to vector<32x1xf32>
    %16 = arith.divf %14, %15 : vector<32x1xf32>
    %17 = vector.broadcast %16 : vector<32x1xf32> to vector<32x32xf32>
    %18 = arith.subf %10, %17 : vector<32x32xf32>
    %19 = arith.mulf %18, %18 : vector<32x32xf32>
    %cst_13 = arith.constant dense<0.000000e+00> : vector<32xf32>
    %20 = vector.multi_reduction <add>, %19, %cst_13 [1] : vector<32x32xf32> to vector<32xf32>
    %21 = vector.shape_cast %20 : vector<32xf32> to vector<32x1xf32>
    %cst_14 = arith.constant 3.200000e+01 : f32
    %22 = vector.broadcast %cst_14 : f32 to vector<32x1xf32>
    %23 = arith.divf %21, %22 : vector<32x1xf32>
    %24 = vector.broadcast %16 : vector<32x1xf32> to vector<32x32xf32>
    %25 = arith.subf %10, %24 : vector<32x32xf32>
    %cst_15 = arith.constant 9.99999974E-6 : f32
    %26 = vector.broadcast %cst_15 : f32 to vector<32x1xf32>
    %27 = arith.addf %23, %26 : vector<32x1xf32>
    %28 = math.rsqrt %27 : vector<32x1xf32>
    %29 = vector.broadcast %28 : vector<32x1xf32> to vector<32x32xf32>
    %30 = arith.mulf %25, %29 : vector<32x32xf32>
    %31 = vector.broadcast %11 : vector<1x32xf32> to vector<32x32xf32>
    %32 = arith.mulf %30, %31 : vector<32x32xf32>
    %33 = vector.broadcast %12 : vector<1x32xf32> to vector<32x32xf32>
    %34 = arith.addf %32, %33 : vector<32x32xf32>
    %c0_16 = arith.constant 0 : index
    %c0_17 = arith.constant 0 : index
    %35 = vector.load %arg5[%c0_16, %c0_17] : memref<768x32xbf16, #tpu.memory_space<vmem>>, vector<768x32xbf16>
    %cst_18 = arith.constant dense<0.000000e+00> : vector<16x32xf32>
    %36 = tpu.matmul %5, %35, %cst_18 {dimension_numbers = #tpu.dot_dimension_numbers<[1], [0], [0], [1], [0, 0, 1, 1], [], []>} : vector<16x768xbf16>, vector<768x32xbf16>, vector<16x32xf32> -> vector<16x32xf32>
    %c3 = arith.constant 3 : index
    %c0_19 = arith.constant 0 : index
    %37 = vector.load %arg6[%c3, %c0_19] : memref<456x128xf32, #tpu.memory_space<vmem>>, vector<1x32xf32>
    %38 = vector.broadcast %37 : vector<1x32xf32> to vector<16x32xf32>
    %39 = arith.addf %36, %38 : vector<16x32xf32>
    %c4 = arith.constant 4 : index
    %c0_20 = arith.constant 0 : index
    %40 = vector.load %arg6[%c4, %c0_20] : memref<456x128xf32, #tpu.memory_space<vmem>>, vector<1x32xf32>
    %c5 = arith.constant 5 : index
    %c0_21 = arith.constant 0 : index
    %41 = vector.load %arg6[%c5, %c0_21] : memref<456x128xf32, #tpu.memory_space<vmem>>, vector<1x32xf32>
    %cst_22 = arith.constant dense<0.000000e+00> : vector<16xf32>
    %42 = vector.multi_reduction <add>, %39, %cst_22 [1] : vector<16x32xf32> to vector<16xf32>
    %43 = vector.shape_cast %42 : vector<16xf32> to vector<16x1xf32>
    %cst_23 = arith.constant 3.200000e+01 : f32
    %44 = vector.broadcast %cst_23 : f32 to vector<16x1xf32>
    %45 = arith.divf %43, %44 : vector<16x1xf32>
    %46 = vector.broadcast %45 : vector<16x1xf32> to vector<16x32xf32>
    %47 = arith.subf %39, %46 : vector<16x32xf32>
    %48 = arith.mulf %47, %47 : vector<16x32xf32>
    %cst_24 = arith.constant dense<0.000000e+00> : vector<16xf32>
    %49 = vector.multi_reduction <add>, %48, %cst_24 [1] : vector<16x32xf32> to vector<16xf32>
    %50 = vector.shape_cast %49 : vector<16xf32> to vector<16x1xf32>
    %cst_25 = arith.constant 3.200000e+01 : f32
    %51 = vector.broadcast %cst_25 : f32 to vector<16x1xf32>
    %52 = arith.divf %50, %51 : vector<16x1xf32>
    %53 = vector.broadcast %45 : vector<16x1xf32> to vector<16x32xf32>
    %54 = arith.subf %39, %53 : vector<16x32xf32>
    %cst_26 = arith.constant 9.99999974E-6 : f32
    %55 = vector.broadcast %cst_26 : f32 to vector<16x1xf32>
    %56 = arith.addf %52, %55 : vector<16x1xf32>
    %57 = math.rsqrt %56 : vector<16x1xf32>
    %58 = vector.broadcast %57 : vector<16x1xf32> to vector<16x32xf32>
    %59 = arith.mulf %54, %58 : vector<16x32xf32>
    %60 = vector.broadcast %40 : vector<1x32xf32> to vector<16x32xf32>
    %61 = arith.mulf %59, %60 : vector<16x32xf32>
    %62 = vector.broadcast %41 : vector<1x32xf32> to vector<16x32xf32>
    %63 = arith.addf %61, %62 : vector<16x32xf32>
    %c6 = arith.constant 6 : index
    %c0_27 = arith.constant 0 : index
    %64 = vector.load %arg6[%c6, %c0_27] : memref<456x128xf32, #tpu.memory_space<vmem>>, vector<1x32xf32>
    %c7 = arith.constant 7 : index
    %c0_28 = arith.constant 0 : index
    %65 = vector.load %arg6[%c7, %c0_28] : memref<456x128xf32, #tpu.memory_space<vmem>>, vector<1x32xf32>
    %c24 = arith.constant 24 : index
    %c0_29 = arith.constant 0 : index
    %66 = vector.load %arg6[%c24, %c0_29] : memref<456x128xf32, #tpu.memory_space<vmem>>, vector<32x32xf32>
    %cst_30 = arith.constant dense<0.000000e+00> : vector<16x32xf32>
    %67 = tpu.matmul %63, %66, %cst_30 {dimension_numbers = #tpu.dot_dimension_numbers<[1], [0], [0], [1], [0, 0, 1, 1], [], []>} : vector<16x32xf32>, vector<32x32xf32>, vector<16x32xf32> -> vector<16x32xf32>
    %c8 = arith.constant 8 : index
    %c0_31 = arith.constant 0 : index
    %68 = vector.load %arg6[%c8, %c0_31] : memref<456x128xf32, #tpu.memory_space<vmem>>, vector<1x32xf32>
    %69 = vector.broadcast %68 : vector<1x32xf32> to vector<16x32xf32>
    %70 = arith.addf %67, %69 : vector<16x32xf32>
    %cst_32 = arith.constant 0.353553385 : f32
    %71 = vector.broadcast %cst_32 : f32 to vector<16x32xf32>
    %72 = arith.mulf %70, %71 : vector<16x32xf32>
    %c56 = arith.constant 56 : index
    %c0_33 = arith.constant 0 : index
    %73 = vector.load %arg6[%c56, %c0_33] : memref<456x128xf32, #tpu.memory_space<vmem>>, vector<32x64xf32>
    %cst_34 = arith.constant dense<0.000000e+00> : vector<32x64xf32>
    %74 = tpu.matmul %34, %73, %cst_34 {dimension_numbers = #tpu.dot_dimension_numbers<[1], [0], [0], [1], [0, 0, 1, 1], [], []>} : vector<32x32xf32>, vector<32x64xf32>, vector<32x64xf32> -> vector<32x64xf32>
    %c9 = arith.constant 9 : index
    %c0_35 = arith.constant 0 : index
    %75 = vector.load %arg6[%c9, %c0_35] : memref<456x128xf32, #tpu.memory_space<vmem>>, vector<1x64xf32>
    %76 = vector.broadcast %75 : vector<1x64xf32> to vector<32x64xf32>
    %77 = arith.addf %74, %76 : vector<32x64xf32>
    %78 = vector.extract_strided_slice %77 {offsets = [0, 0], sizes = [32, 32], strides = [1, 1]} : vector<32x64xf32> to vector<32x32xf32>
    %79 = vector.shape_cast %78 : vector<32x32xf32> to vector<2x16x32xf32>
    %80 = vector.extract_strided_slice %77 {offsets = [0, 32], sizes = [32, 32], strides = [1, 1]} : vector<32x64xf32> to vector<32x32xf32>
    %81 = vector.shape_cast %80 : vector<32x32xf32> to vector<2x16x32xf32>
    %82 = vector.shape_cast %72 : vector<16x32xf32> to vector<2x8x32xf32>
    %83 = tpu.transpose %79, [0, 2, 1] : vector<2x16x32xf32> -> vector<2x32x16xf32>
    %84 = vector.extract_strided_slice %82 {offsets = [0, 0, 0], sizes = [2, 8, 8], strides = [1, 1, 1]} : vector<2x8x32xf32> to vector<2x8x8xf32>
    %85 = vector.extract_strided_slice %83 {offsets = [0, 0, 0], sizes = [2, 8, 16], strides = [1, 1, 1]} : vector<2x32x16xf32> to vector<2x8x16xf32>
    "tpu.trace_start"() <{level = 10 : i32, message = "bqd,bdk->bqk"}> : () -> ()
    %cst_36 = arith.constant dense<0.000000e+00> : vector<2x8x16xf32>
    %86 = tpu.matmul %84, %85, %cst_36 {dimension_numbers = #tpu.dot_dimension_numbers<[2], [1], [1], [2], [0, 0, 0, 1, 1, 2], [0], [0]>} : vector<2x8x8xf32>, vector<2x8x16xf32>, vector<2x8x16xf32> -> vector<2x8x16xf32>
    "tpu.trace_stop"() : () -> ()
    %87 = vector.extract_strided_slice %82 {offsets = [0, 0, 8], sizes = [2, 8, 8], strides = [1, 1, 1]} : vector<2x8x32xf32> to vector<2x8x8xf32>
    %88 = vector.extract_strided_slice %83 {offsets = [0, 8, 0], sizes = [2, 8, 16], strides = [1, 1, 1]} : vector<2x32x16xf32> to vector<2x8x16xf32>
    "tpu.trace_start"() <{level = 10 : i32, message = "bqd,bdk->bqk"}> : () -> ()
    %cst_37 = arith.constant dense<0.000000e+00> : vector<2x8x16xf32>
    %89 = tpu.matmul %87, %88, %cst_37 {dimension_numbers = #tpu.dot_dimension_numbers<[2], [1], [1], [2], [0, 0, 0, 1, 1, 2], [0], [0]>} : vector<2x8x8xf32>, vector<2x8x16xf32>, vector<2x8x16xf32> -> vector<2x8x16xf32>
    "tpu.trace_stop"() : () -> ()
    %90 = vector.extract_strided_slice %82 {offsets = [0, 0, 16], sizes = [2, 8, 8], strides = [1, 1, 1]} : vector<2x8x32xf32> to vector<2x8x8xf32>
    %91 = vector.extract_strided_slice %83 {offsets = [0, 16, 0], sizes = [2, 8, 16], strides = [1, 1, 1]} : vector<2x32x16xf32> to vector<2x8x16xf32>
    "tpu.trace_start"() <{level = 10 : i32, message = "bqd,bdk->bqk"}> : () -> ()
    %cst_38 = arith.constant dense<0.000000e+00> : vector<2x8x16xf32>
    %92 = tpu.matmul %90, %91, %cst_38 {dimension_numbers = #tpu.dot_dimension_numbers<[2], [1], [1], [2], [0, 0, 0, 1, 1, 2], [0], [0]>} : vector<2x8x8xf32>, vector<2x8x16xf32>, vector<2x8x16xf32> -> vector<2x8x16xf32>
    "tpu.trace_stop"() : () -> ()
    %93 = vector.extract_strided_slice %82 {offsets = [0, 0, 24], sizes = [2, 8, 8], strides = [1, 1, 1]} : vector<2x8x32xf32> to vector<2x8x8xf32>
    %94 = vector.extract_strided_slice %83 {offsets = [0, 24, 0], sizes = [2, 8, 16], strides = [1, 1, 1]} : vector<2x32x16xf32> to vector<2x8x16xf32>
    "tpu.trace_start"() <{level = 10 : i32, message = "bqd,bdk->bqk"}> : () -> ()
    %cst_39 = arith.constant dense<0.000000e+00> : vector<2x8x16xf32>
    %95 = tpu.matmul %93, %94, %cst_39 {dimension_numbers = #tpu.dot_dimension_numbers<[2], [1], [1], [2], [0, 0, 0, 1, 1, 2], [0], [0]>} : vector<2x8x8xf32>, vector<2x8x16xf32>, vector<2x8x16xf32> -> vector<2x8x16xf32>
    "tpu.trace_stop"() : () -> ()
    %96 = tpu.concatenate %86, %89, %92, %95 in 1 : vector<2x8x16xf32>, vector<2x8x16xf32>, vector<2x8x16xf32>, vector<2x8x16xf32> -> vector<2x32x16xf32>
    %cst_40 = arith.constant dense<0xFF800000> : vector<2x32xf32>
    %97 = vector.multi_reduction <maximumf>, %96, %cst_40 [2] : vector<2x32x16xf32> to vector<2x32xf32>
    %98 = vector.shape_cast %97 : vector<2x32xf32> to vector<2x32x1xf32>
    %99 = vector.broadcast %98 : vector<2x32x1xf32> to vector<2x32x16xf32>
    %100 = arith.subf %96, %99 : vector<2x32x16xf32>
    %101 = math.exp %100 : vector<2x32x16xf32>
    %cst_41 = arith.constant dense<0.000000e+00> : vector<2x32xf32>
    %102 = vector.multi_reduction <add>, %101, %cst_41 [2] : vector<2x32x16xf32> to vector<2x32xf32>
    %103 = vector.shape_cast %102 : vector<2x32xf32> to vector<2x32x1xf32>
    %104 = tpu.reciprocal %103 {approx = true} : vector<2x32x1xf32> -> vector<2x32x1xf32>
    %105 = vector.broadcast %104 : vector<2x32x1xf32> to vector<2x32x16xf32>
    %106 = arith.mulf %101, %105 : vector<2x32x16xf32>
    %107 = vector.extract_strided_slice %106 {offsets = [0, 0, 0], sizes = [2, 8, 16], strides = [1, 1, 1]} : vector<2x32x16xf32> to vector<2x8x16xf32>
    %108 = vector.extract_strided_slice %81 {offsets = [0, 0, 0], sizes = [2, 16, 8], strides = [1, 1, 1]} : vector<2x16x32xf32> to vector<2x16x8xf32>
    "tpu.trace_start"() <{level = 10 : i32, message = "bqk,bkd->bqd"}> : () -> ()
    %cst_42 = arith.constant dense<0.000000e+00> : vector<2x8x8xf32>
    %109 = tpu.matmul %107, %108, %cst_42 {dimension_numbers = #tpu.dot_dimension_numbers<[2], [1], [1], [2], [0, 0, 0, 1, 1, 2], [0], [0]>} : vector<2x8x16xf32>, vector<2x16x8xf32>, vector<2x8x8xf32> -> vector<2x8x8xf32>
    "tpu.trace_stop"() : () -> ()
    %110 = vector.extract_strided_slice %106 {offsets = [0, 8, 0], sizes = [2, 8, 16], strides = [1, 1, 1]} : vector<2x32x16xf32> to vector<2x8x16xf32>
    %111 = vector.extract_strided_slice %81 {offsets = [0, 0, 8], sizes = [2, 16, 8], strides = [1, 1, 1]} : vector<2x16x32xf32> to vector<2x16x8xf32>
    "tpu.trace_start"() <{level = 10 : i32, message = "bqk,bkd->bqd"}> : () -> ()
    %cst_43 = arith.constant dense<0.000000e+00> : vector<2x8x8xf32>
    %112 = tpu.matmul %110, %111, %cst_43 {dimension_numbers = #tpu.dot_dimension_numbers<[2], [1], [1], [2], [0, 0, 0, 1, 1, 2], [0], [0]>} : vector<2x8x16xf32>, vector<2x16x8xf32>, vector<2x8x8xf32> -> vector<2x8x8xf32>
    "tpu.trace_stop"() : () -> ()
    %113 = vector.extract_strided_slice %106 {offsets = [0, 16, 0], sizes = [2, 8, 16], strides = [1, 1, 1]} : vector<2x32x16xf32> to vector<2x8x16xf32>
    %114 = vector.extract_strided_slice %81 {offsets = [0, 0, 16], sizes = [2, 16, 8], strides = [1, 1, 1]} : vector<2x16x32xf32> to vector<2x16x8xf32>
    "tpu.trace_start"() <{level = 10 : i32, message = "bqk,bkd->bqd"}> : () -> ()
    %cst_44 = arith.constant dense<0.000000e+00> : vector<2x8x8xf32>
    %115 = tpu.matmul %113, %114, %cst_44 {dimension_numbers = #tpu.dot_dimension_numbers<[2], [1], [1], [2], [0, 0, 0, 1, 1, 2], [0], [0]>} : vector<2x8x16xf32>, vector<2x16x8xf32>, vector<2x8x8xf32> -> vector<2x8x8xf32>
    "tpu.trace_stop"() : () -> ()
    %116 = vector.extract_strided_slice %106 {offsets = [0, 24, 0], sizes = [2, 8, 16], strides = [1, 1, 1]} : vector<2x32x16xf32> to vector<2x8x16xf32>
    %117 = vector.extract_strided_slice %81 {offsets = [0, 0, 24], sizes = [2, 16, 8], strides = [1, 1, 1]} : vector<2x16x32xf32> to vector<2x16x8xf32>
    "tpu.trace_start"() <{level = 10 : i32, message = "bqk,bkd->bqd"}> : () -> ()
    %cst_45 = arith.constant dense<0.000000e+00> : vector<2x8x8xf32>
    %118 = tpu.matmul %116, %117, %cst_45 {dimension_numbers = #tpu.dot_dimension_numbers<[2], [1], [1], [2], [0, 0, 0, 1, 1, 2], [0], [0]>} : vector<2x8x16xf32>, vector<2x16x8xf32>, vector<2x8x8xf32> -> vector<2x8x8xf32>
    "tpu.trace_stop"() : () -> ()
    %119 = tpu.concatenate %109, %112, %115, %118 in 2 : vector<2x8x8xf32>, vector<2x8x8xf32>, vector<2x8x8xf32>, vector<2x8x8xf32> -> vector<2x8x32xf32>
    %120 = vector.shape_cast %119 : vector<2x8x32xf32> to vector<16x32xf32>
    %c88 = arith.constant 88 : index
    %c0_46 = arith.constant 0 : index
    %121 = vector.load %arg6[%c88, %c0_46] : memref<456x128xf32, #tpu.memory_space<vmem>>, vector<32x32xf32>
    %cst_47 = arith.constant dense<0.000000e+00> : vector<16x32xf32>
    %122 = tpu.matmul %120, %121, %cst_47 {dimension_numbers = #tpu.dot_dimension_numbers<[1], [0], [0], [1], [0, 0, 1, 1], [], []>} : vector<16x32xf32>, vector<32x32xf32>, vector<16x32xf32> -> vector<16x32xf32>
    %c10 = arith.constant 10 : index
    %c0_48 = arith.constant 0 : index
    %123 = vector.load %arg6[%c10, %c0_48] : memref<456x128xf32, #tpu.memory_space<vmem>>, vector<1x32xf32>
    %124 = vector.broadcast %123 : vector<1x32xf32> to vector<16x32xf32>
    %125 = arith.addf %122, %124 : vector<16x32xf32>
    %126 = arith.addf %125, %63 : vector<16x32xf32>
    %cst_49 = arith.constant dense<0.000000e+00> : vector<16xf32>
    %127 = vector.multi_reduction <add>, %126, %cst_49 [1] : vector<16x32xf32> to vector<16xf32>
    %128 = vector.shape_cast %127 : vector<16xf32> to vector<16x1xf32>
    %cst_50 = arith.constant 3.200000e+01 : f32
    %129 = vector.broadcast %cst_50 : f32 to vector<16x1xf32>
    %130 = arith.divf %128, %129 : vector<16x1xf32>
    %131 = vector.broadcast %130 : vector<16x1xf32> to vector<16x32xf32>
    %132 = arith.subf %126, %131 : vector<16x32xf32>
    %133 = arith.mulf %132, %132 : vector<16x32xf32>
    %cst_51 = arith.constant dense<0.000000e+00> : vector<16xf32>
    %134 = vector.multi_reduction <add>, %133, %cst_51 [1] : vector<16x32xf32> to vector<16xf32>
    %135 = vector.shape_cast %134 : vector<16xf32> to vector<16x1xf32>
    %cst_52 = arith.constant 3.200000e+01 : f32
    %136 = vector.broadcast %cst_52 : f32 to vector<16x1xf32>
    %137 = arith.divf %135, %136 : vector<16x1xf32>
    %138 = vector.broadcast %130 : vector<16x1xf32> to vector<16x32xf32>
    %139 = arith.subf %126, %138 : vector<16x32xf32>
    %cst_53 = arith.constant 9.99999974E-6 : f32
    %140 = vector.broadcast %cst_53 : f32 to vector<16x1xf32>
    %141 = arith.addf %137, %140 : vector<16x1xf32>
    %142 = math.rsqrt %141 : vector<16x1xf32>
    %143 = vector.broadcast %142 : vector<16x1xf32> to vector<16x32xf32>
    %144 = arith.mulf %139, %143 : vector<16x32xf32>
    %145 = vector.broadcast %64 : vector<1x32xf32> to vector<16x32xf32>
    %146 = arith.mulf %144, %145 : vector<16x32xf32>
    %147 = vector.broadcast %65 : vector<1x32xf32> to vector<16x32xf32>
    %148 = arith.addf %146, %147 : vector<16x32xf32>
    %c120 = arith.constant 120 : index
    %c0_54 = arith.constant 0 : index
    %149 = vector.load %arg6[%c120, %c0_54] : memref<456x128xf32, #tpu.memory_space<vmem>>, vector<32x32xf32>
    %cst_55 = arith.constant dense<0.000000e+00> : vector<16x32xf32>
    %150 = tpu.matmul %148, %149, %cst_55 {dimension_numbers = #tpu.dot_dimension_numbers<[1], [0], [0], [1], [0, 0, 1, 1], [], []>} : vector<16x32xf32>, vector<32x32xf32>, vector<16x32xf32> -> vector<16x32xf32>
    %c11 = arith.constant 11 : index
    %c0_56 = arith.constant 0 : index
    %151 = vector.load %arg6[%c11, %c0_56] : memref<456x128xf32, #tpu.memory_space<vmem>>, vector<1x32xf32>
    %152 = vector.broadcast %151 : vector<1x32xf32> to vector<16x32xf32>
    %153 = arith.addf %150, %152 : vector<16x32xf32>
    %cst_57 = arith.constant 0.353553385 : f32
    %154 = vector.broadcast %cst_57 : f32 to vector<16x32xf32>
    %155 = arith.mulf %153, %154 : vector<16x32xf32>
    %c152 = arith.constant 152 : index
    %c0_58 = arith.constant 0 : index
    %156 = vector.load %arg6[%c152, %c0_58] : memref<456x128xf32, #tpu.memory_space<vmem>>, vector<32x64xf32>
    %cst_59 = arith.constant dense<0.000000e+00> : vector<32x64xf32>
    %157 = tpu.matmul %34, %156, %cst_59 {dimension_numbers = #tpu.dot_dimension_numbers<[1], [0], [0], [1], [0, 0, 1, 1], [], []>} : vector<32x32xf32>, vector<32x64xf32>, vector<32x64xf32> -> vector<32x64xf32>
    %c12 = arith.constant 12 : index
    %c0_60 = arith.constant 0 : index
    %158 = vector.load %arg6[%c12, %c0_60] : memref<456x128xf32, #tpu.memory_space<vmem>>, vector<1x64xf32>
    %159 = vector.broadcast %158 : vector<1x64xf32> to vector<32x64xf32>
    %160 = arith.addf %157, %159 : vector<32x64xf32>
    %161 = vector.extract_strided_slice %160 {offsets = [0, 0], sizes = [32, 32], strides = [1, 1]} : vector<32x64xf32> to vector<32x32xf32>
    %162 = vector.shape_cast %161 : vector<32x32xf32> to vector<2x16x32xf32>
    %163 = vector.extract_strided_slice %160 {offsets = [0, 32], sizes = [32, 32], strides = [1, 1]} : vector<32x64xf32> to vector<32x32xf32>
    %164 = vector.shape_cast %163 : vector<32x32xf32> to vector<2x16x32xf32>
    %165 = vector.shape_cast %155 : vector<16x32xf32> to vector<2x8x32xf32>
    %166 = tpu.transpose %162, [0, 2, 1] : vector<2x16x32xf32> -> vector<2x32x16xf32>
    %167 = vector.extract_strided_slice %165 {offsets = [0, 0, 0], sizes = [2, 8, 8], strides = [1, 1, 1]} : vector<2x8x32xf32> to vector<2x8x8xf32>
    %168 = vector.extract_strided_slice %166 {offsets = [0, 0, 0], sizes = [2, 8, 16], strides = [1, 1, 1]} : vector<2x32x16xf32> to vector<2x8x16xf32>
    "tpu.trace_start"() <{level = 10 : i32, message = "bqd,bdk->bqk"}> : () -> ()
    %cst_61 = arith.constant dense<0.000000e+00> : vector<2x8x16xf32>
    %169 = tpu.matmul %167, %168, %cst_61 {dimension_numbers = #tpu.dot_dimension_numbers<[2], [1], [1], [2], [0, 0, 0, 1, 1, 2], [0], [0]>} : vector<2x8x8xf32>, vector<2x8x16xf32>, vector<2x8x16xf32> -> vector<2x8x16xf32>
    "tpu.trace_stop"() : () -> ()
    %170 = vector.extract_strided_slice %165 {offsets = [0, 0, 8], sizes = [2, 8, 8], strides = [1, 1, 1]} : vector<2x8x32xf32> to vector<2x8x8xf32>
    %171 = vector.extract_strided_slice %166 {offsets = [0, 8, 0], sizes = [2, 8, 16], strides = [1, 1, 1]} : vector<2x32x16xf32> to vector<2x8x16xf32>
    "tpu.trace_start"() <{level = 10 : i32, message = "bqd,bdk->bqk"}> : () -> ()
    %cst_62 = arith.constant dense<0.000000e+00> : vector<2x8x16xf32>
    %172 = tpu.matmul %170, %171, %cst_62 {dimension_numbers = #tpu.dot_dimension_numbers<[2], [1], [1], [2], [0, 0, 0, 1, 1, 2], [0], [0]>} : vector<2x8x8xf32>, vector<2x8x16xf32>, vector<2x8x16xf32> -> vector<2x8x16xf32>
    "tpu.trace_stop"() : () -> ()
    %173 = vector.extract_strided_slice %165 {offsets = [0, 0, 16], sizes = [2, 8, 8], strides = [1, 1, 1]} : vector<2x8x32xf32> to vector<2x8x8xf32>
    %174 = vector.extract_strided_slice %166 {offsets = [0, 16, 0], sizes = [2, 8, 16], strides = [1, 1, 1]} : vector<2x32x16xf32> to vector<2x8x16xf32>
    "tpu.trace_start"() <{level = 10 : i32, message = "bqd,bdk->bqk"}> : () -> ()
    %cst_63 = arith.constant dense<0.000000e+00> : vector<2x8x16xf32>
    %175 = tpu.matmul %173, %174, %cst_63 {dimension_numbers = #tpu.dot_dimension_numbers<[2], [1], [1], [2], [0, 0, 0, 1, 1, 2], [0], [0]>} : vector<2x8x8xf32>, vector<2x8x16xf32>, vector<2x8x16xf32> -> vector<2x8x16xf32>
    "tpu.trace_stop"() : () -> ()
    %176 = vector.extract_strided_slice %165 {offsets = [0, 0, 24], sizes = [2, 8, 8], strides = [1, 1, 1]} : vector<2x8x32xf32> to vector<2x8x8xf32>
    %177 = vector.extract_strided_slice %166 {offsets = [0, 24, 0], sizes = [2, 8, 16], strides = [1, 1, 1]} : vector<2x32x16xf32> to vector<2x8x16xf32>
    "tpu.trace_start"() <{level = 10 : i32, message = "bqd,bdk->bqk"}> : () -> ()
    %cst_64 = arith.constant dense<0.000000e+00> : vector<2x8x16xf32>
    %178 = tpu.matmul %176, %177, %cst_64 {dimension_numbers = #tpu.dot_dimension_numbers<[2], [1], [1], [2], [0, 0, 0, 1, 1, 2], [0], [0]>} : vector<2x8x8xf32>, vector<2x8x16xf32>, vector<2x8x16xf32> -> vector<2x8x16xf32>
    "tpu.trace_stop"() : () -> ()
    %179 = tpu.concatenate %169, %172, %175, %178 in 1 : vector<2x8x16xf32>, vector<2x8x16xf32>, vector<2x8x16xf32>, vector<2x8x16xf32> -> vector<2x32x16xf32>
    %cst_65 = arith.constant dense<0xFF800000> : vector<2x32xf32>
    %180 = vector.multi_reduction <maximumf>, %179, %cst_65 [2] : vector<2x32x16xf32> to vector<2x32xf32>
    %181 = vector.shape_cast %180 : vector<2x32xf32> to vector<2x32x1xf32>
    %182 = vector.broadcast %181 : vector<2x32x1xf32> to vector<2x32x16xf32>
    %183 = arith.subf %179, %182 : vector<2x32x16xf32>
    %184 = math.exp %183 : vector<2x32x16xf32>
    %cst_66 = arith.constant dense<0.000000e+00> : vector<2x32xf32>
    %185 = vector.multi_reduction <add>, %184, %cst_66 [2] : vector<2x32x16xf32> to vector<2x32xf32>
    %186 = vector.shape_cast %185 : vector<2x32xf32> to vector<2x32x1xf32>
    %187 = tpu.reciprocal %186 {approx = true} : vector<2x32x1xf32> -> vector<2x32x1xf32>
    %188 = vector.broadcast %187 : vector<2x32x1xf32> to vector<2x32x16xf32>
    %189 = arith.mulf %184, %188 : vector<2x32x16xf32>
    %190 = vector.extract_strided_slice %189 {offsets = [0, 0, 0], sizes = [2, 8, 16], strides = [1, 1, 1]} : vector<2x32x16xf32> to vector<2x8x16xf32>
    %191 = vector.extract_strided_slice %164 {offsets = [0, 0, 0], sizes = [2, 16, 8], strides = [1, 1, 1]} : vector<2x16x32xf32> to vector<2x16x8xf32>
    "tpu.trace_start"() <{level = 10 : i32, message = "bqk,bkd->bqd"}> : () -> ()
    %cst_67 = arith.constant dense<0.000000e+00> : vector<2x8x8xf32>
    %192 = tpu.matmul %190, %191, %cst_67 {dimension_numbers = #tpu.dot_dimension_numbers<[2], [1], [1], [2], [0, 0, 0, 1, 1, 2], [0], [0]>} : vector<2x8x16xf32>, vector<2x16x8xf32>, vector<2x8x8xf32> -> vector<2x8x8xf32>
    "tpu.trace_stop"() : () -> ()
    %193 = vector.extract_strided_slice %189 {offsets = [0, 8, 0], sizes = [2, 8, 16], strides = [1, 1, 1]} : vector<2x32x16xf32> to vector<2x8x16xf32>
    %194 = vector.extract_strided_slice %164 {offsets = [0, 0, 8], sizes = [2, 16, 8], strides = [1, 1, 1]} : vector<2x16x32xf32> to vector<2x16x8xf32>
    "tpu.trace_start"() <{level = 10 : i32, message = "bqk,bkd->bqd"}> : () -> ()
    %cst_68 = arith.constant dense<0.000000e+00> : vector<2x8x8xf32>
    %195 = tpu.matmul %193, %194, %cst_68 {dimension_numbers = #tpu.dot_dimension_numbers<[2], [1], [1], [2], [0, 0, 0, 1, 1, 2], [0], [0]>} : vector<2x8x16xf32>, vector<2x16x8xf32>, vector<2x8x8xf32> -> vector<2x8x8xf32>
    "tpu.trace_stop"() : () -> ()
    %196 = vector.extract_strided_slice %189 {offsets = [0, 16, 0], sizes = [2, 8, 16], strides = [1, 1, 1]} : vector<2x32x16xf32> to vector<2x8x16xf32>
    %197 = vector.extract_strided_slice %164 {offsets = [0, 0, 16], sizes = [2, 16, 8], strides = [1, 1, 1]} : vector<2x16x32xf32> to vector<2x16x8xf32>
    "tpu.trace_start"() <{level = 10 : i32, message = "bqk,bkd->bqd"}> : () -> ()
    %cst_69 = arith.constant dense<0.000000e+00> : vector<2x8x8xf32>
    %198 = tpu.matmul %196, %197, %cst_69 {dimension_numbers = #tpu.dot_dimension_numbers<[2], [1], [1], [2], [0, 0, 0, 1, 1, 2], [0], [0]>} : vector<2x8x16xf32>, vector<2x16x8xf32>, vector<2x8x8xf32> -> vector<2x8x8xf32>
    "tpu.trace_stop"() : () -> ()
    %199 = vector.extract_strided_slice %189 {offsets = [0, 24, 0], sizes = [2, 8, 16], strides = [1, 1, 1]} : vector<2x32x16xf32> to vector<2x8x16xf32>
    %200 = vector.extract_strided_slice %164 {offsets = [0, 0, 24], sizes = [2, 16, 8], strides = [1, 1, 1]} : vector<2x16x32xf32> to vector<2x16x8xf32>
    "tpu.trace_start"() <{level = 10 : i32, message = "bqk,bkd->bqd"}> : () -> ()
    %cst_70 = arith.constant dense<0.000000e+00> : vector<2x8x8xf32>
    %201 = tpu.matmul %199, %200, %cst_70 {dimension_numbers = #tpu.dot_dimension_numbers<[2], [1], [1], [2], [0, 0, 0, 1, 1, 2], [0], [0]>} : vector<2x8x16xf32>, vector<2x16x8xf32>, vector<2x8x8xf32> -> vector<2x8x8xf32>
    "tpu.trace_stop"() : () -> ()
    %202 = tpu.concatenate %192, %195, %198, %201 in 2 : vector<2x8x8xf32>, vector<2x8x8xf32>, vector<2x8x8xf32>, vector<2x8x8xf32> -> vector<2x8x32xf32>
    %203 = vector.shape_cast %202 : vector<2x8x32xf32> to vector<16x32xf32>
    %c184 = arith.constant 184 : index
    %c0_71 = arith.constant 0 : index
    %204 = vector.load %arg6[%c184, %c0_71] : memref<456x128xf32, #tpu.memory_space<vmem>>, vector<32x32xf32>
    %cst_72 = arith.constant dense<0.000000e+00> : vector<16x32xf32>
    %205 = tpu.matmul %203, %204, %cst_72 {dimension_numbers = #tpu.dot_dimension_numbers<[1], [0], [0], [1], [0, 0, 1, 1], [], []>} : vector<16x32xf32>, vector<32x32xf32>, vector<16x32xf32> -> vector<16x32xf32>
    %c13 = arith.constant 13 : index
    %c0_73 = arith.constant 0 : index
    %206 = vector.load %arg6[%c13, %c0_73] : memref<456x128xf32, #tpu.memory_space<vmem>>, vector<1x32xf32>
    %207 = vector.broadcast %206 : vector<1x32xf32> to vector<16x32xf32>
    %208 = arith.addf %205, %207 : vector<16x32xf32>
    %209 = arith.addf %208, %148 : vector<16x32xf32>
    %cst_74 = arith.constant dense<0.000000e+00> : vector<16xf32>
    %210 = vector.multi_reduction <add>, %209, %cst_74 [1] : vector<16x32xf32> to vector<16xf32>
    %211 = vector.shape_cast %210 : vector<16xf32> to vector<16x1xf32>
    %cst_75 = arith.constant 3.200000e+01 : f32
    %212 = vector.broadcast %cst_75 : f32 to vector<16x1xf32>
    %213 = arith.divf %211, %212 : vector<16x1xf32>
    %214 = vector.broadcast %213 : vector<16x1xf32> to vector<16x32xf32>
    %215 = arith.subf %209, %214 : vector<16x32xf32>
    %216 = arith.mulf %215, %215 : vector<16x32xf32>
    %cst_76 = arith.constant dense<0.000000e+00> : vector<16xf32>
    %217 = vector.multi_reduction <add>, %216, %cst_76 [1] : vector<16x32xf32> to vector<16xf32>
    %218 = vector.shape_cast %217 : vector<16xf32> to vector<16x1xf32>
    %cst_77 = arith.constant 3.200000e+01 : f32
    %219 = vector.broadcast %cst_77 : f32 to vector<16x1xf32>
    %220 = arith.divf %218, %219 : vector<16x1xf32>
    %221 = vector.broadcast %213 : vector<16x1xf32> to vector<16x32xf32>
    %222 = arith.subf %209, %221 : vector<16x32xf32>
    %cst_78 = arith.constant 9.99999974E-6 : f32
    %223 = vector.broadcast %cst_78 : f32 to vector<16x1xf32>
    %224 = arith.addf %220, %223 : vector<16x1xf32>
    %225 = math.rsqrt %224 : vector<16x1xf32>
    %226 = vector.broadcast %225 : vector<16x1xf32> to vector<16x32xf32>
    %227 = arith.mulf %222, %226 : vector<16x32xf32>
    %228 = vector.broadcast %64 : vector<1x32xf32> to vector<16x32xf32>
    %229 = arith.mulf %227, %228 : vector<16x32xf32>
    %230 = vector.broadcast %65 : vector<1x32xf32> to vector<16x32xf32>
    %231 = arith.addf %229, %230 : vector<16x32xf32>
    %c14 = arith.constant 14 : index
    %c0_79 = arith.constant 0 : index
    %232 = vector.load %arg6[%c14, %c0_79] : memref<456x128xf32, #tpu.memory_space<vmem>>, vector<1x32xf32>
    %c15 = arith.constant 15 : index
    %c0_80 = arith.constant 0 : index
    %233 = vector.load %arg6[%c15, %c0_80] : memref<456x128xf32, #tpu.memory_space<vmem>>, vector<1x32xf32>
    %cst_81 = arith.constant dense<0.000000e+00> : vector<16xf32>
    %234 = vector.multi_reduction <add>, %231, %cst_81 [1] : vector<16x32xf32> to vector<16xf32>
    %235 = vector.shape_cast %234 : vector<16xf32> to vector<16x1xf32>
    %cst_82 = arith.constant 3.200000e+01 : f32
    %236 = vector.broadcast %cst_82 : f32 to vector<16x1xf32>
    %237 = arith.divf %235, %236 : vector<16x1xf32>
    %238 = vector.broadcast %237 : vector<16x1xf32> to vector<16x32xf32>
    %239 = arith.subf %231, %238 : vector<16x32xf32>
    %240 = arith.mulf %239, %239 : vector<16x32xf32>
    %cst_83 = arith.constant dense<0.000000e+00> : vector<16xf32>
    %241 = vector.multi_reduction <add>, %240, %cst_83 [1] : vector<16x32xf32> to vector<16xf32>
    %242 = vector.shape_cast %241 : vector<16xf32> to vector<16x1xf32>
    %cst_84 = arith.constant 3.200000e+01 : f32
    %243 = vector.broadcast %cst_84 : f32 to vector<16x1xf32>
    %244 = arith.divf %242, %243 : vector<16x1xf32>
    %245 = vector.broadcast %237 : vector<16x1xf32> to vector<16x32xf32>
    %246 = arith.subf %231, %245 : vector<16x32xf32>
    %cst_85 = arith.constant 9.99999974E-6 : f32
    %247 = vector.broadcast %cst_85 : f32 to vector<16x1xf32>
    %248 = arith.addf %244, %247 : vector<16x1xf32>
    %249 = math.rsqrt %248 : vector<16x1xf32>
    %250 = vector.broadcast %249 : vector<16x1xf32> to vector<16x32xf32>
    %251 = arith.mulf %246, %250 : vector<16x32xf32>
    %252 = vector.broadcast %232 : vector<1x32xf32> to vector<16x32xf32>
    %253 = arith.mulf %251, %252 : vector<16x32xf32>
    %254 = vector.broadcast %233 : vector<1x32xf32> to vector<16x32xf32>
    %255 = arith.addf %253, %254 : vector<16x32xf32>
    %c216 = arith.constant 216 : index
    %c0_86 = arith.constant 0 : index
    %256 = vector.load %arg6[%c216, %c0_86] : memref<456x128xf32, #tpu.memory_space<vmem>>, vector<32x128xf32>
    %cst_87 = arith.constant dense<0.000000e+00> : vector<16x128xf32>
    %257 = tpu.matmul %255, %256, %cst_87 {dimension_numbers = #tpu.dot_dimension_numbers<[1], [0], [0], [1], [0, 0, 1, 1], [], []>} : vector<16x32xf32>, vector<32x128xf32>, vector<16x128xf32> -> vector<16x128xf32>
    %c16 = arith.constant 16 : index
    %c0_88 = arith.constant 0 : index
    %258 = vector.load %arg6[%c16, %c0_88] : memref<456x128xf32, #tpu.memory_space<vmem>>, vector<1x128xf32>
    %259 = vector.broadcast %258 : vector<1x128xf32> to vector<16x128xf32>
    %260 = arith.addf %257, %259 : vector<16x128xf32>
    %cst_89 = arith.constant 5.000000e-01 : f32
    %261 = vector.broadcast %cst_89 : f32 to vector<16x128xf32>
    %262 = arith.mulf %261, %260 : vector<16x128xf32>
    %cst_90 = arith.constant 0.707106769 : f32
    %263 = vector.broadcast %cst_90 : f32 to vector<16x128xf32>
    %264 = arith.mulf %260, %263 : vector<16x128xf32>
    %265 = math.erf %264 : vector<16x128xf32>
    %cst_91 = arith.constant 1.000000e+00 : f32
    %266 = vector.broadcast %cst_91 : f32 to vector<16x128xf32>
    %267 = arith.addf %266, %265 : vector<16x128xf32>
    %268 = arith.mulf %262, %267 : vector<16x128xf32>
    %c17 = arith.constant 17 : index
    %c0_92 = arith.constant 0 : index
    %269 = vector.load %arg6[%c17, %c0_92] : memref<456x128xf32, #tpu.memory_space<vmem>>, vector<1x128xf32>
    %c18 = arith.constant 18 : index
    %c0_93 = arith.constant 0 : index
    %270 = vector.load %arg6[%c18, %c0_93] : memref<456x128xf32, #tpu.memory_space<vmem>>, vector<1x128xf32>
    %cst_94 = arith.constant dense<0.000000e+00> : vector<16xf32>
    %271 = vector.multi_reduction <add>, %268, %cst_94 [1] : vector<16x128xf32> to vector<16xf32>
    %272 = vector.shape_cast %271 : vector<16xf32> to vector<16x1xf32>
    %cst_95 = arith.constant 1.280000e+02 : f32
    %273 = vector.broadcast %cst_95 : f32 to vector<16x1xf32>
    %274 = arith.divf %272, %273 : vector<16x1xf32>
    %275 = vector.broadcast %274 : vector<16x1xf32> to vector<16x128xf32>
    %276 = arith.subf %268, %275 : vector<16x128xf32>
    %277 = arith.mulf %276, %276 : vector<16x128xf32>
    %cst_96 = arith.constant dense<0.000000e+00> : vector<16xf32>
    %278 = vector.multi_reduction <add>, %277, %cst_96 [1] : vector<16x128xf32> to vector<16xf32>
    %279 = vector.shape_cast %278 : vector<16xf32> to vector<16x1xf32>
    %cst_97 = arith.constant 1.280000e+02 : f32
    %280 = vector.broadcast %cst_97 : f32 to vector<16x1xf32>
    %281 = arith.divf %279, %280 : vector<16x1xf32>
    %282 = vector.broadcast %274 : vector<16x1xf32> to vector<16x128xf32>
    %283 = arith.subf %268, %282 : vector<16x128xf32>
    %cst_98 = arith.constant 9.99999974E-6 : f32
    %284 = vector.broadcast %cst_98 : f32 to vector<16x1xf32>
    %285 = arith.addf %281, %284 : vector<16x1xf32>
    %286 = math.rsqrt %285 : vector<16x1xf32>
    %287 = vector.broadcast %286 : vector<16x1xf32> to vector<16x128xf32>
    %288 = arith.mulf %283, %287 : vector<16x128xf32>
    %289 = vector.broadcast %269 : vector<1x128xf32> to vector<16x128xf32>
    %290 = arith.mulf %288, %289 : vector<16x128xf32>
    %291 = vector.broadcast %270 : vector<1x128xf32> to vector<16x128xf32>
    %292 = arith.addf %290, %291 : vector<16x128xf32>
    %c248 = arith.constant 248 : index
    %c0_99 = arith.constant 0 : index
    %293 = vector.load %arg6[%c248, %c0_99] : memref<456x128xf32, #tpu.memory_space<vmem>>, vector<128x10xf32>
    %cst_100 = arith.constant dense<0.000000e+00> : vector<16x10xf32>
    %294 = tpu.matmul %292, %293, %cst_100 {dimension_numbers = #tpu.dot_dimension_numbers<[1], [0], [0], [1], [0, 0, 1, 1], [], []>} : vector<16x128xf32>, vector<128x10xf32>, vector<16x10xf32> -> vector<16x10xf32>
    %c19 = arith.constant 19 : index
    %c0_101 = arith.constant 0 : index
    %295 = vector.load %arg6[%c19, %c0_101] : memref<456x128xf32, #tpu.memory_space<vmem>>, vector<1x10xf32>
    %296 = vector.broadcast %295 : vector<1x10xf32> to vector<16x10xf32>
    %297 = arith.addf %294, %296 : vector<16x10xf32>
    %c0_102 = arith.constant 0 : index
    %c0_103 = arith.constant 0 : index
    %298 = vector.load %arg3[%c0_102, %c0_103] : memref<2x8xi32, #tpu.memory_space<vmem>>, vector<2x8xi32>
    %299 = arith.sitofp %298 : vector<2x8xi32> to vector<2x8xf32>
    %300 = vector.extract_strided_slice %299 {offsets = [0, 0], sizes = [1, 8], strides = [1, 1]} : vector<2x8xf32> to vector<1x8xf32>
    %301 = vector.extract_strided_slice %297 {offsets = [0, 0], sizes = [8, 10], strides = [1, 1]} : vector<16x10xf32> to vector<8x10xf32>
    %cst_104 = arith.constant dense<0.000000e+00> : vector<1x10xf32>
    %302 = tpu.matmul %300, %301, %cst_104 {dimension_numbers = #tpu.dot_dimension_numbers<[1], [0], [0], [1], [0, 0, 1, 1], [], []>} : vector<1x8xf32>, vector<8x10xf32>, vector<1x10xf32> -> vector<1x10xf32>
    %303 = vector.shape_cast %300 : vector<1x8xf32> to vector<1x1x8xf32>
    %cst_105 = arith.constant dense<0.000000e+00> : vector<1xf32>
    %304 = vector.multi_reduction <add>, %303, %cst_105 [1, 2] : vector<1x1x8xf32> to vector<1xf32>
    %305 = vector.shape_cast %304 : vector<1xf32> to vector<1x1x1xf32>
    %306 = vector.extract %305[0, 0, 0] : f32 from vector<1x1x1xf32>
    %cst_106 = arith.constant 1.000000e+00 : f32
    %307 = arith.maximumf %306, %cst_106 : f32
    %308 = vector.broadcast %307 : f32 to vector<1x10xf32>
    %309 = arith.divf %302, %308 : vector<1x10xf32>
    %310 = vector.extract_strided_slice %299 {offsets = [1, 0], sizes = [1, 8], strides = [1, 1]} : vector<2x8xf32> to vector<1x8xf32>
    %311 = vector.extract_strided_slice %297 {offsets = [8, 0], sizes = [8, 10], strides = [1, 1]} : vector<16x10xf32> to vector<8x10xf32>
    %cst_107 = arith.constant dense<0.000000e+00> : vector<1x10xf32>
    %312 = tpu.matmul %310, %311, %cst_107 {dimension_numbers = #tpu.dot_dimension_numbers<[1], [0], [0], [1], [0, 0, 1, 1], [], []>} : vector<1x8xf32>, vector<8x10xf32>, vector<1x10xf32> -> vector<1x10xf32>
    %313 = vector.shape_cast %310 : vector<1x8xf32> to vector<1x1x8xf32>
    %cst_108 = arith.constant dense<0.000000e+00> : vector<1xf32>
    %314 = vector.multi_reduction <add>, %313, %cst_108 [1, 2] : vector<1x1x8xf32> to vector<1xf32>
    %315 = vector.shape_cast %314 : vector<1xf32> to vector<1x1x1xf32>
    %316 = vector.extract %315[0, 0, 0] : f32 from vector<1x1x1xf32>
    %cst_109 = arith.constant 1.000000e+00 : f32
    %317 = arith.maximumf %316, %cst_109 : f32
    %318 = vector.broadcast %317 : f32 to vector<1x10xf32>
    %319 = arith.divf %312, %318 : vector<1x10xf32>
    %320 = tpu.concatenate %309, %319 in 0 : vector<1x10xf32>, vector<1x10xf32> -> vector<2x10xf32>
    %c376 = arith.constant 376 : index
    %c0_110 = arith.constant 0 : index
    %321 = vector.load %arg6[%c376, %c0_110] : memref<456x128xf32, #tpu.memory_space<vmem>>, vector<10x64xf32>
    %cst_111 = arith.constant dense<0.000000e+00> : vector<2x64xf32>
    %322 = tpu.matmul %320, %321, %cst_111 {dimension_numbers = #tpu.dot_dimension_numbers<[1], [0], [0], [1], [0, 0, 1, 1], [], []>} : vector<2x10xf32>, vector<10x64xf32>, vector<2x64xf32> -> vector<2x64xf32>
    %c20 = arith.constant 20 : index
    %c0_112 = arith.constant 0 : index
    %323 = vector.load %arg6[%c20, %c0_112] : memref<456x128xf32, #tpu.memory_space<vmem>>, vector<1x64xf32>
    %324 = vector.broadcast %323 : vector<1x64xf32> to vector<2x64xf32>
    %325 = arith.addf %322, %324 : vector<2x64xf32>
    %c21 = arith.constant 21 : index
    %c0_113 = arith.constant 0 : index
    %326 = vector.load %arg6[%c21, %c0_113] : memref<456x128xf32, #tpu.memory_space<vmem>>, vector<1x64xf32>
    %c22 = arith.constant 22 : index
    %c0_114 = arith.constant 0 : index
    %327 = vector.load %arg6[%c22, %c0_114] : memref<456x128xf32, #tpu.memory_space<vmem>>, vector<1x64xf32>
    %cst_115 = arith.constant dense<0.000000e+00> : vector<2xf32>
    %328 = vector.multi_reduction <add>, %325, %cst_115 [1] : vector<2x64xf32> to vector<2xf32>
    %329 = vector.shape_cast %328 : vector<2xf32> to vector<2x1xf32>
    %cst_116 = arith.constant 6.400000e+01 : f32
    %330 = vector.broadcast %cst_116 : f32 to vector<2x1xf32>
    %331 = arith.divf %329, %330 : vector<2x1xf32>
    %332 = vector.broadcast %331 : vector<2x1xf32> to vector<2x64xf32>
    %333 = arith.subf %325, %332 : vector<2x64xf32>
    %334 = arith.mulf %333, %333 : vector<2x64xf32>
    %cst_117 = arith.constant dense<0.000000e+00> : vector<2xf32>
    %335 = vector.multi_reduction <add>, %334, %cst_117 [1] : vector<2x64xf32> to vector<2xf32>
    %336 = vector.shape_cast %335 : vector<2xf32> to vector<2x1xf32>
    %cst_118 = arith.constant 6.400000e+01 : f32
    %337 = vector.broadcast %cst_118 : f32 to vector<2x1xf32>
    %338 = arith.divf %336, %337 : vector<2x1xf32>
    %339 = vector.broadcast %331 : vector<2x1xf32> to vector<2x64xf32>
    %340 = arith.subf %325, %339 : vector<2x64xf32>
    %cst_119 = arith.constant 9.99999974E-6 : f32
    %341 = vector.broadcast %cst_119 : f32 to vector<2x1xf32>
    %342 = arith.addf %338, %341 : vector<2x1xf32>
    %343 = math.rsqrt %342 : vector<2x1xf32>
    %344 = vector.broadcast %343 : vector<2x1xf32> to vector<2x64xf32>
    %345 = arith.mulf %340, %344 : vector<2x64xf32>
    %346 = vector.broadcast %326 : vector<1x64xf32> to vector<2x64xf32>
    %347 = arith.mulf %345, %346 : vector<2x64xf32>
    %348 = vector.broadcast %327 : vector<1x64xf32> to vector<2x64xf32>
    %349 = arith.addf %347, %348 : vector<2x64xf32>
    %cst_120 = arith.constant 5.000000e-01 : f32
    %350 = vector.broadcast %cst_120 : f32 to vector<2x64xf32>
    %351 = arith.mulf %350, %349 : vector<2x64xf32>
    %cst_121 = arith.constant 0.707106769 : f32
    %352 = vector.broadcast %cst_121 : f32 to vector<2x64xf32>
    %353 = arith.mulf %349, %352 : vector<2x64xf32>
    %354 = math.erf %353 : vector<2x64xf32>
    %cst_122 = arith.constant 1.000000e+00 : f32
    %355 = vector.broadcast %cst_122 : f32 to vector<2x64xf32>
    %356 = arith.addf %355, %354 : vector<2x64xf32>
    %357 = arith.mulf %351, %356 : vector<2x64xf32>
    %c392 = arith.constant 392 : index
    %c0_123 = arith.constant 0 : index
    %358 = vector.load %arg6[%c392, %c0_123] : memref<456x128xf32, #tpu.memory_space<vmem>>, vector<64x1xf32>
    %cst_124 = arith.constant dense<0.000000e+00> : vector<2x1xf32>
    %359 = tpu.matmul %357, %358, %cst_124 {dimension_numbers = #tpu.dot_dimension_numbers<[1], [0], [0], [1], [0, 0, 1, 1], [], []>} : vector<2x64xf32>, vector<64x1xf32>, vector<2x1xf32> -> vector<2x1xf32>
    %c23 = arith.constant 23 : index
    %c0_125 = arith.constant 0 : index
    %360 = vector.load %arg6[%c23, %c0_125] : memref<456x128xf32, #tpu.memory_space<vmem>>, vector<1x1xf32>
    %361 = vector.broadcast %360 : vector<1x1xf32> to vector<2x1xf32>
    %362 = arith.addf %359, %361 : vector<2x1xf32>
    %c0_126 = arith.constant 0 : index
    %c0_127 = arith.constant 0 : index
    %363 = vector.load %arg7[%c0_126, %c0_127] : memref<2x1xf32, #tpu.memory_space<vmem>>, vector<2x1xf32>
    tpu.vector_store %arg7[%c0_126, %c0_127], %362 {strides = array<i32>} : memref<2x1xf32, #tpu.memory_space<vmem>>, vector<2x1xf32>,
    return
  }
  func.func @transform_0(%arg0: i32) -> (i32, i32, i32) {
    %c0_i32 = arith.constant 0 : i32
    %c0_i32_0 = arith.constant 0 : i32
    %c0_i32_1 = arith.constant 0 : i32
    %c0_i32_2 = arith.constant 0 : i32
    return %c0_i32, %c0_i32_0, %c0_i32_1 : i32, i32, i32
  }
  func.func @transform_1(%arg0: i32) -> (i32, i32, i32) {
    %c0_i32 = arith.constant 0 : i32
    %c0_i32_0 = arith.constant 0 : i32
    %c0_i32_1 = arith.constant 0 : i32
    %c0_i32_2 = arith.constant 0 : i32
    return %c0_i32, %c0_i32_0, %c0_i32_1 : i32, i32, i32
  }
  func.func @transform_2(%arg0: i32) -> (i32, i32) {
    %c0_i32 = arith.constant 0 : i32
    %c0_i32_0 = arith.constant 0 : i32
    %c0_i32_1 = arith.constant 0 : i32
    return %c0_i32, %c0_i32_0 : i32, i32
  }
  func.func @transform_3(%arg0: i32) -> (i32, i32) {
    %c0_i32 = arith.constant 0 : i32
    %c0_i32_0 = arith.constant 0 : i32
    %c0_i32_1 = arith.constant 0 : i32
    return %c0_i32, %c0_i32_0 : i32, i32
  }
  func.func @transform_4(%arg0: i32) -> (i32, i32) {
    %c0_i32 = arith.constant 0 : i32
    %c0_i32_0 = arith.constant 0 : i32
    %c0_i32_1 = arith.constant 0 : i32
    return %c0_i32, %c0_i32_0 : i32, i32
  }
  func.func @transform_5(%arg0: i32) -> (i32, i32) {
    %c0_i32 = arith.constant 0 : i32
    %c0_i32_0 = arith.constant 0 : i32
    %c0_i32_1 = arith.constant 0 : i32
    return %c0_i32, %c0_i32_0 : i32, i32
  }
  func.func @transform_6(%arg0: i32) -> (i32, i32) {
    %c0_i32 = arith.constant 0 : i32
    %c0_i32_0 = arith.constant 0 : i32
    %c0_i32_1 = arith.constant 0 : i32
    return %c0_i32, %c0_i32_0 : i32, i32
  }
}

</mosaic_0001>

<llo_original>
// kernel: forward.1
$region0: #{forward.1}
  #allocation0 [shape = 'u32[]', space=smem, size = 0x4, offset = 0x4, fixed_abs, tag = 'smem constant byte address 0x4 - core index']
  #allocation1 [shape = 'u32[144,128]{1,0:T(1,128)}', space=vmem, size = 0x12000, scoped, tag = 'internal scratch']
  %s0 = inlined_call_operand.vmem [shape: f32[2,16,1024], index: 0, kind: input, shape index: {}]
  %s1 = inlined_call_operand.vmem [shape: f32[2,8,768], index: 1, kind: input, shape index: {}]
  %s2 = inlined_call_operand.vmem [shape: s32[2,8], index: 2, kind: input, shape index: {}]
  %s3 = inlined_call_operand.vmem [shape: bf16[1024,32], index: 3, kind: input, shape index: {}]
  %s4 = inlined_call_operand.vmem [shape: bf16[768,32], index: 4, kind: input, shape index: {}]
  %s5 = inlined_call_operand.vmem [shape: f32[456,128], index: 5, kind: input, shape index: {}]
  %s6 = inlined_call_operand.vmem [shape: f32[2,1], index: 6, kind: output, shape index: {}]
  %s7 = sld [smem:[#allocation0]]
  $region34: #{forward.1} parent=0
    _
  %s9 = ssub.s32 1, %s7
  %s10 = scalar_select 0, %s9, %s7
  // Predicated region
  $region2: #{forward.1} parent=0 // pred_check
    _
  $region3: #{forward.1} parent=0 // pred_check_branch
    %12 = sbr.rel (0) target = $region5
  $region4: #{forward.1} parent=0 // pred_region
    _
  $region5: #{forward.1} parent=0 // pred_fallthru
    _
  // Predicated region
  $region6: #{forward.1} parent=0 // pred_check
    _
  $region7: #{forward.1} parent=0 // pred_check_branch
    %14 = sbr.rel (0) target = $region9
  $region8: #{forward.1} parent=0 // pred_region
    _
  $region9: #{forward.1} parent=0 // pred_fallthru
    _
  // Predicated region
  $region10: #{forward.1} parent=0 // pred_check
    _
  $region11: #{forward.1} parent=0 // pred_check_branch
    %16 = sbr.rel (0) target = $region13
  $region12: #{forward.1} parent=0 // pred_region
    _
  $region13: #{forward.1} parent=0 // pred_fallthru
    _
  // Predicated region
  $region14: #{forward.1} parent=0 // pred_check
    _
  $region15: #{forward.1} parent=0 // pred_check_branch
    %18 = sbr.rel (0) target = $region17
  $region16: #{forward.1} parent=0 // pred_region
    _
  $region17: #{forward.1} parent=0 // pred_fallthru
    _
  // Predicated region
  $region18: #{forward.1} parent=0 // pred_check
    _
  $region19: #{forward.1} parent=0 // pred_check_branch
    %20 = sbr.rel (0) target = $region21
  $region20: #{forward.1} parent=0 // pred_region
    _
  $region21: #{forward.1} parent=0 // pred_fallthru
    _
  // Predicated region
  $region22: #{forward.1} parent=0 // pred_check
    _
  $region23: #{forward.1} parent=0 // pred_check_branch
    %22 = sbr.rel (0) target = $region25
  $region24: #{forward.1} parent=0 // pred_region
    _
  $region25: #{forward.1} parent=0 // pred_fallthru
    _
  %v24 = vld [vmem:[%s0] sm:$0xff]
  %v25 = vld [vmem:[%s0 + $0x8] sm:$0xff]
  %v26 = vld [vmem:[%s0 + $0x10] sm:$0xff]
  %v27 = vld [vmem:[%s0 + $0x18] sm:$0xff]
  %v28 = vld [vmem:[%s0 + $0x20] sm:$0xff]
  %v29 = vld [vmem:[%s0 + $0x28] sm:$0xff]
  %v30 = vld [vmem:[%s0 + $0x30] sm:$0xff]
  %v31 = vld [vmem:[%s0 + $0x38] sm:$0xff]
  %v32 = vld [vmem:[%s0 + $0x40] sm:$0xff]
  %v33 = vld [vmem:[%s0 + $0x48] sm:$0xff]
  %v34 = vld [vmem:[%s0 + $0x50] sm:$0xff]
  %v35 = vld [vmem:[%s0 + $0x58] sm:$0xff]
  %v36 = vld [vmem:[%s0 + $0x60] sm:$0xff]
  %v37 = vld [vmem:[%s0 + $0x68] sm:$0xff]
  %v38 = vld [vmem:[%s0 + $0x70] sm:$0xff]
  %v39 = vld [vmem:[%s0 + $0x78] sm:$0xff]
  %v40 = vld [vmem:[%s0 + $0x80] sm:$0xff]
  %v41 = vld [vmem:[%s0 + $0x88] sm:$0xff]
  %v42 = vld [vmem:[%s0 + $0x90] sm:$0xff]
  %v43 = vld [vmem:[%s0 + $0x98] sm:$0xff]
  %v44 = vld [vmem:[%s0 + $0xa0] sm:$0xff]
  %v45 = vld [vmem:[%s0 + $0xa8] sm:$0xff]
  %v46 = vld [vmem:[%s0 + $0xb0] sm:$0xff]
  %v47 = vld [vmem:[%s0 + $0xb8] sm:$0xff]
  %v48 = vld [vmem:[%s0 + $0xc0] sm:$0xff]
  %v49 = vld [vmem:[%s0 + $0xc8] sm:$0xff]
  %v50 = vld [vmem:[%s0 + $0xd0] sm:$0xff]
  %v51 = vld [vmem:[%s0 + $0xd8] sm:$0xff]
  %v52 = vld [vmem:[%s0 + $0xe0] sm:$0xff]
  %v53 = vld [vmem:[%s0 + $0xe8] sm:$0xff]
  %v54 = vld [vmem:[%s0 + $0xf0] sm:$0xff]
  %v55 = vld [vmem:[%s0 + $0xf8] sm:$0xff]
  %v56 = vpack.c.bf16 %v32, %v24
  %v57 = vpack.c.bf16 %v33, %v25
  %v58 = vpack.c.bf16 %v34, %v26
  %v59 = vpack.c.bf16 %v35, %v27
  %v60 = vpack.c.bf16 %v36, %v28
  %v61 = vpack.c.bf16 %v37, %v29
  %v62 = vpack.c.bf16 %v38, %v30
  %v63 = vpack.c.bf16 %v39, %v31
  %v64 = vpack.c.bf16 %v48, %v40
  %v65 = vpack.c.bf16 %v49, %v41
  %v66 = vpack.c.bf16 %v50, %v42
  %v67 = vpack.c.bf16 %v51, %v43
  %v68 = vpack.c.bf16 %v52, %v44
  %v69 = vpack.c.bf16 %v53, %v45
  %v70 = vpack.c.bf16 %v54, %v46
  %v71 = vpack.c.bf16 %v55, %v47
  %v72 = vld [vmem:[%s1] sm:$0xff]
  %v73 = vld [vmem:[%s1 + $0x8] sm:$0xff]
  %v74 = vld [vmem:[%s1 + $0x10] sm:$0xff]
  %v75 = vld [vmem:[%s1 + $0x18] sm:$0xff]
  %v76 = vld [vmem:[%s1 + $0x20] sm:$0xff]
  %v77 = vld [vmem:[%s1 + $0x28] sm:$0xff]
  %v78 = vld [vmem:[%s1 + $0x30] sm:$0xff]
  %v79 = vld [vmem:[%s1 + $0x38] sm:$0xff]
  %v80 = vld [vmem:[%s1 + $0x40] sm:$0xff]
  %v81 = vld [vmem:[%s1 + $0x48] sm:$0xff]
  %v82 = vld [vmem:[%s1 + $0x50] sm:$0xff]
  %v83 = vld [vmem:[%s1 + $0x58] sm:$0xff]
  %v84 = vpack.c.bf16 %v78, %v72
  %v85 = vpack.c.bf16 %v79, %v73
  %v86 = vpack.c.bf16 %v80, %v74
  %v87 = vpack.c.bf16 %v81, %v75
  %v88 = vpack.c.bf16 %v82, %v76
  %v89 = vpack.c.bf16 %v83, %v77
  %v90 = vld [vmem:[%s3] sm:$0xf]
  %v91 = vld [vmem:[%s3 + $0x4] sm:$0xf]
  %v92 = vld [vmem:[%s3 + $0x8] sm:$0xf]
  %v93 = vld [vmem:[%s3 + $0xc] sm:$0xf]
  %v94 = vld [vmem:[%s3 + $0x10] sm:$0xf]
  %v95 = vld [vmem:[%s3 + $0x14] sm:$0xf]
  %v96 = vld [vmem:[%s3 + $0x18] sm:$0xf]
  %v97 = vld [vmem:[%s3 + $0x1c] sm:$0xf]
  %v98 = vld [vmem:[%s3 + $0x20] sm:$0xf]
  %v99 = vld [vmem:[%s3 + $0x24] sm:$0xf]
  %v100 = vld [vmem:[%s3 + $0x28] sm:$0xf]
  %v101 = vld [vmem:[%s3 + $0x2c] sm:$0xf]
  %v102 = vld [vmem:[%s3 + $0x30] sm:$0xf]
  %v103 = vld [vmem:[%s3 + $0x34] sm:$0xf]
  %v104 = vld [vmem:[%s3 + $0x38] sm:$0xf]
  %v105 = vld [vmem:[%s3 + $0x3c] sm:$0xf]
  %v106 = vld [vmem:[%s3 + $0x40] sm:$0xf]
  %v107 = vld [vmem:[%s3 + $0x44] sm:$0xf]
  %v108 = vld [vmem:[%s3 + $0x48] sm:$0xf]
  %v109 = vld [vmem:[%s3 + $0x4c] sm:$0xf]
  %v110 = vld [vmem:[%s3 + $0x50] sm:$0xf]
  %v111 = vld [vmem:[%s3 + $0x54] sm:$0xf]
  %v112 = vld [vmem:[%s3 + $0x58] sm:$0xf]
  %v113 = vld [vmem:[%s3 + $0x5c] sm:$0xf]
  %v114 = vld [vmem:[%s3 + $0x60] sm:$0xf]
  %v115 = vld [vmem:[%s3 + $0x64] sm:$0xf]
  %v116 = vld [vmem:[%s3 + $0x68] sm:$0xf]
  %v117 = vld [vmem:[%s3 + $0x6c] sm:$0xf]
  %v118 = vld [vmem:[%s3 + $0x70] sm:$0xf]
  %v119 = vld [vmem:[%s3 + $0x74] sm:$0xf]
  %v120 = vld [vmem:[%s3 + $0x78] sm:$0xf]
  %v121 = vld [vmem:[%s3 + $0x7c] sm:$0xf]
  %v122 = vld [vmem:[%s3 + $0x80] sm:$0xf]
  %v123 = vld [vmem:[%s3 + $0x84] sm:$0xf]
  %v124 = vld [vmem:[%s3 + $0x88] sm:$0xf]
  %v125 = vld [vmem:[%s3 + $0x8c] sm:$0xf]
  %v126 = vld [vmem:[%s3 + $0x90] sm:$0xf]
  %v127 = vld [vmem:[%s3 + $0x94] sm:$0xf]
  %v128 = vld [vmem:[%s3 + $0x98] sm:$0xf]
  %v129 = vld [vmem:[%s3 + $0x9c] sm:$0xf]
  %v130 = vld [vmem:[%s3 + $0xa0] sm:$0xf]
  %v131 = vld [vmem:[%s3 + $0xa4] sm:$0xf]
  %v132 = vld [vmem:[%s3 + $0xa8] sm:$0xf]
  %v133 = vld [vmem:[%s3 + $0xac] sm:$0xf]
  %v134 = vld [vmem:[%s3 + $0xb0] sm:$0xf]
  %v135 = vld [vmem:[%s3 + $0xb4] sm:$0xf]
  %v136 = vld [vmem:[%s3 + $0xb8] sm:$0xf]
  %v137 = vld [vmem:[%s3 + $0xbc] sm:$0xf]
  %v138 = vld [vmem:[%s3 + $0xc0] sm:$0xf]
  %v139 = vld [vmem:[%s3 + $0xc4] sm:$0xf]
  %v140 = vld [vmem:[%s3 + $0xc8] sm:$0xf]
  %v141 = vld [vmem:[%s3 + $0xcc] sm:$0xf]
  %v142 = vld [vmem:[%s3 + $0xd0] sm:$0xf]
  %v143 = vld [vmem:[%s3 + $0xd4] sm:$0xf]
  %v144 = vld [vmem:[%s3 + $0xd8] sm:$0xf]
  %v145 = vld [vmem:[%s3 + $0xdc] sm:$0xf]
  %v146 = vld [vmem:[%s3 + $0xe0] sm:$0xf]
  %v147 = vld [vmem:[%s3 + $0xe4] sm:$0xf]
  %v148 = vld [vmem:[%s3 + $0xe8] sm:$0xf]
  %v149 = vld [vmem:[%s3 + $0xec] sm:$0xf]
  %v150 = vld [vmem:[%s3 + $0xf0] sm:$0xf]
  %v151 = vld [vmem:[%s3 + $0xf4] sm:$0xf]
  %v152 = vld [vmem:[%s3 + $0xf8] sm:$0xf]
  %v153 = vld [vmem:[%s3 + $0xfc] sm:$0xf]
  %v154 = vld [vmem:[%s3 + $0x100] sm:$0xf]
  %v155 = vld [vmem:[%s3 + $0x104] sm:$0xf]
  %v156 = vld [vmem:[%s3 + $0x108] sm:$0xf]
  %v157 = vld [vmem:[%s3 + $0x10c] sm:$0xf]
  %v158 = vld [vmem:[%s3 + $0x110] sm:$0xf]
  %v159 = vld [vmem:[%s3 + $0x114] sm:$0xf]
  %v160 = vld [vmem:[%s3 + $0x118] sm:$0xf]
  %v161 = vld [vmem:[%s3 + $0x11c] sm:$0xf]
  %v162 = vld [vmem:[%s3 + $0x120] sm:$0xf]
  %v163 = vld [vmem:[%s3 + $0x124] sm:$0xf]
  %v164 = vld [vmem:[%s3 + $0x128] sm:$0xf]
  %v165 = vld [vmem:[%s3 + $0x12c] sm:$0xf]
  %v166 = vld [vmem:[%s3 + $0x130] sm:$0xf]
  %v167 = vld [vmem:[%s3 + $0x134] sm:$0xf]
  %v168 = vld [vmem:[%s3 + $0x138] sm:$0xf]
  %v169 = vld [vmem:[%s3 + $0x13c] sm:$0xf]
  %v170 = vld [vmem:[%s3 + $0x140] sm:$0xf]
  %v171 = vld [vmem:[%s3 + $0x144] sm:$0xf]
  %v172 = vld [vmem:[%s3 + $0x148] sm:$0xf]
  %v173 = vld [vmem:[%s3 + $0x14c] sm:$0xf]
  %v174 = vld [vmem:[%s3 + $0x150] sm:$0xf]
  %v175 = vld [vmem:[%s3 + $0x154] sm:$0xf]
  %v176 = vld [vmem:[%s3 + $0x158] sm:$0xf]
  %v177 = vld [vmem:[%s3 + $0x15c] sm:$0xf]
  %v178 = vld [vmem:[%s3 + $0x160] sm:$0xf]
  %v179 = vld [vmem:[%s3 + $0x164] sm:$0xf]
  %v180 = vld [vmem:[%s3 + $0x168] sm:$0xf]
  %v181 = vld [vmem:[%s3 + $0x16c] sm:$0xf]
  %v182 = vld [vmem:[%s3 + $0x170] sm:$0xf]
  %v183 = vld [vmem:[%s3 + $0x174] sm:$0xf]
  %v184 = vld [vmem:[%s3 + $0x178] sm:$0xf]
  %v185 = vld [vmem:[%s3 + $0x17c] sm:$0xf]
  %v186 = vld [vmem:[%s3 + $0x180] sm:$0xf]
  %v187 = vld [vmem:[%s3 + $0x184] sm:$0xf]
  %v188 = vld [vmem:[%s3 + $0x188] sm:$0xf]
  %v189 = vld [vmem:[%s3 + $0x18c] sm:$0xf]
  %v190 = vld [vmem:[%s3 + $0x190] sm:$0xf]
  %v191 = vld [vmem:[%s3 + $0x194] sm:$0xf]
  %v192 = vld [vmem:[%s3 + $0x198] sm:$0xf]
  %v193 = vld [vmem:[%s3 + $0x19c] sm:$0xf]
  %v194 = vld [vmem:[%s3 + $0x1a0] sm:$0xf]
  %v195 = vld [vmem:[%s3 + $0x1a4] sm:$0xf]
  %v196 = vld [vmem:[%s3 + $0x1a8] sm:$0xf]
  %v197 = vld [vmem:[%s3 + $0x1ac] sm:$0xf]
  %v198 = vld [vmem:[%s3 + $0x1b0] sm:$0xf]
  %v199 = vld [vmem:[%s3 + $0x1b4] sm:$0xf]
  %v200 = vld [vmem:[%s3 + $0x1b8] sm:$0xf]
  %v201 = vld [vmem:[%s3 + $0x1bc] sm:$0xf]
  %v202 = vld [vmem:[%s3 + $0x1c0] sm:$0xf]
  %v203 = vld [vmem:[%s3 + $0x1c4] sm:$0xf]
  %v204 = vld [vmem:[%s3 + $0x1c8] sm:$0xf]
  %v205 = vld [vmem:[%s3 + $0x1cc] sm:$0xf]
  %v206 = vld [vmem:[%s3 + $0x1d0] sm:$0xf]
  %v207 = vld [vmem:[%s3 + $0x1d4] sm:$0xf]
  %v208 = vld [vmem:[%s3 + $0x1d8] sm:$0xf]
  %v209 = vld [vmem:[%s3 + $0x1dc] sm:$0xf]
  %v210 = vld [vmem:[%s3 + $0x1e0] sm:$0xf]
  %v211 = vld [vmem:[%s3 + $0x1e4] sm:$0xf]
  %v212 = vld [vmem:[%s3 + $0x1e8] sm:$0xf]
  %v213 = vld [vmem:[%s3 + $0x1ec] sm:$0xf]
  %v214 = vld [vmem:[%s3 + $0x1f0] sm:$0xf]
  %v215 = vld [vmem:[%s3 + $0x1f4] sm:$0xf]
  %v216 = vld [vmem:[%s3 + $0x1f8] sm:$0xf]
  %v217 = vld [vmem:[%s3 + $0x1fc] sm:$0xf]
  %v218 = vld [vmem:[%s5] sm:$0x1]
  %v219 = vlaneseq
  %v220 = vshrl.u32 %v219, 7
  %v221 = vsub.s32 0, %v220
  %v222 = vrot.slane %v218, %v221
  %v351 = vunpack.c.l.b16 %v90
  %v352 = vunpack.c.l.b16 %v91
  %v353 = vunpack.c.l.b16 %v92
  %v354 = vunpack.c.l.b16 %v93
  %v355 = vunpack.c.l.b16 %v94
  %v356 = vunpack.c.l.b16 %v95
  %v357 = vunpack.c.l.b16 %v96
  %v358 = vunpack.c.l.b16 %v97
  %v359 = vunpack.c.l.b16 %v98
  %v360 = vunpack.c.l.b16 %v99
  %v361 = vunpack.c.l.b16 %v100
  %v362 = vunpack.c.l.b16 %v101
  %v363 = vunpack.c.l.b16 %v102
  %v364 = vunpack.c.l.b16 %v103
  %v365 = vunpack.c.l.b16 %v104
  %v366 = vunpack.c.l.b16 %v105
  %v367 = vunpack.c.l.b16 %v106
  %v368 = vunpack.c.l.b16 %v107
  %v369 = vunpack.c.l.b16 %v108
  %v370 = vunpack.c.l.b16 %v109
  %v371 = vunpack.c.l.b16 %v110
  %v372 = vunpack.c.l.b16 %v111
  %v373 = vunpack.c.l.b16 %v112
  %v374 = vunpack.c.l.b16 %v113
  %v375 = vunpack.c.l.b16 %v114
  %v376 = vunpack.c.l.b16 %v115
  %v377 = vunpack.c.l.b16 %v116
  %v378 = vunpack.c.l.b16 %v117
  %v379 = vunpack.c.l.b16 %v118
  %v380 = vunpack.c.l.b16 %v119
  %v381 = vunpack.c.l.b16 %v120
  %v382 = vunpack.c.l.b16 %v121
  %v383 = vunpack.c.l.b16 %v122
  %v384 = vunpack.c.l.b16 %v123
  %v385 = vunpack.c.l.b16 %v124
  %v386 = vunpack.c.l.b16 %v125
  %v387 = vunpack.c.l.b16 %v126
  %v388 = vunpack.c.l.b16 %v127
  %v389 = vunpack.c.l.b16 %v128
  %v390 = vunpack.c.l.b16 %v129
  %v391 = vunpack.c.l.b16 %v130
  %v392 = vunpack.c.l.b16 %v131
  %v393 = vunpack.c.l.b16 %v132
  %v394 = vunpack.c.l.b16 %v133
  %v395 = vunpack.c.l.b16 %v134
  %v396 = vunpack.c.l.b16 %v135
  %v397 = vunpack.c.l.b16 %v136
  %v398 = vunpack.c.l.b16 %v137
  %v399 = vunpack.c.l.b16 %v138
  %v400 = vunpack.c.l.b16 %v139
  %v401 = vunpack.c.l.b16 %v140
  %v402 = vunpack.c.l.b16 %v141
  %v403 = vunpack.c.l.b16 %v142
  %v404 = vunpack.c.l.b16 %v143
  %v405 = vunpack.c.l.b16 %v144
  %v406 = vunpack.c.l.b16 %v145
  %v407 = vunpack.c.l.b16 %v146
  %v408 = vunpack.c.l.b16 %v147
  %v409 = vunpack.c.l.b16 %v148
  %v410 = vunpack.c.l.b16 %v149
  %v411 = vunpack.c.l.b16 %v150
  %v412 = vunpack.c.l.b16 %v151
  %v413 = vunpack.c.l.b16 %v152
  %v414 = vunpack.c.l.b16 %v153
  %v415 = vunpack.c.l.b16 %v154
  %v416 = vunpack.c.l.b16 %v155
  %v417 = vunpack.c.l.b16 %v156
  %v418 = vunpack.c.l.b16 %v157
  %v419 = vunpack.c.l.b16 %v158
  %v420 = vunpack.c.l.b16 %v159
  %v421 = vunpack.c.l.b16 %v160
  %v422 = vunpack.c.l.b16 %v161
  %v423 = vunpack.c.l.b16 %v162
  %v424 = vunpack.c.l.b16 %v163
  %v425 = vunpack.c.l.b16 %v164
  %v426 = vunpack.c.l.b16 %v165
  %v427 = vunpack.c.l.b16 %v166
  %v428 = vunpack.c.l.b16 %v167
  %v429 = vunpack.c.l.b16 %v168
  %v430 = vunpack.c.l.b16 %v169
  %v431 = vunpack.c.l.b16 %v170
  %v432 = vunpack.c.l.b16 %v171
  %v433 = vunpack.c.l.b16 %v172
  %v434 = vunpack.c.l.b16 %v173
  %v435 = vunpack.c.l.b16 %v174
  %v436 = vunpack.c.l.b16 %v175
  %v437 = vunpack.c.l.b16 %v176
  %v438 = vunpack.c.l.b16 %v177
  %v439 = vunpack.c.l.b16 %v178
  %v440 = vunpack.c.l.b16 %v179
  %v441 = vunpack.c.l.b16 %v180
  %v442 = vunpack.c.l.b16 %v181
  %v443 = vunpack.c.l.b16 %v182
  %v444 = vunpack.c.l.b16 %v183
  %v445 = vunpack.c.l.b16 %v184
  %v446 = vunpack.c.l.b16 %v185
  %v447 = vunpack.c.l.b16 %v186
  %v448 = vunpack.c.l.b16 %v187
  %v449 = vunpack.c.l.b16 %v188
  %v450 = vunpack.c.l.b16 %v189
  %v451 = vunpack.c.l.b16 %v190
  %v452 = vunpack.c.l.b16 %v191
  %v453 = vunpack.c.l.b16 %v192
  %v454 = vunpack.c.l.b16 %v193
  %v455 = vunpack.c.l.b16 %v194
  %v456 = vunpack.c.l.b16 %v195
  %v457 = vunpack.c.l.b16 %v196
  %v458 = vunpack.c.l.b16 %v197
  %v459 = vunpack.c.l.b16 %v198
  %v460 = vunpack.c.l.b16 %v199
  %v461 = vunpack.c.l.b16 %v200
  %v462 = vunpack.c.l.b16 %v201
  %v463 = vunpack.c.l.b16 %v202
  %v464 = vunpack.c.l.b16 %v203
  %v465 = vunpack.c.l.b16 %v204
  %v466 = vunpack.c.l.b16 %v205
  %v467 = vunpack.c.l.b16 %v206
  %v468 = vunpack.c.l.b16 %v207
  %v469 = vunpack.c.l.b16 %v208
  %v470 = vunpack.c.l.b16 %v209
  %v471 = vunpack.c.l.b16 %v210
  %v472 = vunpack.c.l.b16 %v211
  %v473 = vunpack.c.l.b16 %v212
  %v474 = vunpack.c.l.b16 %v213
  %v475 = vunpack.c.l.b16 %v214
  %v476 = vunpack.c.l.b16 %v215
  %v477 = vunpack.c.l.b16 %v216
  %v478 = vunpack.c.l.b16 %v217
  %v479 = vpack.c.b16 %v352, %v351
  %v480 = vpack.c.b16 %v354, %v353
  %v481 = vpack.c.b16 %v356, %v355
  %v482 = vpack.c.b16 %v358, %v357
  %v483 = vpack.c.b16 %v360, %v359
  %v484 = vpack.c.b16 %v362, %v361
  %v485 = vpack.c.b16 %v364, %v363
  %v486 = vpack.c.b16 %v366, %v365
  %v487 = vpack.c.b16 %v368, %v367
  %v488 = vpack.c.b16 %v370, %v369
  %v489 = vpack.c.b16 %v372, %v371
  %v490 = vpack.c.b16 %v374, %v373
  %v491 = vpack.c.b16 %v376, %v375
  %v492 = vpack.c.b16 %v378, %v377
  %v493 = vpack.c.b16 %v380, %v379
  %v494 = vpack.c.b16 %v382, %v381
  %v495 = vpack.c.b16 %v384, %v383
  %v496 = vpack.c.b16 %v386, %v385
  %v497 = vpack.c.b16 %v388, %v387
  %v498 = vpack.c.b16 %v390, %v389
  %v499 = vpack.c.b16 %v392, %v391
  %v500 = vpack.c.b16 %v394, %v393
  %v501 = vpack.c.b16 %v396, %v395
  %v502 = vpack.c.b16 %v398, %v397
  %v503 = vpack.c.b16 %v400, %v399
  %v504 = vpack.c.b16 %v402, %v401
  %v505 = vpack.c.b16 %v404, %v403
  %v506 = vpack.c.b16 %v406, %v405
  %v507 = vpack.c.b16 %v408, %v407
  %v508 = vpack.c.b16 %v410, %v409
  %v509 = vpack.c.b16 %v412, %v411
  %v510 = vpack.c.b16 %v414, %v413
  %v511 = vpack.c.b16 %v416, %v415
  %v512 = vpack.c.b16 %v418, %v417
  %v513 = vpack.c.b16 %v420, %v419
  %v514 = vpack.c.b16 %v422, %v421
  %v515 = vpack.c.b16 %v424, %v423
  %v516 = vpack.c.b16 %v426, %v425
  %v517 = vpack.c.b16 %v428, %v427
  %v518 = vpack.c.b16 %v430, %v429
  %v519 = vpack.c.b16 %v432, %v431
  %v520 = vpack.c.b16 %v434, %v433
  %v521 = vpack.c.b16 %v436, %v435
  %v522 = vpack.c.b16 %v438, %v437
  %v523 = vpack.c.b16 %v440, %v439
  %v524 = vpack.c.b16 %v442, %v441
  %v525 = vpack.c.b16 %v444, %v443
  %v526 = vpack.c.b16 %v446, %v445
  %v527 = vpack.c.b16 %v448, %v447
  %v528 = vpack.c.b16 %v450, %v449
  %v529 = vpack.c.b16 %v452, %v451
  %v530 = vpack.c.b16 %v454, %v453
  %v531 = vpack.c.b16 %v456, %v455
  %v532 = vpack.c.b16 %v458, %v457
  %v533 = vpack.c.b16 %v460, %v459
  %v534 = vpack.c.b16 %v462, %v461
  %v535 = vpack.c.b16 %v464, %v463
  %v536 = vpack.c.b16 %v466, %v465
  %v537 = vpack.c.b16 %v468, %v467
  %v538 = vpack.c.b16 %v470, %v469
  %v539 = vpack.c.b16 %v472, %v471
  %v540 = vpack.c.b16 %v474, %v473
  %v541 = vpack.c.b16 %v476, %v475
  %v542 = vpack.c.b16 %v478, %v477
  %607 = vmatprep.subr.bf16.mxu0 0
  %608 = vmatpush1.bf16.msra.mxu0 %v486
  %609 = vmatprep.subr.bf16.mxu0 0
  %610 = vmatpush1.bf16.msra.mxu0 %v485
  %611 = vmatprep.subr.bf16.mxu0 0
  %612 = vmatpush1.bf16.msra.mxu0 %v484
  %613 = vmatprep.subr.bf16.mxu0 0
  %614 = vmatpush1.bf16.msra.mxu0 %v483
  %615 = vmatprep.subr.bf16.mxu0 0
  %616 = vmatpush1.bf16.msra.mxu0 %v482
  %617 = vmatprep.subr.bf16.mxu0 0
  %618 = vmatpush1.bf16.msra.mxu0 %v481
  %619 = vmatprep.subr.bf16.mxu0 0
  %620 = vmatpush1.bf16.msra.mxu0 %v480
  %621 = vmatprep.subr.bf16.mxu0 0
  %622 = vmatpush1.bf16.msra.mxu0 %v479
  %623 = vmatprep.subr.bf16.mxu0 0
  %624 = vmatpush2.bf16.msra.mxu0 %v494
  %625 = vmatprep.subr.bf16.mxu0 0
  %626 = vmatpush2.bf16.msra.mxu0 %v493
  %627 = vmatprep.subr.bf16.mxu0 0
  %628 = vmatpush2.bf16.msra.mxu0 %v492
  %629 = vmatprep.subr.bf16.mxu0 0
  %630 = vmatpush2.bf16.msra.mxu0 %v491
  %631 = vmatprep.subr.bf16.mxu0 0
  %632 = vmatpush2.bf16.msra.mxu0 %v490
  %633 = vmatprep.subr.bf16.mxu0 0
  %634 = vmatpush2.bf16.msra.mxu0 %v489
  %635 = vmatprep.subr.bf16.mxu0 0
  %636 = vmatpush2.bf16.msra.mxu0 %v488
  %637 = vmatprep.subr.bf16.mxu0 0
  %638 = vmatpush2.bf16.msra.mxu0 %v487
  %639 = vmatprep.mubr.bf16.mxu0 %v57
  %640 = vmatmul.mubr.bf16.gmra.mxu0 %v56
  %v641 = vpop.f32.mrf.mxu0
  %v642 = vadd.f32 %v222, %v641
  %v643 = vpop.f32.mrf.mxu0
  %v644 = vpop.f32.mrf.mxu0
  %v645 = vadd.f32 %v222, %v644
  %v646 = vpop.f32.mrf.mxu0
  %647 = vmatprep.mubr.bf16.mxu0 %v65
  %648 = vmatmul.mubr.bf16.gmra.mxu0 %v64
  %v649 = vpop.f32.mrf.mxu0
  %v650 = vadd.f32 %v222, %v649
  %v651 = vpop.f32.mrf.mxu0
  %v652 = vpop.f32.mrf.mxu0
  %v653 = vadd.f32 %v222, %v652
  %v654 = vpop.f32.mrf.mxu0
  %655 = vdwg.mxu0
  %656 = vmatprep.subr.bf16.mxu0 0
  %657 = vmatpush1.bf16.msra.mxu0 %v502
  %658 = vmatprep.subr.bf16.mxu0 0
  %659 = vmatpush1.bf16.msra.mxu0 %v501
  %660 = vmatprep.subr.bf16.mxu0 0
  %661 = vmatpush1.bf16.msra.mxu0 %v500
  %662 = vmatprep.subr.bf16.mxu0 0
  %663 = vmatpush1.bf16.msra.mxu0 %v499
  %664 = vmatprep.subr.bf16.mxu0 0
  %665 = vmatpush1.bf16.msra.mxu0 %v498
  %666 = vmatprep.subr.bf16.mxu0 0
  %667 = vmatpush1.bf16.msra.mxu0 %v497
  %668 = vmatprep.subr.bf16.mxu0 0
  %669 = vmatpush1.bf16.msra.mxu0 %v496
  %670 = vmatprep.subr.bf16.mxu0 0
  %671 = vmatpush1.bf16.msra.mxu0 %v495
  %672 = vmatprep.subr.bf16.mxu0 0
  %673 = vmatpush2.bf16.msra.mxu0 %v510
  %674 = vmatprep.subr.bf16.mxu0 0
  %675 = vmatpush2.bf16.msra.mxu0 %v509
  %676 = vmatprep.subr.bf16.mxu0 0
  %677 = vmatpush2.bf16.msra.mxu0 %v508
  %678 = vmatprep.subr.bf16.mxu0 0
  %679 = vmatpush2.bf16.msra.mxu0 %v507
  %680 = vmatprep.subr.bf16.mxu0 0
  %681 = vmatpush2.bf16.msra.mxu0 %v506
  %682 = vmatprep.subr.bf16.mxu0 0
  %683 = vmatpush2.bf16.msra.mxu0 %v505
  %684 = vmatprep.subr.bf16.mxu0 0
  %685 = vmatpush2.bf16.msra.mxu0 %v504
  %686 = vmatprep.subr.bf16.mxu0 0
  %687 = vmatpush2.bf16.msra.mxu0 %v503
  %688 = vmatprep.mubr.bf16.mxu0 %v59
  %689 = vmatmul.mubr.bf16.gmra.mxu0 %v58
  %v690 = vpop.f32.mrf.mxu0
  %v691 = vadd.f32 %v642, %v690
  %v692 = vpop.f32.mrf.mxu0
  %v693 = vpop.f32.mrf.mxu0
  %v694 = vadd.f32 %v645, %v693
  %v695 = vpop.f32.mrf.mxu0
  %696 = vmatprep.mubr.bf16.mxu0 %v67
  %697 = vmatmul.mubr.bf16.gmra.mxu0 %v66
  %v698 = vpop.f32.mrf.mxu0
  %v699 = vadd.f32 %v650, %v698
  %v700 = vpop.f32.mrf.mxu0
  %v701 = vpop.f32.mrf.mxu0
  %v702 = vadd.f32 %v653, %v701
  %v703 = vpop.f32.mrf.mxu0
  %704 = vdwg.mxu0
  %705 = vmatprep.subr.bf16.mxu0 0
  %706 = vmatpush1.bf16.msra.mxu0 %v518
  %707 = vmatprep.subr.bf16.mxu0 0
  %708 = vmatpush1.bf16.msra.mxu0 %v517
  %709 = vmatprep.subr.bf16.mxu0 0
  %710 = vmatpush1.bf16.msra.mxu0 %v516
  %711 = vmatprep.subr.bf16.mxu0 0
  %712 = vmatpush1.bf16.msra.mxu0 %v515
  %713 = vmatprep.subr.bf16.mxu0 0
  %714 = vmatpush1.bf16.msra.mxu0 %v514
  %715 = vmatprep.subr.bf16.mxu0 0
  %716 = vmatpush1.bf16.msra.mxu0 %v513
  %717 = vmatprep.subr.bf16.mxu0 0
  %718 = vmatpush1.bf16.msra.mxu0 %v512
  %719 = vmatprep.subr.bf16.mxu0 0
  %720 = vmatpush1.bf16.msra.mxu0 %v511
  %721 = vmatprep.subr.bf16.mxu0 0
  %722 = vmatpush2.bf16.msra.mxu0 %v526
  %723 = vmatprep.subr.bf16.mxu0 0
  %724 = vmatpush2.bf16.msra.mxu0 %v525
  %725 = vmatprep.subr.bf16.mxu0 0
  %726 = vmatpush2.bf16.msra.mxu0 %v524
  %727 = vmatprep.subr.bf16.mxu0 0
  %728 = vmatpush2.bf16.msra.mxu0 %v523
  %729 = vmatprep.subr.bf16.mxu0 0
  %730 = vmatpush2.bf16.msra.mxu0 %v522
  %731 = vmatprep.subr.bf16.mxu0 0
  %732 = vmatpush2.bf16.msra.mxu0 %v521
  %733 = vmatprep.subr.bf16.mxu0 0
  %734 = vmatpush2.bf16.msra.mxu0 %v520
  %735 = vmatprep.subr.bf16.mxu0 0
  %736 = vmatpush2.bf16.msra.mxu0 %v519
  %737 = vmatprep.mubr.bf16.mxu0 %v61
  %738 = vmatmul.mubr.bf16.gmra.mxu0 %v60
  %v739 = vpop.f32.mrf.mxu0
  %v740 = vadd.f32 %v691, %v739
  %v741 = vpop.f32.mrf.mxu0
  %v742 = vpop.f32.mrf.mxu0
  %v743 = vadd.f32 %v694, %v742
  %v744 = vpop.f32.mrf.mxu0
  %745 = vmatprep.mubr.bf16.mxu0 %v69
  %746 = vmatmul.mubr.bf16.gmra.mxu0 %v68
  %v747 = vpop.f32.mrf.mxu0
  %v748 = vadd.f32 %v699, %v747
  %v749 = vpop.f32.mrf.mxu0
  %v750 = vpop.f32.mrf.mxu0
  %v751 = vadd.f32 %v702, %v750
  %v752 = vpop.f32.mrf.mxu0
  %753 = vdwg.mxu0
  %754 = vmatprep.subr.bf16.mxu0 0
  %755 = vmatpush1.bf16.msra.mxu0 %v534
  %756 = vmatprep.subr.bf16.mxu0 0
  %757 = vmatpush1.bf16.msra.mxu0 %v533
  %758 = vmatprep.subr.bf16.mxu0 0
  %759 = vmatpush1.bf16.msra.mxu0 %v532
  %760 = vmatprep.subr.bf16.mxu0 0
  %761 = vmatpush1.bf16.msra.mxu0 %v531
  %762 = vmatprep.subr.bf16.mxu0 0
  %763 = vmatpush1.bf16.msra.mxu0 %v530
  %764 = vmatprep.subr.bf16.mxu0 0
  %765 = vmatpush1.bf16.msra.mxu0 %v529
  %766 = vmatprep.subr.bf16.mxu0 0
  %767 = vmatpush1.bf16.msra.mxu0 %v528
  %768 = vmatprep.subr.bf16.mxu0 0
  %769 = vmatpush1.bf16.msra.mxu0 %v527
  %770 = vmatprep.subr.bf16.mxu0 0
  %771 = vmatpush2.bf16.msra.mxu0 %v542
  %772 = vmatprep.subr.bf16.mxu0 0
  %773 = vmatpush2.bf16.msra.mxu0 %v541
  %774 = vmatprep.subr.bf16.mxu0 0
  %775 = vmatpush2.bf16.msra.mxu0 %v540
  %776 = vmatprep.subr.bf16.mxu0 0
  %777 = vmatpush2.bf16.msra.mxu0 %v539
  %778 = vmatprep.subr.bf16.mxu0 0
  %779 = vmatpush2.bf16.msra.mxu0 %v538
  %780 = vmatprep.subr.bf16.mxu0 0
  %781 = vmatpush2.bf16.msra.mxu0 %v537
  %782 = vmatprep.subr.bf16.mxu0 0
  %783 = vmatpush2.bf16.msra.mxu0 %v536
  %784 = vmatprep.subr.bf16.mxu0 0
  %785 = vmatpush2.bf16.msra.mxu0 %v535
  %786 = vmatprep.mubr.bf16.mxu0 %v63
  %787 = vmatmul.mubr.bf16.gmra.mxu0 %v62
  %v788 = vpop.f32.mrf.mxu0
  %v789 = vadd.f32 %v740, %v788
  %v790 = vpop.f32.mrf.mxu0
  %v791 = vpop.f32.mrf.mxu0
  %v792 = vadd.f32 %v743, %v791
  %v793 = vpop.f32.mrf.mxu0
  %794 = vmatprep.mubr.bf16.mxu0 %v71
  %795 = vmatmul.mubr.bf16.gmra.mxu0 %v70
  %v796 = vpop.f32.mrf.mxu0
  %v797 = vadd.f32 %v748, %v796
  %v798 = vpop.f32.mrf.mxu0
  %v799 = vpop.f32.mrf.mxu0
  %v800 = vadd.f32 %v751, %v799
  %v801 = vpop.f32.mrf.mxu0
  %802 = vdwg.mxu0
  %v803 = vld [vmem:[%s5 + $0x1] sm:$0x1]
  %v804 = vld [vmem:[%s5 + $0x2] sm:$0x1]
  %vm805 = vcmask 261120
  %v806 = vsel %vm805, %v789, 0.0
  %807 = vadd.xlane.f32.xlu0 %v806
  %v808 = vpop.xlane.xlu0 %807
  %v809 = vsel %vm805, %v792, 0.0
  %810 = vadd.xlane.f32.xlu0 %v809
  %v811 = vpop.xlane.xlu0 %810
  %v812 = vsel %vm805, %v797, 0.0
  %813 = vadd.xlane.f32.xlu0 %v812
  %v814 = vpop.xlane.xlu0 %813
  %v815 = vsel %vm805, %v800, 0.0
  %816 = vadd.xlane.f32.xlu0 %v815
  %v817 = vpop.xlane.xlu0 %816
  %v818 = vrcp.pop 32.0
  %v819 = vmul.f32 %v808, %v818
  %v820 = vmul.f32 %v811, %v818
  %v821 = vmul.f32 %v814, %v818
  %v822 = vmul.f32 %v817, %v818
  %v823 = vsub.f32 %v789, %v819
  %v824 = vsub.f32 %v792, %v820
  %v825 = vsub.f32 %v797, %v821
  %v826 = vsub.f32 %v800, %v822
  %v827 = vmul.f32 %v823, %v823
  %v828 = vmul.f32 %v824, %v824
  %v829 = vmul.f32 %v825, %v825
  %v830 = vmul.f32 %v826, %v826
  %v831 = vsel %vm805, %v827, 0.0
  %832 = vadd.xlane.f32.xlu0 %v831
  %v833 = vpop.xlane.xlu0 %832
  %v834 = vsel %vm805, %v828, 0.0
  %835 = vadd.xlane.f32.xlu0 %v834
  %v836 = vpop.xlane.xlu0 %835
  %v837 = vsel %vm805, %v829, 0.0
  %838 = vadd.xlane.f32.xlu0 %v837
  %v839 = vpop.xlane.xlu0 %838
  %v840 = vsel %vm805, %v830, 0.0
  %841 = vadd.xlane.f32.xlu0 %v840
  %v842 = vpop.xlane.xlu0 %841
  %v843 = vmul.f32 %v833, %v818
  %v844 = vmul.f32 %v836, %v818
  %v845 = vmul.f32 %v839, %v818
  %v846 = vmul.f32 %v842, %v818
  %v847 = vadd.f32 %v843, 1e-05
  %v848 = vadd.f32 %v844, 1e-05
  %v849 = vadd.f32 %v845, 1e-05
  %v850 = vadd.f32 %v846, 1e-05
  %v851 = vrsqrt.pop %v847
  %v852 = vrsqrt.pop %v848
  %v853 = vrsqrt.pop %v849
  %v854 = vrsqrt.pop %v850
  %v855 = vmul.f32 %v823, %v851
  %v856 = vmul.f32 %v824, %v852
  %v857 = vmul.f32 %v825, %v853
  %v858 = vmul.f32 %v826, %v854
  %v859 = vlaneseq
  %v860 = vshrl.u32 %v859, 7
  %v861 = vsub.s32 0, %v860
  %v862 = vrot.slane %v803, %v861
  %v863 = vmul.f32 %v855, %v862
  %v864 = vmul.f32 %v856, %v862
  %v865 = vmul.f32 %v857, %v862
  %v866 = vmul.f32 %v858, %v862
  %v867 = vlaneseq
  %v868 = vshrl.u32 %v867, 7
  %v869 = vsub.s32 0, %v868
  %v870 = vrot.slane %v804, %v869
  %v871 = vadd.f32 %v863, %v870
  %v872 = vadd.f32 %v864, %v870
  %v873 = vadd.f32 %v865, %v870
  %v874 = vadd.f32 %v866, %v870
  %v875 = vld [vmem:[%s4] sm:$0xf]
  %v876 = vld [vmem:[%s4 + $0x4] sm:$0xf]
  %v877 = vld [vmem:[%s4 + $0x8] sm:$0xf]
  %v878 = vld [vmem:[%s4 + $0xc] sm:$0xf]
  %v879 = vld [vmem:[%s4 + $0x10] sm:$0xf]
  %v880 = vld [vmem:[%s4 + $0x14] sm:$0xf]
  %v881 = vld [vmem:[%s4 + $0x18] sm:$0xf]
  %v882 = vld [vmem:[%s4 + $0x1c] sm:$0xf]
  %v883 = vld [vmem:[%s4 + $0x20] sm:$0xf]
  %v884 = vld [vmem:[%s4 + $0x24] sm:$0xf]
  %v885 = vld [vmem:[%s4 + $0x28] sm:$0xf]
  %v886 = vld [vmem:[%s4 + $0x2c] sm:$0xf]
  %v887 = vld [vmem:[%s4 + $0x30] sm:$0xf]
  %v888 = vld [vmem:[%s4 + $0x34] sm:$0xf]
  %v889 = vld [vmem:[%s4 + $0x38] sm:$0xf]
  %v890 = vld [vmem:[%s4 + $0x3c] sm:$0xf]
  %v891 = vld [vmem:[%s4 + $0x40] sm:$0xf]
  %v892 = vld [vmem:[%s4 + $0x44] sm:$0xf]
  %v893 = vld [vmem:[%s4 + $0x48] sm:$0xf]
  %v894 = vld [vmem:[%s4 + $0x4c] sm:$0xf]
  %v895 = vld [vmem:[%s4 + $0x50] sm:$0xf]
  %v896 = vld [vmem:[%s4 + $0x54] sm:$0xf]
  %v897 = vld [vmem:[%s4 + $0x58] sm:$0xf]
  %v898 = vld [vmem:[%s4 + $0x5c] sm:$0xf]
  %v899 = vld [vmem:[%s4 + $0x60] sm:$0xf]
  %v900 = vld [vmem:[%s4 + $0x64] sm:$0xf]
  %v901 = vld [vmem:[%s4 + $0x68] sm:$0xf]
  %v902 = vld [vmem:[%s4 + $0x6c] sm:$0xf]
  %v903 = vld [vmem:[%s4 + $0x70] sm:$0xf]
  %v904 = vld [vmem:[%s4 + $0x74] sm:$0xf]
  %v905 = vld [vmem:[%s4 + $0x78] sm:$0xf]
  %v906 = vld [vmem:[%s4 + $0x7c] sm:$0xf]
  %v907 = vld [vmem:[%s4 + $0x80] sm:$0xf]
  %v908 = vld [vmem:[%s4 + $0x84] sm:$0xf]
  %v909 = vld [vmem:[%s4 + $0x88] sm:$0xf]
  %v910 = vld [vmem:[%s4 + $0x8c] sm:$0xf]
  %v911 = vld [vmem:[%s4 + $0x90] sm:$0xf]
  %v912 = vld [vmem:[%s4 + $0x94] sm:$0xf]
  %v913 = vld [vmem:[%s4 + $0x98] sm:$0xf]
  %v914 = vld [vmem:[%s4 + $0x9c] sm:$0xf]
  %v915 = vld [vmem:[%s4 + $0xa0] sm:$0xf]
  %v916 = vld [vmem:[%s4 + $0xa4] sm:$0xf]
  %v917 = vld [vmem:[%s4 + $0xa8] sm:$0xf]
  %v918 = vld [vmem:[%s4 + $0xac] sm:$0xf]
  %v919 = vld [vmem:[%s4 + $0xb0] sm:$0xf]
  %v920 = vld [vmem:[%s4 + $0xb4] sm:$0xf]
  %v921 = vld [vmem:[%s4 + $0xb8] sm:$0xf]
  %v922 = vld [vmem:[%s4 + $0xbc] sm:$0xf]
  %v923 = vld [vmem:[%s4 + $0xc0] sm:$0xf]
  %v924 = vld [vmem:[%s4 + $0xc4] sm:$0xf]
  %v925 = vld [vmem:[%s4 + $0xc8] sm:$0xf]
  %v926 = vld [vmem:[%s4 + $0xcc] sm:$0xf]
  %v927 = vld [vmem:[%s4 + $0xd0] sm:$0xf]
  %v928 = vld [vmem:[%s4 + $0xd4] sm:$0xf]
  %v929 = vld [vmem:[%s4 + $0xd8] sm:$0xf]
  %v930 = vld [vmem:[%s4 + $0xdc] sm:$0xf]
  %v931 = vld [vmem:[%s4 + $0xe0] sm:$0xf]
  %v932 = vld [vmem:[%s4 + $0xe4] sm:$0xf]
  %v933 = vld [vmem:[%s4 + $0xe8] sm:$0xf]
  %v934 = vld [vmem:[%s4 + $0xec] sm:$0xf]
  %v935 = vld [vmem:[%s4 + $0xf0] sm:$0xf]
  %v936 = vld [vmem:[%s4 + $0xf4] sm:$0xf]
  %v937 = vld [vmem:[%s4 + $0xf8] sm:$0xf]
  %v938 = vld [vmem:[%s4 + $0xfc] sm:$0xf]
  %v939 = vld [vmem:[%s4 + $0x100] sm:$0xf]
  %v940 = vld [vmem:[%s4 + $0x104] sm:$0xf]
  %v941 = vld [vmem:[%s4 + $0x108] sm:$0xf]
  %v942 = vld [vmem:[%s4 + $0x10c] sm:$0xf]
  %v943 = vld [vmem:[%s4 + $0x110] sm:$0xf]
  %v944 = vld [vmem:[%s4 + $0x114] sm:$0xf]
  %v945 = vld [vmem:[%s4 + $0x118] sm:$0xf]
  %v946 = vld [vmem:[%s4 + $0x11c] sm:$0xf]
  %v947 = vld [vmem:[%s4 + $0x120] sm:$0xf]
  %v948 = vld [vmem:[%s4 + $0x124] sm:$0xf]
  %v949 = vld [vmem:[%s4 + $0x128] sm:$0xf]
  %v950 = vld [vmem:[%s4 + $0x12c] sm:$0xf]
  %v951 = vld [vmem:[%s4 + $0x130] sm:$0xf]
  %v952 = vld [vmem:[%s4 + $0x134] sm:$0xf]
  %v953 = vld [vmem:[%s4 + $0x138] sm:$0xf]
  %v954 = vld [vmem:[%s4 + $0x13c] sm:$0xf]
  %v955 = vld [vmem:[%s4 + $0x140] sm:$0xf]
  %v956 = vld [vmem:[%s4 + $0x144] sm:$0xf]
  %v957 = vld [vmem:[%s4 + $0x148] sm:$0xf]
  %v958 = vld [vmem:[%s4 + $0x14c] sm:$0xf]
  %v959 = vld [vmem:[%s4 + $0x150] sm:$0xf]
  %v960 = vld [vmem:[%s4 + $0x154] sm:$0xf]
  %v961 = vld [vmem:[%s4 + $0x158] sm:$0xf]
  %v962 = vld [vmem:[%s4 + $0x15c] sm:$0xf]
  %v963 = vld [vmem:[%s4 + $0x160] sm:$0xf]
  %v964 = vld [vmem:[%s4 + $0x164] sm:$0xf]
  %v965 = vld [vmem:[%s4 + $0x168] sm:$0xf]
  %v966 = vld [vmem:[%s4 + $0x16c] sm:$0xf]
  %v967 = vld [vmem:[%s4 + $0x170] sm:$0xf]
  %v968 = vld [vmem:[%s4 + $0x174] sm:$0xf]
  %v969 = vld [vmem:[%s4 + $0x178] sm:$0xf]
  %v970 = vld [vmem:[%s4 + $0x17c] sm:$0xf]
  %v971 = vld [vmem:[%s5 + $0x3] sm:$0x1]
  %v972 = vlaneseq
  %v973 = vshrl.u32 %v972, 7
  %v974 = vsub.s32 0, %v973
  %v975 = vrot.slane %v971, %v974
  %v1072 = vunpack.c.l.b16 %v875
  %v1073 = vunpack.c.l.b16 %v876
  %v1074 = vunpack.c.l.b16 %v877
  %v1075 = vunpack.c.l.b16 %v878
  %v1076 = vunpack.c.l.b16 %v879
  %v1077 = vunpack.c.l.b16 %v880
  %v1078 = vunpack.c.l.b16 %v881
  %v1079 = vunpack.c.l.b16 %v882
  %v1080 = vunpack.c.l.b16 %v883
  %v1081 = vunpack.c.l.b16 %v884
  %v1082 = vunpack.c.l.b16 %v885
  %v1083 = vunpack.c.l.b16 %v886
  %v1084 = vunpack.c.l.b16 %v887
  %v1085 = vunpack.c.l.b16 %v888
  %v1086 = vunpack.c.l.b16 %v889
  %v1087 = vunpack.c.l.b16 %v890
  %v1088 = vunpack.c.l.b16 %v891
  %v1089 = vunpack.c.l.b16 %v892
  %v1090 = vunpack.c.l.b16 %v893
  %v1091 = vunpack.c.l.b16 %v894
  %v1092 = vunpack.c.l.b16 %v895
  %v1093 = vunpack.c.l.b16 %v896
  %v1094 = vunpack.c.l.b16 %v897
  %v1095 = vunpack.c.l.b16 %v898
  %v1096 = vunpack.c.l.b16 %v899
  %v1097 = vunpack.c.l.b16 %v900
  %v1098 = vunpack.c.l.b16 %v901
  %v1099 = vunpack.c.l.b16 %v902
  %v1100 = vunpack.c.l.b16 %v903
  %v1101 = vunpack.c.l.b16 %v904
  %v1102 = vunpack.c.l.b16 %v905
  %v1103 = vunpack.c.l.b16 %v906
  %v1104 = vunpack.c.l.b16 %v907
  %v1105 = vunpack.c.l.b16 %v908
  %v1106 = vunpack.c.l.b16 %v909
  %v1107 = vunpack.c.l.b16 %v910
  %v1108 = vunpack.c.l.b16 %v911
  %v1109 = vunpack.c.l.b16 %v912
  %v1110 = vunpack.c.l.b16 %v913
  %v1111 = vunpack.c.l.b16 %v914
  %v1112 = vunpack.c.l.b16 %v915
  %v1113 = vunpack.c.l.b16 %v916
  %v1114 = vunpack.c.l.b16 %v917
  %v1115 = vunpack.c.l.b16 %v918
  %v1116 = vunpack.c.l.b16 %v919
  %v1117 = vunpack.c.l.b16 %v920
  %v1118 = vunpack.c.l.b16 %v921
  %v1119 = vunpack.c.l.b16 %v922
  %v1120 = vunpack.c.l.b16 %v923
  %v1121 = vunpack.c.l.b16 %v924
  %v1122 = vunpack.c.l.b16 %v925
  %v1123 = vunpack.c.l.b16 %v926
  %v1124 = vunpack.c.l.b16 %v927
  %v1125 = vunpack.c.l.b16 %v928
  %v1126 = vunpack.c.l.b16 %v929
  %v1127 = vunpack.c.l.b16 %v930
  %v1128 = vunpack.c.l.b16 %v931
  %v1129 = vunpack.c.l.b16 %v932
  %v1130 = vunpack.c.l.b16 %v933
  %v1131 = vunpack.c.l.b16 %v934
  %v1132 = vunpack.c.l.b16 %v935
  %v1133 = vunpack.c.l.b16 %v936
  %v1134 = vunpack.c.l.b16 %v937
  %v1135 = vunpack.c.l.b16 %v938
  %v1136 = vunpack.c.l.b16 %v939
  %v1137 = vunpack.c.l.b16 %v940
  %v1138 = vunpack.c.l.b16 %v941
  %v1139 = vunpack.c.l.b16 %v942
  %v1140 = vunpack.c.l.b16 %v943
  %v1141 = vunpack.c.l.b16 %v944
  %v1142 = vunpack.c.l.b16 %v945
  %v1143 = vunpack.c.l.b16 %v946
  %v1144 = vunpack.c.l.b16 %v947
  %v1145 = vunpack.c.l.b16 %v948
  %v1146 = vunpack.c.l.b16 %v949
  %v1147 = vunpack.c.l.b16 %v950
  %v1148 = vunpack.c.l.b16 %v951
  %v1149 = vunpack.c.l.b16 %v952
  %v1150 = vunpack.c.l.b16 %v953
  %v1151 = vunpack.c.l.b16 %v954
  %v1152 = vunpack.c.l.b16 %v955
  %v1153 = vunpack.c.l.b16 %v956
  %v1154 = vunpack.c.l.b16 %v957
  %v1155 = vunpack.c.l.b16 %v958
  %v1156 = vunpack.c.l.b16 %v959
  %v1157 = vunpack.c.l.b16 %v960
  %v1158 = vunpack.c.l.b16 %v961
  %v1159 = vunpack.c.l.b16 %v962
  %v1160 = vunpack.c.l.b16 %v963
  %v1161 = vunpack.c.l.b16 %v964
  %v1162 = vunpack.c.l.b16 %v965
  %v1163 = vunpack.c.l.b16 %v966
  %v1164 = vunpack.c.l.b16 %v967
  %v1165 = vunpack.c.l.b16 %v968
  %v1166 = vunpack.c.l.b16 %v969
  %v1167 = vunpack.c.l.b16 %v970
  %v1168 = vpack.c.b16 %v1073, %v1072
  %v1169 = vpack.c.b16 %v1075, %v1074
  %v1170 = vpack.c.b16 %v1077, %v1076
  %v1171 = vpack.c.b16 %v1079, %v1078
  %v1172 = vpack.c.b16 %v1081, %v1080
  %v1173 = vpack.c.b16 %v1083, %v1082
  %v1174 = vpack.c.b16 %v1085, %v1084
  %v1175 = vpack.c.b16 %v1087, %v1086
  %v1176 = vpack.c.b16 %v1089, %v1088
  %v1177 = vpack.c.b16 %v1091, %v1090
  %v1178 = vpack.c.b16 %v1093, %v1092
  %v1179 = vpack.c.b16 %v1095, %v1094
  %v1180 = vpack.c.b16 %v1097, %v1096
  %v1181 = vpack.c.b16 %v1099, %v1098
  %v1182 = vpack.c.b16 %v1101, %v1100
  %v1183 = vpack.c.b16 %v1103, %v1102
  %v1184 = vpack.c.b16 %v1105, %v1104
  %v1185 = vpack.c.b16 %v1107, %v1106
  %v1186 = vpack.c.b16 %v1109, %v1108
  %v1187 = vpack.c.b16 %v1111, %v1110
  %v1188 = vpack.c.b16 %v1113, %v1112
  %v1189 = vpack.c.b16 %v1115, %v1114
  %v1190 = vpack.c.b16 %v1117, %v1116
  %v1191 = vpack.c.b16 %v1119, %v1118
  %v1192 = vpack.c.b16 %v1121, %v1120
  %v1193 = vpack.c.b16 %v1123, %v1122
  %v1194 = vpack.c.b16 %v1125, %v1124
  %v1195 = vpack.c.b16 %v1127, %v1126
  %v1196 = vpack.c.b16 %v1129, %v1128
  %v1197 = vpack.c.b16 %v1131, %v1130
  %v1198 = vpack.c.b16 %v1133, %v1132
  %v1199 = vpack.c.b16 %v1135, %v1134
  %v1200 = vpack.c.b16 %v1137, %v1136
  %v1201 = vpack.c.b16 %v1139, %v1138
  %v1202 = vpack.c.b16 %v1141, %v1140
  %v1203 = vpack.c.b16 %v1143, %v1142
  %v1204 = vpack.c.b16 %v1145, %v1144
  %v1205 = vpack.c.b16 %v1147, %v1146
  %v1206 = vpack.c.b16 %v1149, %v1148
  %v1207 = vpack.c.b16 %v1151, %v1150
  %v1208 = vpack.c.b16 %v1153, %v1152
  %v1209 = vpack.c.b16 %v1155, %v1154
  %v1210 = vpack.c.b16 %v1157, %v1156
  %v1211 = vpack.c.b16 %v1159, %v1158
  %v1212 = vpack.c.b16 %v1161, %v1160
  %v1213 = vpack.c.b16 %v1163, %v1162
  %v1214 = vpack.c.b16 %v1165, %v1164
  %v1215 = vpack.c.b16 %v1167, %v1166
  %1264 = vmatprep.subr.bf16.mxu0 0
  %1265 = vmatpush1.bf16.msra.mxu0 %v1175
  %1266 = vmatprep.subr.bf16.mxu0 0
  %1267 = vmatpush1.bf16.msra.mxu0 %v1174
  %1268 = vmatprep.subr.bf16.mxu0 0
  %1269 = vmatpush1.bf16.msra.mxu0 %v1173
  %1270 = vmatprep.subr.bf16.mxu0 0
  %1271 = vmatpush1.bf16.msra.mxu0 %v1172
  %1272 = vmatprep.subr.bf16.mxu0 0
  %1273 = vmatpush1.bf16.msra.mxu0 %v1171
  %1274 = vmatprep.subr.bf16.mxu0 0
  %1275 = vmatpush1.bf16.msra.mxu0 %v1170
  %1276 = vmatprep.subr.bf16.mxu0 0
  %1277 = vmatpush1.bf16.msra.mxu0 %v1169
  %1278 = vmatprep.subr.bf16.mxu0 0
  %1279 = vmatpush1.bf16.msra.mxu0 %v1168
  %1280 = vmatprep.subr.bf16.mxu0 0
  %1281 = vmatpush2.bf16.msra.mxu0 %v1183
  %1282 = vmatprep.subr.bf16.mxu0 0
  %1283 = vmatpush2.bf16.msra.mxu0 %v1182
  %1284 = vmatprep.subr.bf16.mxu0 0
  %1285 = vmatpush2.bf16.msra.mxu0 %v1181
  %1286 = vmatprep.subr.bf16.mxu0 0
  %1287 = vmatpush2.bf16.msra.mxu0 %v1180
  %1288 = vmatprep.subr.bf16.mxu0 0
  %1289 = vmatpush2.bf16.msra.mxu0 %v1179
  %1290 = vmatprep.subr.bf16.mxu0 0
  %1291 = vmatpush2.bf16.msra.mxu0 %v1178
  %1292 = vmatprep.subr.bf16.mxu0 0
  %1293 = vmatpush2.bf16.msra.mxu0 %v1177
  %1294 = vmatprep.subr.bf16.mxu0 0
  %1295 = vmatpush2.bf16.msra.mxu0 %v1176
  %1296 = vmatprep.mubr.bf16.mxu0 %v85
  %1297 = vmatmul.mubr.bf16.gmra.mxu0 %v84
  %v1298 = vpop.f32.mrf.mxu0
  %v1299 = vadd.f32 %v975, %v1298
  %v1300 = vpop.f32.mrf.mxu0
  %v1301 = vpop.f32.mrf.mxu0
  %v1302 = vadd.f32 %v975, %v1301
  %v1303 = vpop.f32.mrf.mxu0
  %1304 = vdwg.mxu0
  %1305 = vmatprep.subr.bf16.mxu0 0
  %1306 = vmatpush1.bf16.msra.mxu0 %v1191
  %1307 = vmatprep.subr.bf16.mxu0 0
  %1308 = vmatpush1.bf16.msra.mxu0 %v1190
  %1309 = vmatprep.subr.bf16.mxu0 0
  %1310 = vmatpush1.bf16.msra.mxu0 %v1189
  %1311 = vmatprep.subr.bf16.mxu0 0
  %1312 = vmatpush1.bf16.msra.mxu0 %v1188
  %1313 = vmatprep.subr.bf16.mxu0 0
  %1314 = vmatpush1.bf16.msra.mxu0 %v1187
  %1315 = vmatprep.subr.bf16.mxu0 0
  %1316 = vmatpush1.bf16.msra.mxu0 %v1186
  %1317 = vmatprep.subr.bf16.mxu0 0
  %1318 = vmatpush1.bf16.msra.mxu0 %v1185
  %1319 = vmatprep.subr.bf16.mxu0 0
  %1320 = vmatpush1.bf16.msra.mxu0 %v1184
  %1321 = vmatprep.subr.bf16.mxu0 0
  %1322 = vmatpush2.bf16.msra.mxu0 %v1199
  %1323 = vmatprep.subr.bf16.mxu0 0
  %1324 = vmatpush2.bf16.msra.mxu0 %v1198
  %1325 = vmatprep.subr.bf16.mxu0 0
  %1326 = vmatpush2.bf16.msra.mxu0 %v1197
  %1327 = vmatprep.subr.bf16.mxu0 0
  %1328 = vmatpush2.bf16.msra.mxu0 %v1196
  %1329 = vmatprep.subr.bf16.mxu0 0
  %1330 = vmatpush2.bf16.msra.mxu0 %v1195
  %1331 = vmatprep.subr.bf16.mxu0 0
  %1332 = vmatpush2.bf16.msra.mxu0 %v1194
  %1333 = vmatprep.subr.bf16.mxu0 0
  %1334 = vmatpush2.bf16.msra.mxu0 %v1193
  %1335 = vmatprep.subr.bf16.mxu0 0
  %1336 = vmatpush2.bf16.msra.mxu0 %v1192
  %1337 = vmatprep.mubr.bf16.mxu0 %v87
  %1338 = vmatmul.mubr.bf16.gmra.mxu0 %v86
  %v1339 = vpop.f32.mrf.mxu0
  %v1340 = vadd.f32 %v1299, %v1339
  %v1341 = vpop.f32.mrf.mxu0
  %v1342 = vpop.f32.mrf.mxu0
  %v1343 = vadd.f32 %v1302, %v1342
  %v1344 = vpop.f32.mrf.mxu0
  %1345 = vdwg.mxu0
  %1346 = vmatprep.subr.bf16.mxu0 0
  %1347 = vmatpush1.bf16.msra.mxu0 %v1207
  %1348 = vmatprep.subr.bf16.mxu0 0
  %1349 = vmatpush1.bf16.msra.mxu0 %v1206
  %1350 = vmatprep.subr.bf16.mxu0 0
  %1351 = vmatpush1.bf16.msra.mxu0 %v1205
  %1352 = vmatprep.subr.bf16.mxu0 0
  %1353 = vmatpush1.bf16.msra.mxu0 %v1204
  %1354 = vmatprep.subr.bf16.mxu0 0
  %1355 = vmatpush1.bf16.msra.mxu0 %v1203
  %1356 = vmatprep.subr.bf16.mxu0 0
  %1357 = vmatpush1.bf16.msra.mxu0 %v1202
  %1358 = vmatprep.subr.bf16.mxu0 0
  %1359 = vmatpush1.bf16.msra.mxu0 %v1201
  %1360 = vmatprep.subr.bf16.mxu0 0
  %1361 = vmatpush1.bf16.msra.mxu0 %v1200
  %1362 = vmatprep.subr.bf16.mxu0 0
  %1363 = vmatpush2.bf16.msra.mxu0 %v1215
  %1364 = vmatprep.subr.bf16.mxu0 0
  %1365 = vmatpush2.bf16.msra.mxu0 %v1214
  %1366 = vmatprep.subr.bf16.mxu0 0
  %1367 = vmatpush2.bf16.msra.mxu0 %v1213
  %1368 = vmatprep.subr.bf16.mxu0 0
  %1369 = vmatpush2.bf16.msra.mxu0 %v1212
  %1370 = vmatprep.subr.bf16.mxu0 0
  %1371 = vmatpush2.bf16.msra.mxu0 %v1211
  %1372 = vmatprep.subr.bf16.mxu0 0
  %1373 = vmatpush2.bf16.msra.mxu0 %v1210
  %1374 = vmatprep.subr.bf16.mxu0 0
  %1375 = vmatpush2.bf16.msra.mxu0 %v1209
  %1376 = vmatprep.subr.bf16.mxu0 0
  %1377 = vmatpush2.bf16.msra.mxu0 %v1208
  %1378 = vmatprep.mubr.bf16.mxu0 %v89
  %1379 = vmatmul.mubr.bf16.gmra.mxu0 %v88
  %v1380 = vpop.f32.mrf.mxu0
  %v1381 = vadd.f32 %v1340, %v1380
  %v1382 = vpop.f32.mrf.mxu0
  %v1383 = vpop.f32.mrf.mxu0
  %v1384 = vadd.f32 %v1343, %v1383
  %v1385 = vpop.f32.mrf.mxu0
  %1386 = vdwg.mxu0
  %v1387 = vld [vmem:[%s5 + $0x4] sm:$0x1]
  %v1388 = vld [vmem:[%s5 + $0x5] sm:$0x1]
  %v1389 = vsel %vm805, %v1381, 0.0
  %1390 = vadd.xlane.f32.xlu0 %v1389
  %v1391 = vpop.xlane.xlu0 %1390
  %v1392 = vsel %vm805, %v1384, 0.0
  %1393 = vadd.xlane.f32.xlu0 %v1392
  %v1394 = vpop.xlane.xlu0 %1393
  %v1395 = vmul.f32 %v1391, %v818
  %v1396 = vmul.f32 %v1394, %v818
  %v1397 = vsub.f32 %v1381, %v1395
  %v1398 = vsub.f32 %v1384, %v1396
  %v1399 = vmul.f32 %v1397, %v1397
  %v1400 = vmul.f32 %v1398, %v1398
  %v1401 = vsel %vm805, %v1399, 0.0
  %1402 = vadd.xlane.f32.xlu0 %v1401
  %v1403 = vpop.xlane.xlu0 %1402
  %v1404 = vsel %vm805, %v1400, 0.0
  %1405 = vadd.xlane.f32.xlu0 %v1404
  %v1406 = vpop.xlane.xlu0 %1405
  %v1407 = vmul.f32 %v1403, %v818
  %v1408 = vmul.f32 %v1406, %v818
  %v1409 = vadd.f32 %v1407, 1e-05
  %v1410 = vadd.f32 %v1408, 1e-05
  %v1411 = vrsqrt.pop %v1409
  %v1412 = vrsqrt.pop %v1410
  %v1413 = vmul.f32 %v1397, %v1411
  %v1414 = vmul.f32 %v1398, %v1412
  %v1415 = vlaneseq
  %v1416 = vshrl.u32 %v1415, 7
  %v1417 = vsub.s32 0, %v1416
  %v1418 = vrot.slane %v1387, %v1417
  %v1419 = vmul.f32 %v1413, %v1418
  %v1420 = vmul.f32 %v1414, %v1418
  %v1421 = vlaneseq
  %v1422 = vshrl.u32 %v1421, 7
  %v1423 = vsub.s32 0, %v1422
  %v1424 = vrot.slane %v1388, %v1423
  %v1425 = vadd.f32 %v1419, %v1424
  %v1426 = vadd.f32 %v1420, %v1424
  %v1427 = vld [vmem:[%s5 + $0x6] sm:$0x1]
  %v1428 = vld [vmem:[%s5 + $0x7] sm:$0x1]
  %v1429 = vld [vmem:[%s5 + $0x18] sm:$0xff]
  %v1430 = vld [vmem:[%s5 + $0x20] sm:$0xff]
  %v1431 = vld [vmem:[%s5 + $0x28] sm:$0xff]
  %v1432 = vld [vmem:[%s5 + $0x30] sm:$0xff]
  %v1433 = vld [vmem:[%s5 + $0x8] sm:$0x1]
  %v1434 = vlaneseq
  %v1435 = vshrl.u32 %v1434, 7
  %v1436 = vsub.s32 0, %v1435
  %v1437 = vrot.slane %v1433, %v1436
  %v1439 = vsel %vm805, %v1425, 0
  %v1442 = vsel %vm805, %v1426, 0
  %1444 = vmatprep.subr.mxu0 0.0
  %1445 = vmatpush1.msra.mxu0 0.0
  %1446 = vmatprep.subr.mxu0 0.0
  %1447 = vmatpush1.msra.mxu0 0.0
  %1448 = vmatprep.subr.mxu0 0.0
  %1449 = vmatpush1.msra.mxu0 0.0
  %1450 = vmatprep.subr.mxu0 0.0
  %1451 = vmatpush1.msra.mxu0 0.0
  %1452 = vmatprep.subr.mxu0 0.0
  %1453 = vmatpush1.msra.mxu0 0.0
  %1454 = vmatprep.subr.mxu0 0.0
  %1455 = vmatpush1.msra.mxu0 0.0
  %1456 = vmatprep.subr.mxu0 0.0
  %1457 = vmatpush1.msra.mxu0 0.0
  %1458 = vmatprep.subr.mxu0 0.0
  %1459 = vmatpush1.msra.mxu0 0.0
  %1460 = vmatprep.subr.mxu0 0.0
  %1461 = vmatpush1.msra.mxu0 0.0
  %1462 = vmatprep.subr.mxu0 0.0
  %1463 = vmatpush1.msra.mxu0 0.0
  %1464 = vmatprep.subr.mxu0 0.0
  %1465 = vmatpush1.msra.mxu0 0.0
  %1466 = vmatprep.subr.mxu0 0.0
  %1467 = vmatpush1.msra.mxu0 0.0
  %1468 = vmatprep.subr.mxu0 0.0
  %1469 = vmatpush1.msra.mxu0 %v1432
  %1470 = vmatprep.subr.mxu0 0.0
  %1471 = vmatpush1.msra.mxu0 %v1431
  %1472 = vmatprep.subr.mxu0 0.0
  %1473 = vmatpush1.msra.mxu0 %v1430
  %1474 = vmatprep.subr.mxu0 0.0
  %1475 = vmatpush1.msra.mxu0 %v1429
  %1476 = vmatprep.subr.mxu0 0.0
  %1477 = vmatpush2.msra.mxu0 0.0
  %1478 = vmatprep.subr.mxu0 0.0
  %1479 = vmatpush2.msra.mxu0 0.0
  %1480 = vmatprep.subr.mxu0 0.0
  %1481 = vmatpush2.msra.mxu0 0.0
  %1482 = vmatprep.subr.mxu0 0.0
  %1483 = vmatpush2.msra.mxu0 0.0
  %1484 = vmatprep.subr.mxu0 0.0
  %1485 = vmatpush2.msra.mxu0 0.0
  %1486 = vmatprep.subr.mxu0 0.0
  %1487 = vmatpush2.msra.mxu0 0.0
  %1488 = vmatprep.subr.mxu0 0.0
  %1489 = vmatpush2.msra.mxu0 0.0
  %1490 = vmatprep.subr.mxu0 0.0
  %1491 = vmatpush2.msra.mxu0 0.0
  %1492 = vmatprep.subr.mxu0 0.0
  %1493 = vmatpush2.msra.mxu0 0.0
  %1494 = vmatprep.subr.mxu0 0.0
  %1495 = vmatpush2.msra.mxu0 0.0
  %1496 = vmatprep.subr.mxu0 0.0
  %1497 = vmatpush2.msra.mxu0 0.0
  %1498 = vmatprep.subr.mxu0 0.0
  %1499 = vmatpush2.msra.mxu0 0.0
  %1500 = vmatprep.subr.mxu0 0.0
  %1501 = vmatpush2.msra.mxu0 0.0
  %1502 = vmatprep.subr.mxu0 0.0
  %1503 = vmatpush2.msra.mxu0 0.0
  %1504 = vmatprep.subr.mxu0 0.0
  %1505 = vmatpush2.msra.mxu0 0.0
  %1506 = vmatprep.subr.mxu0 0.0
  %1507 = vmatpush2.msra.mxu0 0.0
  %1508 = vmatprep.mubr.f32.mxu0 0.0
  %1509 = vmatmul.mubr.f32.gmra.mxu0 %v1439
  %v1510 = vpop.f32.mrf.mxu0
  %v1511 = vadd.f32 %v1437, %v1510
  %v1512 = vpop.f32.mrf.mxu0
  %1513 = vmatprep.mubr.f32.mxu0 0.0
  %1514 = vmatmul.mubr.f32.gmra.mxu0 %v1442
  %v1515 = vpop.f32.mrf.mxu0
  %v1516 = vadd.f32 %v1437, %v1515
  %v1517 = vpop.f32.mrf.mxu0
  %1518 = vdwg.mxu0
  %v1519 = vmul.f32 %v1511, 0.35355338
  %v1520 = vmul.f32 %v1516, 0.35355338
  %v1521 = vld [vmem:[%s5 + $0x38] sm:$0xff]
  %v1522 = vld [vmem:[%s5 + $0x40] sm:$0xff]
  %v1523 = vld [vmem:[%s5 + $0x48] sm:$0xff]
  %v1524 = vld [vmem:[%s5 + $0x50] sm:$0xff]
  %v1525 = vld [vmem:[%s5 + $0x9] sm:$0x1]
  %v1526 = vlaneseq
  %v1527 = vshrl.u32 %v1526, 7
  %v1528 = vsub.s32 0, %v1527
  %v1529 = vrot.slane %v1525, %v1528
  %v1531 = vsel %vm805, %v871, 0
  %v1534 = vsel %vm805, %v872, 0
  %v1537 = vsel %vm805, %v873, 0
  %v1540 = vsel %vm805, %v874, 0
  %1542 = vmatprep.subr.mxu0 0.0
  %1543 = vmatpush1.msra.mxu0 0.0
  %1544 = vmatprep.subr.mxu0 0.0
  %1545 = vmatpush1.msra.mxu0 0.0
  %1546 = vmatprep.subr.mxu0 0.0
  %1547 = vmatpush1.msra.mxu0 0.0
  %1548 = vmatprep.subr.mxu0 0.0
  %1549 = vmatpush1.msra.mxu0 0.0
  %1550 = vmatprep.subr.mxu0 0.0
  %1551 = vmatpush1.msra.mxu0 0.0
  %1552 = vmatprep.subr.mxu0 0.0
  %1553 = vmatpush1.msra.mxu0 0.0
  %1554 = vmatprep.subr.mxu0 0.0
  %1555 = vmatpush1.msra.mxu0 0.0
  %1556 = vmatprep.subr.mxu0 0.0
  %1557 = vmatpush1.msra.mxu0 0.0
  %1558 = vmatprep.subr.mxu0 0.0
  %1559 = vmatpush1.msra.mxu0 0.0
  %1560 = vmatprep.subr.mxu0 0.0
  %1561 = vmatpush1.msra.mxu0 0.0
  %1562 = vmatprep.subr.mxu0 0.0
  %1563 = vmatpush1.msra.mxu0 0.0
  %1564 = vmatprep.subr.mxu0 0.0
  %1565 = vmatpush1.msra.mxu0 0.0
  %1566 = vmatprep.subr.mxu0 0.0
  %1567 = vmatpush1.msra.mxu0 %v1524
  %1568 = vmatprep.subr.mxu0 0.0
  %1569 = vmatpush1.msra.mxu0 %v1523
  %1570 = vmatprep.subr.mxu0 0.0
  %1571 = vmatpush1.msra.mxu0 %v1522
  %1572 = vmatprep.subr.mxu0 0.0
  %1573 = vmatpush1.msra.mxu0 %v1521
  %1574 = vmatprep.subr.mxu0 0.0
  %1575 = vmatpush2.msra.mxu0 0.0
  %1576 = vmatprep.subr.mxu0 0.0
  %1577 = vmatpush2.msra.mxu0 0.0
  %1578 = vmatprep.subr.mxu0 0.0
  %1579 = vmatpush2.msra.mxu0 0.0
  %1580 = vmatprep.subr.mxu0 0.0
  %1581 = vmatpush2.msra.mxu0 0.0
  %1582 = vmatprep.subr.mxu0 0.0
  %1583 = vmatpush2.msra.mxu0 0.0
  %1584 = vmatprep.subr.mxu0 0.0
  %1585 = vmatpush2.msra.mxu0 0.0
  %1586 = vmatprep.subr.mxu0 0.0
  %1587 = vmatpush2.msra.mxu0 0.0
  %1588 = vmatprep.subr.mxu0 0.0
  %1589 = vmatpush2.msra.mxu0 0.0
  %1590 = vmatprep.subr.mxu0 0.0
  %1591 = vmatpush2.msra.mxu0 0.0
  %1592 = vmatprep.subr.mxu0 0.0
  %1593 = vmatpush2.msra.mxu0 0.0
  %1594 = vmatprep.subr.mxu0 0.0
  %1595 = vmatpush2.msra.mxu0 0.0
  %1596 = vmatprep.subr.mxu0 0.0
  %1597 = vmatpush2.msra.mxu0 0.0
  %1598 = vmatprep.subr.mxu0 0.0
  %1599 = vmatpush2.msra.mxu0 0.0
  %1600 = vmatprep.subr.mxu0 0.0
  %1601 = vmatpush2.msra.mxu0 0.0
  %1602 = vmatprep.subr.mxu0 0.0
  %1603 = vmatpush2.msra.mxu0 0.0
  %1604 = vmatprep.subr.mxu0 0.0
  %1605 = vmatpush2.msra.mxu0 0.0
  %1606 = vmatprep.mubr.f32.mxu0 0.0
  %1607 = vmatmul.mubr.f32.gmra.mxu0 %v1531
  %v1608 = vpop.f32.mrf.mxu0
  %v1609 = vadd.f32 %v1529, %v1608
  %v1610 = vpop.f32.mrf.mxu0
  %1611 = vmatprep.mubr.f32.mxu0 0.0
  %1612 = vmatmul.mubr.f32.gmra.mxu0 %v1534
  %v1613 = vpop.f32.mrf.mxu0
  %v1614 = vadd.f32 %v1529, %v1613
  %v1615 = vpop.f32.mrf.mxu0
  %1616 = vmatprep.mubr.f32.mxu0 0.0
  %1617 = vmatmul.mubr.f32.gmra.mxu0 %v1537
  %v1618 = vpop.f32.mrf.mxu0
  %v1619 = vadd.f32 %v1529, %v1618
  %v1620 = vpop.f32.mrf.mxu0
  %1621 = vmatprep.mubr.f32.mxu0 0.0
  %1622 = vmatmul.mubr.f32.gmra.mxu0 %v1540
  %v1623 = vpop.f32.mrf.mxu0
  %v1624 = vadd.f32 %v1529, %v1623
  %v1625 = vpop.f32.mrf.mxu0
  %1626 = vdwg.mxu0
  %vm1627 = vcmask 64512
  %v1629 = vsel %vm1627, %v1519, 0
  %v1632 = vsel %vm1627, %v1609, 0
  %v1635 = vsel %vm1627, %v1614, 0
  %1637 = vmatprep.subr.mxu0 0.0
  %1638 = vmatpush1.xpose.msra.mxu0 0.0
  %1639 = vmatprep.subr.mxu0 0.0
  %1640 = vmatpush1.xpose.msra.mxu0 0.0
  %1641 = vmatprep.subr.mxu0 0.0
  %1642 = vmatpush1.xpose.msra.mxu0 0.0
  %1643 = vmatprep.subr.mxu0 0.0
  %1644 = vmatpush1.xpose.msra.mxu0 0.0
  %1645 = vmatprep.subr.mxu0 0.0
  %1646 = vmatpush1.xpose.msra.mxu0 0.0
  %1647 = vmatprep.subr.mxu0 0.0
  %1648 = vmatpush1.xpose.msra.mxu0 0.0
  %1649 = vmatprep.subr.mxu0 0.0
  %1650 = vmatpush1.xpose.msra.mxu0 0.0
  %1651 = vmatprep.subr.mxu0 0.0
  %1652 = vmatpush1.xpose.msra.mxu0 0.0
  %1653 = vmatprep.subr.mxu0 0.0
  %1654 = vmatpush1.xpose.msra.mxu0 0.0
  %1655 = vmatprep.subr.mxu0 0.0
  %1656 = vmatpush1.xpose.msra.mxu0 0.0
  %1657 = vmatprep.subr.mxu0 0.0
  %1658 = vmatpush1.xpose.msra.mxu0 0.0
  %1659 = vmatprep.subr.mxu0 0.0
  %1660 = vmatpush1.xpose.msra.mxu0 0.0
  %1661 = vmatprep.subr.mxu0 0.0
  %1662 = vmatpush1.xpose.msra.mxu0 0.0
  %1663 = vmatprep.subr.mxu0 0.0
  %1664 = vmatpush1.xpose.msra.mxu0 0.0
  %1665 = vmatprep.subr.mxu0 0.0
  %1666 = vmatpush1.xpose.msra.mxu0 %v1635
  %1667 = vmatprep.subr.mxu0 0.0
  %1668 = vmatpush1.xpose.msra.mxu0 %v1632
  %1669 = vmatprep.subr.mxu0 0.0
  %1670 = vmatpush2.xpose.msra.mxu0 0.0
  %1671 = vmatprep.subr.mxu0 0.0
  %1672 = vmatpush2.xpose.msra.mxu0 0.0
  %1673 = vmatprep.subr.mxu0 0.0
  %1674 = vmatpush2.xpose.msra.mxu0 0.0
  %1675 = vmatprep.subr.mxu0 0.0
  %1676 = vmatpush2.xpose.msra.mxu0 0.0
  %1677 = vmatprep.subr.mxu0 0.0
  %1678 = vmatpush2.xpose.msra.mxu0 0.0
  %1679 = vmatprep.subr.mxu0 0.0
  %1680 = vmatpush2.xpose.msra.mxu0 0.0
  %1681 = vmatprep.subr.mxu0 0.0
  %1682 = vmatpush2.xpose.msra.mxu0 0.0
  %1683 = vmatprep.subr.mxu0 0.0
  %1684 = vmatpush2.xpose.msra.mxu0 0.0
  %1685 = vmatprep.subr.mxu0 0.0
  %1686 = vmatpush2.xpose.msra.mxu0 0.0
  %1687 = vmatprep.subr.mxu0 0.0
  %1688 = vmatpush2.xpose.msra.mxu0 0.0
  %1689 = vmatprep.subr.mxu0 0.0
  %1690 = vmatpush2.xpose.msra.mxu0 0.0
  %1691 = vmatprep.subr.mxu0 0.0
  %1692 = vmatpush2.xpose.msra.mxu0 0.0
  %1693 = vmatprep.subr.mxu0 0.0
  %1694 = vmatpush2.xpose.msra.mxu0 0.0
  %1695 = vmatprep.subr.mxu0 0.0
  %1696 = vmatpush2.xpose.msra.mxu0 0.0
  %1697 = vmatprep.subr.mxu0 0.0
  %1698 = vmatpush2.xpose.msra.mxu0 0.0
  %1699 = vmatprep.subr.mxu0 0.0
  %1700 = vmatpush2.xpose.msra.mxu0 0.0
  %1701 = vmatprep.mubr.f32.mxu0 0.0
  %1702 = vmatmul.mubr.f32.gmra.mxu0 %v1629
  %v1703 = vpop.f32.mrf.mxu0
  %v1704 = vadd.f32 0.0, %v1703
  %v1705 = vpop.f32.mrf.mxu0
  %1706 = vdwg.mxu0
  %v1708 = vsel %vm1627, %v1520, 0
  %v1711 = vsel %vm1627, %v1619, 0
  %v1714 = vsel %vm1627, %v1624, 0
  %1716 = vmatprep.subr.mxu0 0.0
  %1717 = vmatpush1.xpose.msra.mxu0 0.0
  %1718 = vmatprep.subr.mxu0 0.0
  %1719 = vmatpush1.xpose.msra.mxu0 0.0
  %1720 = vmatprep.subr.mxu0 0.0
  %1721 = vmatpush1.xpose.msra.mxu0 0.0
  %1722 = vmatprep.subr.mxu0 0.0
  %1723 = vmatpush1.xpose.msra.mxu0 0.0
  %1724 = vmatprep.subr.mxu0 0.0
  %1725 = vmatpush1.xpose.msra.mxu0 0.0
  %1726 = vmatprep.subr.mxu0 0.0
  %1727 = vmatpush1.xpose.msra.mxu0 0.0
  %1728 = vmatprep.subr.mxu0 0.0
  %1729 = vmatpush1.xpose.msra.mxu0 0.0
  %1730 = vmatprep.subr.mxu0 0.0
  %1731 = vmatpush1.xpose.msra.mxu0 0.0
  %1732 = vmatprep.subr.mxu0 0.0
  %1733 = vmatpush1.xpose.msra.mxu0 0.0
  %1734 = vmatprep.subr.mxu0 0.0
  %1735 = vmatpush1.xpose.msra.mxu0 0.0
  %1736 = vmatprep.subr.mxu0 0.0
  %1737 = vmatpush1.xpose.msra.mxu0 0.0
  %1738 = vmatprep.subr.mxu0 0.0
  %1739 = vmatpush1.xpose.msra.mxu0 0.0
  %1740 = vmatprep.subr.mxu0 0.0
  %1741 = vmatpush1.xpose.msra.mxu0 0.0
  %1742 = vmatprep.subr.mxu0 0.0
  %1743 = vmatpush1.xpose.msra.mxu0 0.0
  %1744 = vmatprep.subr.mxu0 0.0
  %1745 = vmatpush1.xpose.msra.mxu0 %v1714
  %1746 = vmatprep.subr.mxu0 0.0
  %1747 = vmatpush1.xpose.msra.mxu0 %v1711
  %1748 = vmatprep.subr.mxu0 0.0
  %1749 = vmatpush2.xpose.msra.mxu0 0.0
  %1750 = vmatprep.subr.mxu0 0.0
  %1751 = vmatpush2.xpose.msra.mxu0 0.0
  %1752 = vmatprep.subr.mxu0 0.0
  %1753 = vmatpush2.xpose.msra.mxu0 0.0
  %1754 = vmatprep.subr.mxu0 0.0
  %1755 = vmatpush2.xpose.msra.mxu0 0.0
  %1756 = vmatprep.subr.mxu0 0.0
  %1757 = vmatpush2.xpose.msra.mxu0 0.0
  %1758 = vmatprep.subr.mxu0 0.0
  %1759 = vmatpush2.xpose.msra.mxu0 0.0
  %1760 = vmatprep.subr.mxu0 0.0
  %1761 = vmatpush2.xpose.msra.mxu0 0.0
  %1762 = vmatprep.subr.mxu0 0.0
  %1763 = vmatpush2.xpose.msra.mxu0 0.0
  %1764 = vmatprep.subr.mxu0 0.0
  %1765 = vmatpush2.xpose.msra.mxu0 0.0
  %1766 = vmatprep.subr.mxu0 0.0
  %1767 = vmatpush2.xpose.msra.mxu0 0.0
  %1768 = vmatprep.subr.mxu0 0.0
  %1769 = vmatpush2.xpose.msra.mxu0 0.0
  %1770 = vmatprep.subr.mxu0 0.0
  %1771 = vmatpush2.xpose.msra.mxu0 0.0
  %1772 = vmatprep.subr.mxu0 0.0
  %1773 = vmatpush2.xpose.msra.mxu0 0.0
  %1774 = vmatprep.subr.mxu0 0.0
  %1775 = vmatpush2.xpose.msra.mxu0 0.0
  %1776 = vmatprep.subr.mxu0 0.0
  %1777 = vmatpush2.xpose.msra.mxu0 0.0
  %1778 = vmatprep.subr.mxu0 0.0
  %1779 = vmatpush2.xpose.msra.mxu0 0.0
  %1780 = vmatprep.mubr.f32.mxu0 0.0
  %1781 = vmatmul.mubr.f32.gmra.mxu0 %v1708
  %v1782 = vpop.f32.mrf.mxu0
  %v1783 = vadd.f32 0.0, %v1782
  %v1784 = vpop.f32.mrf.mxu0
  %1785 = vdwg.mxu0
  %1786 = vrot.lane.b32.xlu0 %v1519, 120
  %v1787 = vpop.permute.xlu0 %1786
  %1788 = vrot.lane.b32.xlu0 %v1609, 120
  %v1789 = vpop.permute.xlu0 %1788
  %1790 = vrot.lane.b32.xlu0 %v1614, 120
  %v1791 = vpop.permute.xlu0 %1790
  %v1792 = vsel %vm1627, %v1787, 0
  %v1794 = vsel %vm1627, %v1789, 0
  %v1796 = vsel %vm1627, %v1791, 0
  %1798 = vmatprep.subr.mxu0 0.0
  %1799 = vmatpush1.xpose.msra.mxu0 0.0
  %1800 = vmatprep.subr.mxu0 0.0
  %1801 = vmatpush1.xpose.msra.mxu0 0.0
  %1802 = vmatprep.subr.mxu0 0.0
  %1803 = vmatpush1.xpose.msra.mxu0 0.0
  %1804 = vmatprep.subr.mxu0 0.0
  %1805 = vmatpush1.xpose.msra.mxu0 0.0
  %1806 = vmatprep.subr.mxu0 0.0
  %1807 = vmatpush1.xpose.msra.mxu0 0.0
  %1808 = vmatprep.subr.mxu0 0.0
  %1809 = vmatpush1.xpose.msra.mxu0 0.0
  %1810 = vmatprep.subr.mxu0 0.0
  %1811 = vmatpush1.xpose.msra.mxu0 0.0
  %1812 = vmatprep.subr.mxu0 0.0
  %1813 = vmatpush1.xpose.msra.mxu0 0.0
  %1814 = vmatprep.subr.mxu0 0.0
  %1815 = vmatpush1.xpose.msra.mxu0 0.0
  %1816 = vmatprep.subr.mxu0 0.0
  %1817 = vmatpush1.xpose.msra.mxu0 0.0
  %1818 = vmatprep.subr.mxu0 0.0
  %1819 = vmatpush1.xpose.msra.mxu0 0.0
  %1820 = vmatprep.subr.mxu0 0.0
  %1821 = vmatpush1.xpose.msra.mxu0 0.0
  %1822 = vmatprep.subr.mxu0 0.0
  %1823 = vmatpush1.xpose.msra.mxu0 0.0
  %1824 = vmatprep.subr.mxu0 0.0
  %1825 = vmatpush1.xpose.msra.mxu0 0.0
  %1826 = vmatprep.subr.mxu0 0.0
  %1827 = vmatpush1.xpose.msra.mxu0 %v1796
  %1828 = vmatprep.subr.mxu0 0.0
  %1829 = vmatpush1.xpose.msra.mxu0 %v1794
  %1830 = vmatprep.subr.mxu0 0.0
  %1831 = vmatpush2.xpose.msra.mxu0 0.0
  %1832 = vmatprep.subr.mxu0 0.0
  %1833 = vmatpush2.xpose.msra.mxu0 0.0
  %1834 = vmatprep.subr.mxu0 0.0
  %1835 = vmatpush2.xpose.msra.mxu0 0.0
  %1836 = vmatprep.subr.mxu0 0.0
  %1837 = vmatpush2.xpose.msra.mxu0 0.0
  %1838 = vmatprep.subr.mxu0 0.0
  %1839 = vmatpush2.xpose.msra.mxu0 0.0
  %1840 = vmatprep.subr.mxu0 0.0
  %1841 = vmatpush2.xpose.msra.mxu0 0.0
  %1842 = vmatprep.subr.mxu0 0.0
  %1843 = vmatpush2.xpose.msra.mxu0 0.0
  %1844 = vmatprep.subr.mxu0 0.0
  %1845 = vmatpush2.xpose.msra.mxu0 0.0
  %1846 = vmatprep.subr.mxu0 0.0
  %1847 = vmatpush2.xpose.msra.mxu0 0.0
  %1848 = vmatprep.subr.mxu0 0.0
  %1849 = vmatpush2.xpose.msra.mxu0 0.0
  %1850 = vmatprep.subr.mxu0 0.0
  %1851 = vmatpush2.xpose.msra.mxu0 0.0
  %1852 = vmatprep.subr.mxu0 0.0
  %1853 = vmatpush2.xpose.msra.mxu0 0.0
  %1854 = vmatprep.subr.mxu0 0.0
  %1855 = vmatpush2.xpose.msra.mxu0 0.0
  %1856 = vmatprep.subr.mxu0 0.0
  %1857 = vmatpush2.xpose.msra.mxu0 0.0
  %1858 = vmatprep.subr.mxu0 0.0
  %1859 = vmatpush2.xpose.msra.mxu0 0.0
  %1860 = vmatprep.subr.mxu0 0.0
  %1861 = vmatpush2.xpose.msra.mxu0 0.0
  %1862 = vmatprep.mubr.f32.mxu0 0.0
  %1863 = vmatmul.mubr.f32.gmra.mxu0 %v1792
  %v1864 = vpop.f32.mrf.mxu0
  %v1865 = vadd.f32 0.0, %v1864
  %v1866 = vpop.f32.mrf.mxu0
  %1867 = vdwg.mxu0
  %1868 = vrot.lane.b32.xlu0 %v1520, 120
  %v1869 = vpop.permute.xlu0 %1868
  %1870 = vrot.lane.b32.xlu0 %v1619, 120
  %v1871 = vpop.permute.xlu0 %1870
  %1872 = vrot.lane.b32.xlu0 %v1624, 120
  %v1873 = vpop.permute.xlu0 %1872
  %v1874 = vsel %vm1627, %v1869, 0
  %v1876 = vsel %vm1627, %v1871, 0
  %v1878 = vsel %vm1627, %v1873, 0
  %1880 = vmatprep.subr.mxu0 0.0
  %1881 = vmatpush1.xpose.msra.mxu0 0.0
  %1882 = vmatprep.subr.mxu0 0.0
  %1883 = vmatpush1.xpose.msra.mxu0 0.0
  %1884 = vmatprep.subr.mxu0 0.0
  %1885 = vmatpush1.xpose.msra.mxu0 0.0
  %1886 = vmatprep.subr.mxu0 0.0
  %1887 = vmatpush1.xpose.msra.mxu0 0.0
  %1888 = vmatprep.subr.mxu0 0.0
  %1889 = vmatpush1.xpose.msra.mxu0 0.0
  %1890 = vmatprep.subr.mxu0 0.0
  %1891 = vmatpush1.xpose.msra.mxu0 0.0
  %1892 = vmatprep.subr.mxu0 0.0
  %1893 = vmatpush1.xpose.msra.mxu0 0.0
  %1894 = vmatprep.subr.mxu0 0.0
  %1895 = vmatpush1.xpose.msra.mxu0 0.0
  %1896 = vmatprep.subr.mxu0 0.0
  %1897 = vmatpush1.xpose.msra.mxu0 0.0
  %1898 = vmatprep.subr.mxu0 0.0
  %1899 = vmatpush1.xpose.msra.mxu0 0.0
  %1900 = vmatprep.subr.mxu0 0.0
  %1901 = vmatpush1.xpose.msra.mxu0 0.0
  %1902 = vmatprep.subr.mxu0 0.0
  %1903 = vmatpush1.xpose.msra.mxu0 0.0
  %1904 = vmatprep.subr.mxu0 0.0
  %1905 = vmatpush1.xpose.msra.mxu0 0.0
  %1906 = vmatprep.subr.mxu0 0.0
  %1907 = vmatpush1.xpose.msra.mxu0 0.0
  %1908 = vmatprep.subr.mxu0 0.0
  %1909 = vmatpush1.xpose.msra.mxu0 %v1878
  %1910 = vmatprep.subr.mxu0 0.0
  %1911 = vmatpush1.xpose.msra.mxu0 %v1876
  %1912 = vmatprep.subr.mxu0 0.0
  %1913 = vmatpush2.xpose.msra.mxu0 0.0
  %1914 = vmatprep.subr.mxu0 0.0
  %1915 = vmatpush2.xpose.msra.mxu0 0.0
  %1916 = vmatprep.subr.mxu0 0.0
  %1917 = vmatpush2.xpose.msra.mxu0 0.0
  %1918 = vmatprep.subr.mxu0 0.0
  %1919 = vmatpush2.xpose.msra.mxu0 0.0
  %1920 = vmatprep.subr.mxu0 0.0
  %1921 = vmatpush2.xpose.msra.mxu0 0.0
  %1922 = vmatprep.subr.mxu0 0.0
  %1923 = vmatpush2.xpose.msra.mxu0 0.0
  %1924 = vmatprep.subr.mxu0 0.0
  %1925 = vmatpush2.xpose.msra.mxu0 0.0
  %1926 = vmatprep.subr.mxu0 0.0
  %1927 = vmatpush2.xpose.msra.mxu0 0.0
  %1928 = vmatprep.subr.mxu0 0.0
  %1929 = vmatpush2.xpose.msra.mxu0 0.0
  %1930 = vmatprep.subr.mxu0 0.0
  %1931 = vmatpush2.xpose.msra.mxu0 0.0
  %1932 = vmatprep.subr.mxu0 0.0
  %1933 = vmatpush2.xpose.msra.mxu0 0.0
  %1934 = vmatprep.subr.mxu0 0.0
  %1935 = vmatpush2.xpose.msra.mxu0 0.0
  %1936 = vmatprep.subr.mxu0 0.0
  %1937 = vmatpush2.xpose.msra.mxu0 0.0
  %1938 = vmatprep.subr.mxu0 0.0
  %1939 = vmatpush2.xpose.msra.mxu0 0.0
  %1940 = vmatprep.subr.mxu0 0.0
  %1941 = vmatpush2.xpose.msra.mxu0 0.0
  %1942 = vmatprep.subr.mxu0 0.0
  %1943 = vmatpush2.xpose.msra.mxu0 0.0
  %1944 = vmatprep.mubr.f32.mxu0 0.0
  %1945 = vmatmul.mubr.f32.gmra.mxu0 %v1874
  %v1946 = vpop.f32.mrf.mxu0
  %v1947 = vadd.f32 0.0, %v1946
  %v1948 = vpop.f32.mrf.mxu0
  %1949 = vdwg.mxu0
  %1950 = vrot.lane.b32.xlu0 %v1519, 112
  %v1951 = vpop.permute.xlu0 %1950
  %1952 = vrot.lane.b32.xlu0 %v1609, 112
  %v1953 = vpop.permute.xlu0 %1952
  %1954 = vrot.lane.b32.xlu0 %v1614, 112
  %v1955 = vpop.permute.xlu0 %1954
  %v1956 = vsel %vm1627, %v1951, 0
  %v1958 = vsel %vm1627, %v1953, 0
  %v1960 = vsel %vm1627, %v1955, 0
  %1962 = vmatprep.subr.mxu0 0.0
  %1963 = vmatpush1.xpose.msra.mxu0 0.0
  %1964 = vmatprep.subr.mxu0 0.0
  %1965 = vmatpush1.xpose.msra.mxu0 0.0
  %1966 = vmatprep.subr.mxu0 0.0
  %1967 = vmatpush1.xpose.msra.mxu0 0.0
  %1968 = vmatprep.subr.mxu0 0.0
  %1969 = vmatpush1.xpose.msra.mxu0 0.0
  %1970 = vmatprep.subr.mxu0 0.0
  %1971 = vmatpush1.xpose.msra.mxu0 0.0
  %1972 = vmatprep.subr.mxu0 0.0
  %1973 = vmatpush1.xpose.msra.mxu0 0.0
  %1974 = vmatprep.subr.mxu0 0.0
  %1975 = vmatpush1.xpose.msra.mxu0 0.0
  %1976 = vmatprep.subr.mxu0 0.0
  %1977 = vmatpush1.xpose.msra.mxu0 0.0
  %1978 = vmatprep.subr.mxu0 0.0
  %1979 = vmatpush1.xpose.msra.mxu0 0.0
  %1980 = vmatprep.subr.mxu0 0.0
  %1981 = vmatpush1.xpose.msra.mxu0 0.0
  %1982 = vmatprep.subr.mxu0 0.0
  %1983 = vmatpush1.xpose.msra.mxu0 0.0
  %1984 = vmatprep.subr.mxu0 0.0
  %1985 = vmatpush1.xpose.msra.mxu0 0.0
  %1986 = vmatprep.subr.mxu0 0.0
  %1987 = vmatpush1.xpose.msra.mxu0 0.0
  %1988 = vmatprep.subr.mxu0 0.0
  %1989 = vmatpush1.xpose.msra.mxu0 0.0
  %1990 = vmatprep.subr.mxu0 0.0
  %1991 = vmatpush1.xpose.msra.mxu0 %v1960
  %1992 = vmatprep.subr.mxu0 0.0
  %1993 = vmatpush1.xpose.msra.mxu0 %v1958
  %1994 = vmatprep.subr.mxu0 0.0
  %1995 = vmatpush2.xpose.msra.mxu0 0.0
  %1996 = vmatprep.subr.mxu0 0.0
  %1997 = vmatpush2.xpose.msra.mxu0 0.0
  %1998 = vmatprep.subr.mxu0 0.0
  %1999 = vmatpush2.xpose.msra.mxu0 0.0
  %2000 = vmatprep.subr.mxu0 0.0
  %2001 = vmatpush2.xpose.msra.mxu0 0.0
  %2002 = vmatprep.subr.mxu0 0.0
  %2003 = vmatpush2.xpose.msra.mxu0 0.0
  %2004 = vmatprep.subr.mxu0 0.0
  %2005 = vmatpush2.xpose.msra.mxu0 0.0
  %2006 = vmatprep.subr.mxu0 0.0
  %2007 = vmatpush2.xpose.msra.mxu0 0.0
  %2008 = vmatprep.subr.mxu0 0.0
  %2009 = vmatpush2.xpose.msra.mxu0 0.0
  %2010 = vmatprep.subr.mxu0 0.0
  %2011 = vmatpush2.xpose.msra.mxu0 0.0
  %2012 = vmatprep.subr.mxu0 0.0
  %2013 = vmatpush2.xpose.msra.mxu0 0.0
  %2014 = vmatprep.subr.mxu0 0.0
  %2015 = vmatpush2.xpose.msra.mxu0 0.0
  %2016 = vmatprep.subr.mxu0 0.0
  %2017 = vmatpush2.xpose.msra.mxu0 0.0
  %2018 = vmatprep.subr.mxu0 0.0
  %2019 = vmatpush2.xpose.msra.mxu0 0.0
  %2020 = vmatprep.subr.mxu0 0.0
  %2021 = vmatpush2.xpose.msra.mxu0 0.0
  %2022 = vmatprep.subr.mxu0 0.0
  %2023 = vmatpush2.xpose.msra.mxu0 0.0
  %2024 = vmatprep.subr.mxu0 0.0
  %2025 = vmatpush2.xpose.msra.mxu0 0.0
  %2026 = vmatprep.mubr.f32.mxu0 0.0
  %2027 = vmatmul.mubr.f32.gmra.mxu0 %v1956
  %v2028 = vpop.f32.mrf.mxu0
  %v2029 = vadd.f32 0.0, %v2028
  %v2030 = vpop.f32.mrf.mxu0
  %2031 = vdwg.mxu0
  %2032 = vrot.lane.b32.xlu0 %v1520, 112
  %v2033 = vpop.permute.xlu0 %2032
  %2034 = vrot.lane.b32.xlu0 %v1619, 112
  %v2035 = vpop.permute.xlu0 %2034
  %2036 = vrot.lane.b32.xlu0 %v1624, 112
  %v2037 = vpop.permute.xlu0 %2036
  %v2038 = vsel %vm1627, %v2033, 0
  %v2040 = vsel %vm1627, %v2035, 0
  %v2042 = vsel %vm1627, %v2037, 0
  %2044 = vmatprep.subr.mxu0 0.0
  %2045 = vmatpush1.xpose.msra.mxu0 0.0
  %2046 = vmatprep.subr.mxu0 0.0
  %2047 = vmatpush1.xpose.msra.mxu0 0.0
  %2048 = vmatprep.subr.mxu0 0.0
  %2049 = vmatpush1.xpose.msra.mxu0 0.0
  %2050 = vmatprep.subr.mxu0 0.0
  %2051 = vmatpush1.xpose.msra.mxu0 0.0
  %2052 = vmatprep.subr.mxu0 0.0
  %2053 = vmatpush1.xpose.msra.mxu0 0.0
  %2054 = vmatprep.subr.mxu0 0.0
  %2055 = vmatpush1.xpose.msra.mxu0 0.0
  %2056 = vmatprep.subr.mxu0 0.0
  %2057 = vmatpush1.xpose.msra.mxu0 0.0
  %2058 = vmatprep.subr.mxu0 0.0
  %2059 = vmatpush1.xpose.msra.mxu0 0.0
  %2060 = vmatprep.subr.mxu0 0.0
  %2061 = vmatpush1.xpose.msra.mxu0 0.0
  %2062 = vmatprep.subr.mxu0 0.0
  %2063 = vmatpush1.xpose.msra.mxu0 0.0
  %2064 = vmatprep.subr.mxu0 0.0
  %2065 = vmatpush1.xpose.msra.mxu0 0.0
  %2066 = vmatprep.subr.mxu0 0.0
  %2067 = vmatpush1.xpose.msra.mxu0 0.0
  %2068 = vmatprep.subr.mxu0 0.0
  %2069 = vmatpush1.xpose.msra.mxu0 0.0
  %2070 = vmatprep.subr.mxu0 0.0
  %2071 = vmatpush1.xpose.msra.mxu0 0.0
  %2072 = vmatprep.subr.mxu0 0.0
  %2073 = vmatpush1.xpose.msra.mxu0 %v2042
  %2074 = vmatprep.subr.mxu0 0.0
  %2075 = vmatpush1.xpose.msra.mxu0 %v2040
  %2076 = vmatprep.subr.mxu0 0.0
  %2077 = vmatpush2.xpose.msra.mxu0 0.0
  %2078 = vmatprep.subr.mxu0 0.0
  %2079 = vmatpush2.xpose.msra.mxu0 0.0
  %2080 = vmatprep.subr.mxu0 0.0
  %2081 = vmatpush2.xpose.msra.mxu0 0.0
  %2082 = vmatprep.subr.mxu0 0.0
  %2083 = vmatpush2.xpose.msra.mxu0 0.0
  %2084 = vmatprep.subr.mxu0 0.0
  %2085 = vmatpush2.xpose.msra.mxu0 0.0
  %2086 = vmatprep.subr.mxu0 0.0
  %2087 = vmatpush2.xpose.msra.mxu0 0.0
  %2088 = vmatprep.subr.mxu0 0.0
  %2089 = vmatpush2.xpose.msra.mxu0 0.0
  %2090 = vmatprep.subr.mxu0 0.0
  %2091 = vmatpush2.xpose.msra.mxu0 0.0
  %2092 = vmatprep.subr.mxu0 0.0
  %2093 = vmatpush2.xpose.msra.mxu0 0.0
  %2094 = vmatprep.subr.mxu0 0.0
  %2095 = vmatpush2.xpose.msra.mxu0 0.0
  %2096 = vmatprep.subr.mxu0 0.0
  %2097 = vmatpush2.xpose.msra.mxu0 0.0
  %2098 = vmatprep.subr.mxu0 0.0
  %2099 = vmatpush2.xpose.msra.mxu0 0.0
  %2100 = vmatprep.subr.mxu0 0.0
  %2101 = vmatpush2.xpose.msra.mxu0 0.0
  %2102 = vmatprep.subr.mxu0 0.0
  %2103 = vmatpush2.xpose.msra.mxu0 0.0
  %2104 = vmatprep.subr.mxu0 0.0
  %2105 = vmatpush2.xpose.msra.mxu0 0.0
  %2106 = vmatprep.subr.mxu0 0.0
  %2107 = vmatpush2.xpose.msra.mxu0 0.0
  %2108 = vmatprep.mubr.f32.mxu0 0.0
  %2109 = vmatmul.mubr.f32.gmra.mxu0 %v2038
  %v2110 = vpop.f32.mrf.mxu0
  %v2111 = vadd.f32 0.0, %v2110
  %v2112 = vpop.f32.mrf.mxu0
  %2113 = vdwg.mxu0
  %2114 = vrot.lane.b32.xlu0 %v1519, 104
  %v2115 = vpop.permute.xlu0 %2114
  %2116 = vrot.lane.b32.xlu0 %v1609, 104
  %v2117 = vpop.permute.xlu0 %2116
  %2118 = vrot.lane.b32.xlu0 %v1614, 104
  %v2119 = vpop.permute.xlu0 %2118
  %v2120 = vsel %vm1627, %v2115, 0
  %v2122 = vsel %vm1627, %v2117, 0
  %v2124 = vsel %vm1627, %v2119, 0
  %2126 = vmatprep.subr.mxu0 0.0
  %2127 = vmatpush1.xpose.msra.mxu0 0.0
  %2128 = vmatprep.subr.mxu0 0.0
  %2129 = vmatpush1.xpose.msra.mxu0 0.0
  %2130 = vmatprep.subr.mxu0 0.0
  %2131 = vmatpush1.xpose.msra.mxu0 0.0
  %2132 = vmatprep.subr.mxu0 0.0
  %2133 = vmatpush1.xpose.msra.mxu0 0.0
  %2134 = vmatprep.subr.mxu0 0.0
  %2135 = vmatpush1.xpose.msra.mxu0 0.0
  %2136 = vmatprep.subr.mxu0 0.0
  %2137 = vmatpush1.xpose.msra.mxu0 0.0
  %2138 = vmatprep.subr.mxu0 0.0
  %2139 = vmatpush1.xpose.msra.mxu0 0.0
  %2140 = vmatprep.subr.mxu0 0.0
  %2141 = vmatpush1.xpose.msra.mxu0 0.0
  %2142 = vmatprep.subr.mxu0 0.0
  %2143 = vmatpush1.xpose.msra.mxu0 0.0
  %2144 = vmatprep.subr.mxu0 0.0
  %2145 = vmatpush1.xpose.msra.mxu0 0.0
  %2146 = vmatprep.subr.mxu0 0.0
  %2147 = vmatpush1.xpose.msra.mxu0 0.0
  %2148 = vmatprep.subr.mxu0 0.0
  %2149 = vmatpush1.xpose.msra.mxu0 0.0
  %2150 = vmatprep.subr.mxu0 0.0
  %2151 = vmatpush1.xpose.msra.mxu0 0.0
  %2152 = vmatprep.subr.mxu0 0.0
  %2153 = vmatpush1.xpose.msra.mxu0 0.0
  %2154 = vmatprep.subr.mxu0 0.0
  %2155 = vmatpush1.xpose.msra.mxu0 %v2124
  %2156 = vmatprep.subr.mxu0 0.0
  %2157 = vmatpush1.xpose.msra.mxu0 %v2122
  %2158 = vmatprep.subr.mxu0 0.0
  %2159 = vmatpush2.xpose.msra.mxu0 0.0
  %2160 = vmatprep.subr.mxu0 0.0
  %2161 = vmatpush2.xpose.msra.mxu0 0.0
  %2162 = vmatprep.subr.mxu0 0.0
  %2163 = vmatpush2.xpose.msra.mxu0 0.0
  %2164 = vmatprep.subr.mxu0 0.0
  %2165 = vmatpush2.xpose.msra.mxu0 0.0
  %2166 = vmatprep.subr.mxu0 0.0
  %2167 = vmatpush2.xpose.msra.mxu0 0.0
  %2168 = vmatprep.subr.mxu0 0.0
  %2169 = vmatpush2.xpose.msra.mxu0 0.0
  %2170 = vmatprep.subr.mxu0 0.0
  %2171 = vmatpush2.xpose.msra.mxu0 0.0
  %2172 = vmatprep.subr.mxu0 0.0
  %2173 = vmatpush2.xpose.msra.mxu0 0.0
  %2174 = vmatprep.subr.mxu0 0.0
  %2175 = vmatpush2.xpose.msra.mxu0 0.0
  %2176 = vmatprep.subr.mxu0 0.0
  %2177 = vmatpush2.xpose.msra.mxu0 0.0
  %2178 = vmatprep.subr.mxu0 0.0
  %2179 = vmatpush2.xpose.msra.mxu0 0.0
  %2180 = vmatprep.subr.mxu0 0.0
  %2181 = vmatpush2.xpose.msra.mxu0 0.0
  %2182 = vmatprep.subr.mxu0 0.0
  %2183 = vmatpush2.xpose.msra.mxu0 0.0
  %2184 = vmatprep.subr.mxu0 0.0
  %2185 = vmatpush2.xpose.msra.mxu0 0.0
  %2186 = vmatprep.subr.mxu0 0.0
  %2187 = vmatpush2.xpose.msra.mxu0 0.0
  %2188 = vmatprep.subr.mxu0 0.0
  %2189 = vmatpush2.xpose.msra.mxu0 0.0
  %2190 = vmatprep.mubr.f32.mxu0 0.0
  %2191 = vmatmul.mubr.f32.gmra.mxu0 %v2120
  %v2192 = vpop.f32.mrf.mxu0
  %v2193 = vadd.f32 0.0, %v2192
  %v2194 = vpop.f32.mrf.mxu0
  %2195 = vdwg.mxu0
  %2196 = vrot.lane.b32.xlu0 %v1520, 104
  %v2197 = vpop.permute.xlu0 %2196
  %2198 = vrot.lane.b32.xlu0 %v1619, 104
  %v2199 = vpop.permute.xlu0 %2198
  %2200 = vrot.lane.b32.xlu0 %v1624, 104
  %v2201 = vpop.permute.xlu0 %2200
  %v2202 = vsel %vm1627, %v2197, 0
  %v2204 = vsel %vm1627, %v2199, 0
  %v2206 = vsel %vm1627, %v2201, 0
  %2208 = vmatprep.subr.mxu0 0.0
  %2209 = vmatpush1.xpose.msra.mxu0 0.0
  %2210 = vmatprep.subr.mxu0 0.0
  %2211 = vmatpush1.xpose.msra.mxu0 0.0
  %2212 = vmatprep.subr.mxu0 0.0
  %2213 = vmatpush1.xpose.msra.mxu0 0.0
  %2214 = vmatprep.subr.mxu0 0.0
  %2215 = vmatpush1.xpose.msra.mxu0 0.0
  %2216 = vmatprep.subr.mxu0 0.0
  %2217 = vmatpush1.xpose.msra.mxu0 0.0
  %2218 = vmatprep.subr.mxu0 0.0
  %2219 = vmatpush1.xpose.msra.mxu0 0.0
  %2220 = vmatprep.subr.mxu0 0.0
  %2221 = vmatpush1.xpose.msra.mxu0 0.0
  %2222 = vmatprep.subr.mxu0 0.0
  %2223 = vmatpush1.xpose.msra.mxu0 0.0
  %2224 = vmatprep.subr.mxu0 0.0
  %2225 = vmatpush1.xpose.msra.mxu0 0.0
  %2226 = vmatprep.subr.mxu0 0.0
  %2227 = vmatpush1.xpose.msra.mxu0 0.0
  %2228 = vmatprep.subr.mxu0 0.0
  %2229 = vmatpush1.xpose.msra.mxu0 0.0
  %2230 = vmatprep.subr.mxu0 0.0
  %2231 = vmatpush1.xpose.msra.mxu0 0.0
  %2232 = vmatprep.subr.mxu0 0.0
  %2233 = vmatpush1.xpose.msra.mxu0 0.0
  %2234 = vmatprep.subr.mxu0 0.0
  %2235 = vmatpush1.xpose.msra.mxu0 0.0
  %2236 = vmatprep.subr.mxu0 0.0
  %2237 = vmatpush1.xpose.msra.mxu0 %v2206
  %2238 = vmatprep.subr.mxu0 0.0
  %2239 = vmatpush1.xpose.msra.mxu0 %v2204
  %2240 = vmatprep.subr.mxu0 0.0
  %2241 = vmatpush2.xpose.msra.mxu0 0.0
  %2242 = vmatprep.subr.mxu0 0.0
  %2243 = vmatpush2.xpose.msra.mxu0 0.0
  %2244 = vmatprep.subr.mxu0 0.0
  %2245 = vmatpush2.xpose.msra.mxu0 0.0
  %2246 = vmatprep.subr.mxu0 0.0
  %2247 = vmatpush2.xpose.msra.mxu0 0.0
  %2248 = vmatprep.subr.mxu0 0.0
  %2249 = vmatpush2.xpose.msra.mxu0 0.0
  %2250 = vmatprep.subr.mxu0 0.0
  %2251 = vmatpush2.xpose.msra.mxu0 0.0
  %2252 = vmatprep.subr.mxu0 0.0
  %2253 = vmatpush2.xpose.msra.mxu0 0.0
  %2254 = vmatprep.subr.mxu0 0.0
  %2255 = vmatpush2.xpose.msra.mxu0 0.0
  %2256 = vmatprep.subr.mxu0 0.0
  %2257 = vmatpush2.xpose.msra.mxu0 0.0
  %2258 = vmatprep.subr.mxu0 0.0
  %2259 = vmatpush2.xpose.msra.mxu0 0.0
  %2260 = vmatprep.subr.mxu0 0.0
  %2261 = vmatpush2.xpose.msra.mxu0 0.0
  %2262 = vmatprep.subr.mxu0 0.0
  %2263 = vmatpush2.xpose.msra.mxu0 0.0
  %2264 = vmatprep.subr.mxu0 0.0
  %2265 = vmatpush2.xpose.msra.mxu0 0.0
  %2266 = vmatprep.subr.mxu0 0.0
  %2267 = vmatpush2.xpose.msra.mxu0 0.0
  %2268 = vmatprep.subr.mxu0 0.0
  %2269 = vmatpush2.xpose.msra.mxu0 0.0
  %2270 = vmatprep.subr.mxu0 0.0
  %2271 = vmatpush2.xpose.msra.mxu0 0.0
  %2272 = vmatprep.mubr.f32.mxu0 0.0
  %2273 = vmatmul.mubr.f32.gmra.mxu0 %v2202
  %v2274 = vpop.f32.mrf.mxu0
  %v2275 = vadd.f32 0.0, %v2274
  %v2276 = vpop.f32.mrf.mxu0
  %2277 = vdwg.mxu0
  %vm2278 = vcmask 130048
  %v2279 = vsel %vm2278, %v1704, -inf
  %2280 = vmax.xlane.f32.xlu0 %v2279
  %v2281 = vpop.xlane.xlu0 %2280
  %v2282 = vsel %vm2278, %v1865, -inf
  %2283 = vmax.xlane.f32.xlu0 %v2282
  %v2284 = vpop.xlane.xlu0 %2283
  %v2285 = vsel %vm2278, %v2029, -inf
  %2286 = vmax.xlane.f32.xlu0 %v2285
  %v2287 = vpop.xlane.xlu0 %2286
  %v2288 = vsel %vm2278, %v2193, -inf
  %2289 = vmax.xlane.f32.xlu0 %v2288
  %v2290 = vpop.xlane.xlu0 %2289
  %v2291 = vsel %vm2278, %v1783, -inf
  %2292 = vmax.xlane.f32.xlu0 %v2291
  %v2293 = vpop.xlane.xlu0 %2292
  %v2294 = vsel %vm2278, %v1947, -inf
  %2295 = vmax.xlane.f32.xlu0 %v2294
  %v2296 = vpop.xlane.xlu0 %2295
  %v2297 = vsel %vm2278, %v2111, -inf
  %2298 = vmax.xlane.f32.xlu0 %v2297
  %v2299 = vpop.xlane.xlu0 %2298
  %v2300 = vsel %vm2278, %v2275, -inf
  %2301 = vmax.xlane.f32.xlu0 %v2300
  %v2302 = vpop.xlane.xlu0 %2301
  %v2303 = vsub.f32 %v1704, %v2281
  %v2304 = vsub.f32 %v1865, %v2284
  %v2305 = vsub.f32 %v2029, %v2287
  %v2306 = vsub.f32 %v2193, %v2290
  %v2307 = vsub.f32 %v1783, %v2293
  %v2308 = vsub.f32 %v1947, %v2296
  %v2309 = vsub.f32 %v2111, %v2299
  %v2310 = vsub.f32 %v2275, %v2302
  %v2311 = vmul.f32 %v2303, 1.442695
  %v2312 = vpow.pop %v2311
  %v2313 = vmul.f32 %v2304, 1.442695
  %v2314 = vpow.pop %v2313
  %v2315 = vmul.f32 %v2305, 1.442695
  %v2316 = vpow.pop %v2315
  %v2317 = vmul.f32 %v2306, 1.442695
  %v2318 = vpow.pop %v2317
  %v2319 = vmul.f32 %v2307, 1.442695
  %v2320 = vpow.pop %v2319
  %v2321 = vmul.f32 %v2308, 1.442695
  %v2322 = vpow.pop %v2321
  %v2323 = vmul.f32 %v2309, 1.442695
  %v2324 = vpow.pop %v2323
  %v2325 = vmul.f32 %v2310, 1.442695
  %v2326 = vpow.pop %v2325
  %v2327 = vsel %vm2278, %v2312, 0.0
  %2328 = vadd.xlane.f32.xlu0 %v2327
  %v2329 = vpop.xlane.xlu0 %2328
  %v2330 = vsel %vm2278, %v2314, 0.0
  %2331 = vadd.xlane.f32.xlu0 %v2330
  %v2332 = vpop.xlane.xlu0 %2331
  %v2333 = vsel %vm2278, %v2316, 0.0
  %2334 = vadd.xlane.f32.xlu0 %v2333
  %v2335 = vpop.xlane.xlu0 %2334
  %v2336 = vsel %vm2278, %v2318, 0.0
  %2337 = vadd.xlane.f32.xlu0 %v2336
  %v2338 = vpop.xlane.xlu0 %2337
  %v2339 = vsel %vm2278, %v2320, 0.0
  %2340 = vadd.xlane.f32.xlu0 %v2339
  %v2341 = vpop.xlane.xlu0 %2340
  %v2342 = vsel %vm2278, %v2322, 0.0
  %2343 = vadd.xlane.f32.xlu0 %v2342
  %v2344 = vpop.xlane.xlu0 %2343
  %v2345 = vsel %vm2278, %v2324, 0.0
  %2346 = vadd.xlane.f32.xlu0 %v2345
  %v2347 = vpop.xlane.xlu0 %2346
  %v2348 = vsel %vm2278, %v2326, 0.0
  %2349 = vadd.xlane.f32.xlu0 %v2348
  %v2350 = vpop.xlane.xlu0 %2349
  %v2351 = vrcp.pop %v2329
  %v2352 = vrcp.pop %v2332
  %v2353 = vrcp.pop %v2335
  %v2354 = vrcp.pop %v2338
  %v2355 = vrcp.pop %v2341
  %v2356 = vrcp.pop %v2344
  %v2357 = vrcp.pop %v2347
  %v2358 = vrcp.pop %v2350
  %v2359 = vmul.f32 %v2312, %v2351
  %v2360 = vmul.f32 %v2314, %v2352
  %v2361 = vmul.f32 %v2316, %v2353
  %v2362 = vmul.f32 %v2318, %v2354
  %v2363 = vmul.f32 %v2320, %v2355
  %v2364 = vmul.f32 %v2322, %v2356
  %v2365 = vmul.f32 %v2324, %v2357
  %v2366 = vmul.f32 %v2326, %v2358
  %2367 = vrot.lane.b32.xlu0 %v1609, 96
  %v2368 = vpop.permute.xlu0 %2367
  %2369 = vrot.lane.b32.xlu0 %v1614, 96
  %v2370 = vpop.permute.xlu0 %2369
  %v2374 = vsel %vm2278, %v2359, 0
  %2376 = vmatprep.subr.mxu0 0.0
  %2377 = vmatpush1.msra.mxu0 0.0
  %2378 = vmatprep.subr.mxu0 0.0
  %2379 = vmatpush1.msra.mxu0 0.0
  %2380 = vmatprep.subr.mxu0 0.0
  %2381 = vmatpush1.msra.mxu0 0.0
  %2382 = vmatprep.subr.mxu0 0.0
  %2383 = vmatpush1.msra.mxu0 0.0
  %2384 = vmatprep.subr.mxu0 0.0
  %2385 = vmatpush1.msra.mxu0 0.0
  %2386 = vmatprep.subr.mxu0 0.0
  %2387 = vmatpush1.msra.mxu0 0.0
  %2388 = vmatprep.subr.mxu0 0.0
  %2389 = vmatpush1.msra.mxu0 0.0
  %2390 = vmatprep.subr.mxu0 0.0
  %2391 = vmatpush1.msra.mxu0 0.0
  %2392 = vmatprep.subr.mxu0 0.0
  %2393 = vmatpush1.msra.mxu0 0.0
  %2394 = vmatprep.subr.mxu0 0.0
  %2395 = vmatpush1.msra.mxu0 0.0
  %2396 = vmatprep.subr.mxu0 0.0
  %2397 = vmatpush1.msra.mxu0 0.0
  %2398 = vmatprep.subr.mxu0 0.0
  %2399 = vmatpush1.msra.mxu0 0.0
  %2400 = vmatprep.subr.mxu0 0.0
  %2401 = vmatpush1.msra.mxu0 0.0
  %2402 = vmatprep.subr.mxu0 0.0
  %2403 = vmatpush1.msra.mxu0 0.0
  %2404 = vmatprep.subr.mxu0 0.0
  %2405 = vmatpush1.msra.mxu0 %v2370
  %2406 = vmatprep.subr.mxu0 0.0
  %2407 = vmatpush1.msra.mxu0 %v2368
  %2408 = vmatprep.subr.mxu0 0.0
  %2409 = vmatpush2.msra.mxu0 0.0
  %2410 = vmatprep.subr.mxu0 0.0
  %2411 = vmatpush2.msra.mxu0 0.0
  %2412 = vmatprep.subr.mxu0 0.0
  %2413 = vmatpush2.msra.mxu0 0.0
  %2414 = vmatprep.subr.mxu0 0.0
  %2415 = vmatpush2.msra.mxu0 0.0
  %2416 = vmatprep.subr.mxu0 0.0
  %2417 = vmatpush2.msra.mxu0 0.0
  %2418 = vmatprep.subr.mxu0 0.0
  %2419 = vmatpush2.msra.mxu0 0.0
  %2420 = vmatprep.subr.mxu0 0.0
  %2421 = vmatpush2.msra.mxu0 0.0
  %2422 = vmatprep.subr.mxu0 0.0
  %2423 = vmatpush2.msra.mxu0 0.0
  %2424 = vmatprep.subr.mxu0 0.0
  %2425 = vmatpush2.msra.mxu0 0.0
  %2426 = vmatprep.subr.mxu0 0.0
  %2427 = vmatpush2.msra.mxu0 0.0
  %2428 = vmatprep.subr.mxu0 0.0
  %2429 = vmatpush2.msra.mxu0 0.0
  %2430 = vmatprep.subr.mxu0 0.0
  %2431 = vmatpush2.msra.mxu0 0.0
  %2432 = vmatprep.subr.mxu0 0.0
  %2433 = vmatpush2.msra.mxu0 0.0
  %2434 = vmatprep.subr.mxu0 0.0
  %2435 = vmatpush2.msra.mxu0 0.0
  %2436 = vmatprep.subr.mxu0 0.0
  %2437 = vmatpush2.msra.mxu0 0.0
  %2438 = vmatprep.subr.mxu0 0.0
  %2439 = vmatpush2.msra.mxu0 0.0
  %2440 = vmatprep.mubr.f32.mxu0 0.0
  %2441 = vmatmul.mubr.f32.gmra.mxu0 %v2374
  %v2442 = vpop.f32.mrf.mxu0
  %v2443 = vadd.f32 0.0, %v2442
  %v2444 = vpop.f32.mrf.mxu0
  %2445 = vdwg.mxu0
  %2446 = vrot.lane.b32.xlu0 %v1619, 96
  %v2447 = vpop.permute.xlu0 %2446
  %2448 = vrot.lane.b32.xlu0 %v1624, 96
  %v2449 = vpop.permute.xlu0 %2448
  %v2453 = vsel %vm2278, %v2363, 0
  %2455 = vmatprep.subr.mxu0 0.0
  %2456 = vmatpush1.msra.mxu0 0.0
  %2457 = vmatprep.subr.mxu0 0.0
  %2458 = vmatpush1.msra.mxu0 0.0
  %2459 = vmatprep.subr.mxu0 0.0
  %2460 = vmatpush1.msra.mxu0 0.0
  %2461 = vmatprep.subr.mxu0 0.0
  %2462 = vmatpush1.msra.mxu0 0.0
  %2463 = vmatprep.subr.mxu0 0.0
  %2464 = vmatpush1.msra.mxu0 0.0
  %2465 = vmatprep.subr.mxu0 0.0
  %2466 = vmatpush1.msra.mxu0 0.0
  %2467 = vmatprep.subr.mxu0 0.0
  %2468 = vmatpush1.msra.mxu0 0.0
  %2469 = vmatprep.subr.mxu0 0.0
  %2470 = vmatpush1.msra.mxu0 0.0
  %2471 = vmatprep.subr.mxu0 0.0
  %2472 = vmatpush1.msra.mxu0 0.0
  %2473 = vmatprep.subr.mxu0 0.0
  %2474 = vmatpush1.msra.mxu0 0.0
  %2475 = vmatprep.subr.mxu0 0.0
  %2476 = vmatpush1.msra.mxu0 0.0
  %2477 = vmatprep.subr.mxu0 0.0
  %2478 = vmatpush1.msra.mxu0 0.0
  %2479 = vmatprep.subr.mxu0 0.0
  %2480 = vmatpush1.msra.mxu0 0.0
  %2481 = vmatprep.subr.mxu0 0.0
  %2482 = vmatpush1.msra.mxu0 0.0
  %2483 = vmatprep.subr.mxu0 0.0
  %2484 = vmatpush1.msra.mxu0 %v2449
  %2485 = vmatprep.subr.mxu0 0.0
  %2486 = vmatpush1.msra.mxu0 %v2447
  %2487 = vmatprep.subr.mxu0 0.0
  %2488 = vmatpush2.msra.mxu0 0.0
  %2489 = vmatprep.subr.mxu0 0.0
  %2490 = vmatpush2.msra.mxu0 0.0
  %2491 = vmatprep.subr.mxu0 0.0
  %2492 = vmatpush2.msra.mxu0 0.0
  %2493 = vmatprep.subr.mxu0 0.0
  %2494 = vmatpush2.msra.mxu0 0.0
  %2495 = vmatprep.subr.mxu0 0.0
  %2496 = vmatpush2.msra.mxu0 0.0
  %2497 = vmatprep.subr.mxu0 0.0
  %2498 = vmatpush2.msra.mxu0 0.0
  %2499 = vmatprep.subr.mxu0 0.0
  %2500 = vmatpush2.msra.mxu0 0.0
  %2501 = vmatprep.subr.mxu0 0.0
  %2502 = vmatpush2.msra.mxu0 0.0
  %2503 = vmatprep.subr.mxu0 0.0
  %2504 = vmatpush2.msra.mxu0 0.0
  %2505 = vmatprep.subr.mxu0 0.0
  %2506 = vmatpush2.msra.mxu0 0.0
  %2507 = vmatprep.subr.mxu0 0.0
  %2508 = vmatpush2.msra.mxu0 0.0
  %2509 = vmatprep.subr.mxu0 0.0
  %2510 = vmatpush2.msra.mxu0 0.0
  %2511 = vmatprep.subr.mxu0 0.0
  %2512 = vmatpush2.msra.mxu0 0.0
  %2513 = vmatprep.subr.mxu0 0.0
  %2514 = vmatpush2.msra.mxu0 0.0
  %2515 = vmatprep.subr.mxu0 0.0
  %2516 = vmatpush2.msra.mxu0 0.0
  %2517 = vmatprep.subr.mxu0 0.0
  %2518 = vmatpush2.msra.mxu0 0.0
  %2519 = vmatprep.mubr.f32.mxu0 0.0
  %2520 = vmatmul.mubr.f32.gmra.mxu0 %v2453
  %v2521 = vpop.f32.mrf.mxu0
  %v2522 = vadd.f32 0.0, %v2521
  %v2523 = vpop.f32.mrf.mxu0
  %2524 = vdwg.mxu0
  %2525 = vrot.lane.b32.xlu0 %v1609, 88
  %v2526 = vpop.permute.xlu0 %2525
  %2527 = vrot.lane.b32.xlu0 %v1614, 88
  %v2528 = vpop.permute.xlu0 %2527
  %v2532 = vsel %vm2278, %v2360, 0
  %2534 = vmatprep.subr.mxu0 0.0
  %2535 = vmatpush1.msra.mxu0 0.0
  %2536 = vmatprep.subr.mxu0 0.0
  %2537 = vmatpush1.msra.mxu0 0.0
  %2538 = vmatprep.subr.mxu0 0.0
  %2539 = vmatpush1.msra.mxu0 0.0
  %2540 = vmatprep.subr.mxu0 0.0
  %2541 = vmatpush1.msra.mxu0 0.0
  %2542 = vmatprep.subr.mxu0 0.0
  %2543 = vmatpush1.msra.mxu0 0.0
  %2544 = vmatprep.subr.mxu0 0.0
  %2545 = vmatpush1.msra.mxu0 0.0
  %2546 = vmatprep.subr.mxu0 0.0
  %2547 = vmatpush1.msra.mxu0 0.0
  %2548 = vmatprep.subr.mxu0 0.0
  %2549 = vmatpush1.msra.mxu0 0.0
  %2550 = vmatprep.subr.mxu0 0.0
  %2551 = vmatpush1.msra.mxu0 0.0
  %2552 = vmatprep.subr.mxu0 0.0
  %2553 = vmatpush1.msra.mxu0 0.0
  %2554 = vmatprep.subr.mxu0 0.0
  %2555 = vmatpush1.msra.mxu0 0.0
  %2556 = vmatprep.subr.mxu0 0.0
  %2557 = vmatpush1.msra.mxu0 0.0
  %2558 = vmatprep.subr.mxu0 0.0
  %2559 = vmatpush1.msra.mxu0 0.0
  %2560 = vmatprep.subr.mxu0 0.0
  %2561 = vmatpush1.msra.mxu0 0.0
  %2562 = vmatprep.subr.mxu0 0.0
  %2563 = vmatpush1.msra.mxu0 %v2528
  %2564 = vmatprep.subr.mxu0 0.0
  %2565 = vmatpush1.msra.mxu0 %v2526
  %2566 = vmatprep.subr.mxu0 0.0
  %2567 = vmatpush2.msra.mxu0 0.0
  %2568 = vmatprep.subr.mxu0 0.0
  %2569 = vmatpush2.msra.mxu0 0.0
  %2570 = vmatprep.subr.mxu0 0.0
  %2571 = vmatpush2.msra.mxu0 0.0
  %2572 = vmatprep.subr.mxu0 0.0
  %2573 = vmatpush2.msra.mxu0 0.0
  %2574 = vmatprep.subr.mxu0 0.0
  %2575 = vmatpush2.msra.mxu0 0.0
  %2576 = vmatprep.subr.mxu0 0.0
  %2577 = vmatpush2.msra.mxu0 0.0
  %2578 = vmatprep.subr.mxu0 0.0
  %2579 = vmatpush2.msra.mxu0 0.0
  %2580 = vmatprep.subr.mxu0 0.0
  %2581 = vmatpush2.msra.mxu0 0.0
  %2582 = vmatprep.subr.mxu0 0.0
  %2583 = vmatpush2.msra.mxu0 0.0
  %2584 = vmatprep.subr.mxu0 0.0
  %2585 = vmatpush2.msra.mxu0 0.0
  %2586 = vmatprep.subr.mxu0 0.0
  %2587 = vmatpush2.msra.mxu0 0.0
  %2588 = vmatprep.subr.mxu0 0.0
  %2589 = vmatpush2.msra.mxu0 0.0
  %2590 = vmatprep.subr.mxu0 0.0
  %2591 = vmatpush2.msra.mxu0 0.0
  %2592 = vmatprep.subr.mxu0 0.0
  %2593 = vmatpush2.msra.mxu0 0.0
  %2594 = vmatprep.subr.mxu0 0.0
  %2595 = vmatpush2.msra.mxu0 0.0
  %2596 = vmatprep.subr.mxu0 0.0
  %2597 = vmatpush2.msra.mxu0 0.0
  %2598 = vmatprep.mubr.f32.mxu0 0.0
  %2599 = vmatmul.mubr.f32.gmra.mxu0 %v2532
  %v2600 = vpop.f32.mrf.mxu0
  %v2601 = vadd.f32 0.0, %v2600
  %v2602 = vpop.f32.mrf.mxu0
  %2603 = vdwg.mxu0
  %2604 = vrot.lane.b32.xlu0 %v1619, 88
  %v2605 = vpop.permute.xlu0 %2604
  %2606 = vrot.lane.b32.xlu0 %v1624, 88
  %v2607 = vpop.permute.xlu0 %2606
  %v2611 = vsel %vm2278, %v2364, 0
  %2613 = vmatprep.subr.mxu0 0.0
  %2614 = vmatpush1.msra.mxu0 0.0
  %2615 = vmatprep.subr.mxu0 0.0
  %2616 = vmatpush1.msra.mxu0 0.0
  %2617 = vmatprep.subr.mxu0 0.0
  %2618 = vmatpush1.msra.mxu0 0.0
  %2619 = vmatprep.subr.mxu0 0.0
  %2620 = vmatpush1.msra.mxu0 0.0
  %2621 = vmatprep.subr.mxu0 0.0
  %2622 = vmatpush1.msra.mxu0 0.0
  %2623 = vmatprep.subr.mxu0 0.0
  %2624 = vmatpush1.msra.mxu0 0.0
  %2625 = vmatprep.subr.mxu0 0.0
  %2626 = vmatpush1.msra.mxu0 0.0
  %2627 = vmatprep.subr.mxu0 0.0
  %2628 = vmatpush1.msra.mxu0 0.0
  %2629 = vmatprep.subr.mxu0 0.0
  %2630 = vmatpush1.msra.mxu0 0.0
  %2631 = vmatprep.subr.mxu0 0.0
  %2632 = vmatpush1.msra.mxu0 0.0
  %2633 = vmatprep.subr.mxu0 0.0
  %2634 = vmatpush1.msra.mxu0 0.0
  %2635 = vmatprep.subr.mxu0 0.0
  %2636 = vmatpush1.msra.mxu0 0.0
  %2637 = vmatprep.subr.mxu0 0.0
  %2638 = vmatpush1.msra.mxu0 0.0
  %2639 = vmatprep.subr.mxu0 0.0
  %2640 = vmatpush1.msra.mxu0 0.0
  %2641 = vmatprep.subr.mxu0 0.0
  %2642 = vmatpush1.msra.mxu0 %v2607
  %2643 = vmatprep.subr.mxu0 0.0
  %2644 = vmatpush1.msra.mxu0 %v2605
  %2645 = vmatprep.subr.mxu0 0.0
  %2646 = vmatpush2.msra.mxu0 0.0
  %2647 = vmatprep.subr.mxu0 0.0
  %2648 = vmatpush2.msra.mxu0 0.0
  %2649 = vmatprep.subr.mxu0 0.0
  %2650 = vmatpush2.msra.mxu0 0.0
  %2651 = vmatprep.subr.mxu0 0.0
  %2652 = vmatpush2.msra.mxu0 0.0
  %2653 = vmatprep.subr.mxu0 0.0
  %2654 = vmatpush2.msra.mxu0 0.0
  %2655 = vmatprep.subr.mxu0 0.0
  %2656 = vmatpush2.msra.mxu0 0.0
  %2657 = vmatprep.subr.mxu0 0.0
  %2658 = vmatpush2.msra.mxu0 0.0
  %2659 = vmatprep.subr.mxu0 0.0
  %2660 = vmatpush2.msra.mxu0 0.0
  %2661 = vmatprep.subr.mxu0 0.0
  %2662 = vmatpush2.msra.mxu0 0.0
  %2663 = vmatprep.subr.mxu0 0.0
  %2664 = vmatpush2.msra.mxu0 0.0
  %2665 = vmatprep.subr.mxu0 0.0
  %2666 = vmatpush2.msra.mxu0 0.0
  %2667 = vmatprep.subr.mxu0 0.0
  %2668 = vmatpush2.msra.mxu0 0.0
  %2669 = vmatprep.subr.mxu0 0.0
  %2670 = vmatpush2.msra.mxu0 0.0
  %2671 = vmatprep.subr.mxu0 0.0
  %2672 = vmatpush2.msra.mxu0 0.0
  %2673 = vmatprep.subr.mxu0 0.0
  %2674 = vmatpush2.msra.mxu0 0.0
  %2675 = vmatprep.subr.mxu0 0.0
  %2676 = vmatpush2.msra.mxu0 0.0
  %2677 = vmatprep.mubr.f32.mxu0 0.0
  %2678 = vmatmul.mubr.f32.gmra.mxu0 %v2611
  %v2679 = vpop.f32.mrf.mxu0
  %v2680 = vadd.f32 0.0, %v2679
  %v2681 = vpop.f32.mrf.mxu0
  %2682 = vdwg.mxu0
  %2683 = vrot.lane.b32.xlu0 %v1609, 80
  %v2684 = vpop.permute.xlu0 %2683
  %2685 = vrot.lane.b32.xlu0 %v1614, 80
  %v2686 = vpop.permute.xlu0 %2685
  %v2690 = vsel %vm2278, %v2361, 0
  %2692 = vmatprep.subr.mxu0 0.0
  %2693 = vmatpush1.msra.mxu0 0.0
  %2694 = vmatprep.subr.mxu0 0.0
  %2695 = vmatpush1.msra.mxu0 0.0
  %2696 = vmatprep.subr.mxu0 0.0
  %2697 = vmatpush1.msra.mxu0 0.0
  %2698 = vmatprep.subr.mxu0 0.0
  %2699 = vmatpush1.msra.mxu0 0.0
  %2700 = vmatprep.subr.mxu0 0.0
  %2701 = vmatpush1.msra.mxu0 0.0
  %2702 = vmatprep.subr.mxu0 0.0
  %2703 = vmatpush1.msra.mxu0 0.0
  %2704 = vmatprep.subr.mxu0 0.0
  %2705 = vmatpush1.msra.mxu0 0.0
  %2706 = vmatprep.subr.mxu0 0.0
  %2707 = vmatpush1.msra.mxu0 0.0
  %2708 = vmatprep.subr.mxu0 0.0
  %2709 = vmatpush1.msra.mxu0 0.0
  %2710 = vmatprep.subr.mxu0 0.0
  %2711 = vmatpush1.msra.mxu0 0.0
  %2712 = vmatprep.subr.mxu0 0.0
  %2713 = vmatpush1.msra.mxu0 0.0
  %2714 = vmatprep.subr.mxu0 0.0
  %2715 = vmatpush1.msra.mxu0 0.0
  %2716 = vmatprep.subr.mxu0 0.0
  %2717 = vmatpush1.msra.mxu0 0.0
  %2718 = vmatprep.subr.mxu0 0.0
  %2719 = vmatpush1.msra.mxu0 0.0
  %2720 = vmatprep.subr.mxu0 0.0
  %2721 = vmatpush1.msra.mxu0 %v2686
  %2722 = vmatprep.subr.mxu0 0.0
  %2723 = vmatpush1.msra.mxu0 %v2684
  %2724 = vmatprep.subr.mxu0 0.0
  %2725 = vmatpush2.msra.mxu0 0.0
  %2726 = vmatprep.subr.mxu0 0.0
  %2727 = vmatpush2.msra.mxu0 0.0
  %2728 = vmatprep.subr.mxu0 0.0
  %2729 = vmatpush2.msra.mxu0 0.0
  %2730 = vmatprep.subr.mxu0 0.0
  %2731 = vmatpush2.msra.mxu0 0.0
  %2732 = vmatprep.subr.mxu0 0.0
  %2733 = vmatpush2.msra.mxu0 0.0
  %2734 = vmatprep.subr.mxu0 0.0
  %2735 = vmatpush2.msra.mxu0 0.0
  %2736 = vmatprep.subr.mxu0 0.0
  %2737 = vmatpush2.msra.mxu0 0.0
  %2738 = vmatprep.subr.mxu0 0.0
  %2739 = vmatpush2.msra.mxu0 0.0
  %2740 = vmatprep.subr.mxu0 0.0
  %2741 = vmatpush2.msra.mxu0 0.0
  %2742 = vmatprep.subr.mxu0 0.0
  %2743 = vmatpush2.msra.mxu0 0.0
  %2744 = vmatprep.subr.mxu0 0.0
  %2745 = vmatpush2.msra.mxu0 0.0
  %2746 = vmatprep.subr.mxu0 0.0
  %2747 = vmatpush2.msra.mxu0 0.0
  %2748 = vmatprep.subr.mxu0 0.0
  %2749 = vmatpush2.msra.mxu0 0.0
  %2750 = vmatprep.subr.mxu0 0.0
  %2751 = vmatpush2.msra.mxu0 0.0
  %2752 = vmatprep.subr.mxu0 0.0
  %2753 = vmatpush2.msra.mxu0 0.0
  %2754 = vmatprep.subr.mxu0 0.0
  %2755 = vmatpush2.msra.mxu0 0.0
  %2756 = vmatprep.mubr.f32.mxu0 0.0
  %2757 = vmatmul.mubr.f32.gmra.mxu0 %v2690
  %v2758 = vpop.f32.mrf.mxu0
  %v2759 = vadd.f32 0.0, %v2758
  %v2760 = vpop.f32.mrf.mxu0
  %2761 = vdwg.mxu0
  %2762 = vrot.lane.b32.xlu0 %v1619, 80
  %v2763 = vpop.permute.xlu0 %2762
  %2764 = vrot.lane.b32.xlu0 %v1624, 80
  %v2765 = vpop.permute.xlu0 %2764
  %v2769 = vsel %vm2278, %v2365, 0
  %2771 = vmatprep.subr.mxu0 0.0
  %2772 = vmatpush1.msra.mxu0 0.0
  %2773 = vmatprep.subr.mxu0 0.0
  %2774 = vmatpush1.msra.mxu0 0.0
  %2775 = vmatprep.subr.mxu0 0.0
  %2776 = vmatpush1.msra.mxu0 0.0
  %2777 = vmatprep.subr.mxu0 0.0
  %2778 = vmatpush1.msra.mxu0 0.0
  %2779 = vmatprep.subr.mxu0 0.0
  %2780 = vmatpush1.msra.mxu0 0.0
  %2781 = vmatprep.subr.mxu0 0.0
  %2782 = vmatpush1.msra.mxu0 0.0
  %2783 = vmatprep.subr.mxu0 0.0
  %2784 = vmatpush1.msra.mxu0 0.0
  %2785 = vmatprep.subr.mxu0 0.0
  %2786 = vmatpush1.msra.mxu0 0.0
  %2787 = vmatprep.subr.mxu0 0.0
  %2788 = vmatpush1.msra.mxu0 0.0
  %2789 = vmatprep.subr.mxu0 0.0
  %2790 = vmatpush1.msra.mxu0 0.0
  %2791 = vmatprep.subr.mxu0 0.0
  %2792 = vmatpush1.msra.mxu0 0.0
  %2793 = vmatprep.subr.mxu0 0.0
  %2794 = vmatpush1.msra.mxu0 0.0
  %2795 = vmatprep.subr.mxu0 0.0
  %2796 = vmatpush1.msra.mxu0 0.0
  %2797 = vmatprep.subr.mxu0 0.0
  %2798 = vmatpush1.msra.mxu0 0.0
  %2799 = vmatprep.subr.mxu0 0.0
  %2800 = vmatpush1.msra.mxu0 %v2765
  %2801 = vmatprep.subr.mxu0 0.0
  %2802 = vmatpush1.msra.mxu0 %v2763
  %2803 = vmatprep.subr.mxu0 0.0
  %2804 = vmatpush2.msra.mxu0 0.0
  %2805 = vmatprep.subr.mxu0 0.0
  %2806 = vmatpush2.msra.mxu0 0.0
  %2807 = vmatprep.subr.mxu0 0.0
  %2808 = vmatpush2.msra.mxu0 0.0
  %2809 = vmatprep.subr.mxu0 0.0
  %2810 = vmatpush2.msra.mxu0 0.0
  %2811 = vmatprep.subr.mxu0 0.0
  %2812 = vmatpush2.msra.mxu0 0.0
  %2813 = vmatprep.subr.mxu0 0.0
  %2814 = vmatpush2.msra.mxu0 0.0
  %2815 = vmatprep.subr.mxu0 0.0
  %2816 = vmatpush2.msra.mxu0 0.0
  %2817 = vmatprep.subr.mxu0 0.0
  %2818 = vmatpush2.msra.mxu0 0.0
  %2819 = vmatprep.subr.mxu0 0.0
  %2820 = vmatpush2.msra.mxu0 0.0
  %2821 = vmatprep.subr.mxu0 0.0
  %2822 = vmatpush2.msra.mxu0 0.0
  %2823 = vmatprep.subr.mxu0 0.0
  %2824 = vmatpush2.msra.mxu0 0.0
  %2825 = vmatprep.subr.mxu0 0.0
  %2826 = vmatpush2.msra.mxu0 0.0
  %2827 = vmatprep.subr.mxu0 0.0
  %2828 = vmatpush2.msra.mxu0 0.0
  %2829 = vmatprep.subr.mxu0 0.0
  %2830 = vmatpush2.msra.mxu0 0.0
  %2831 = vmatprep.subr.mxu0 0.0
  %2832 = vmatpush2.msra.mxu0 0.0
  %2833 = vmatprep.subr.mxu0 0.0
  %2834 = vmatpush2.msra.mxu0 0.0
  %2835 = vmatprep.mubr.f32.mxu0 0.0
  %2836 = vmatmul.mubr.f32.gmra.mxu0 %v2769
  %v2837 = vpop.f32.mrf.mxu0
  %v2838 = vadd.f32 0.0, %v2837
  %v2839 = vpop.f32.mrf.mxu0
  %2840 = vdwg.mxu0
  %2841 = vrot.lane.b32.xlu0 %v1609, 72
  %v2842 = vpop.permute.xlu0 %2841
  %2843 = vrot.lane.b32.xlu0 %v1614, 72
  %v2844 = vpop.permute.xlu0 %2843
  %v2848 = vsel %vm2278, %v2362, 0
  %2850 = vmatprep.subr.mxu0 0.0
  %2851 = vmatpush1.msra.mxu0 0.0
  %2852 = vmatprep.subr.mxu0 0.0
  %2853 = vmatpush1.msra.mxu0 0.0
  %2854 = vmatprep.subr.mxu0 0.0
  %2855 = vmatpush1.msra.mxu0 0.0
  %2856 = vmatprep.subr.mxu0 0.0
  %2857 = vmatpush1.msra.mxu0 0.0
  %2858 = vmatprep.subr.mxu0 0.0
  %2859 = vmatpush1.msra.mxu0 0.0
  %2860 = vmatprep.subr.mxu0 0.0
  %2861 = vmatpush1.msra.mxu0 0.0
  %2862 = vmatprep.subr.mxu0 0.0
  %2863 = vmatpush1.msra.mxu0 0.0
  %2864 = vmatprep.subr.mxu0 0.0
  %2865 = vmatpush1.msra.mxu0 0.0
  %2866 = vmatprep.subr.mxu0 0.0
  %2867 = vmatpush1.msra.mxu0 0.0
  %2868 = vmatprep.subr.mxu0 0.0
  %2869 = vmatpush1.msra.mxu0 0.0
  %2870 = vmatprep.subr.mxu0 0.0
  %2871 = vmatpush1.msra.mxu0 0.0
  %2872 = vmatprep.subr.mxu0 0.0
  %2873 = vmatpush1.msra.mxu0 0.0
  %2874 = vmatprep.subr.mxu0 0.0
  %2875 = vmatpush1.msra.mxu0 0.0
  %2876 = vmatprep.subr.mxu0 0.0
  %2877 = vmatpush1.msra.mxu0 0.0
  %2878 = vmatprep.subr.mxu0 0.0
  %2879 = vmatpush1.msra.mxu0 %v2844
  %2880 = vmatprep.subr.mxu0 0.0
  %2881 = vmatpush1.msra.mxu0 %v2842
  %2882 = vmatprep.subr.mxu0 0.0
  %2883 = vmatpush2.msra.mxu0 0.0
  %2884 = vmatprep.subr.mxu0 0.0
  %2885 = vmatpush2.msra.mxu0 0.0
  %2886 = vmatprep.subr.mxu0 0.0
  %2887 = vmatpush2.msra.mxu0 0.0
  %2888 = vmatprep.subr.mxu0 0.0
  %2889 = vmatpush2.msra.mxu0 0.0
  %2890 = vmatprep.subr.mxu0 0.0
  %2891 = vmatpush2.msra.mxu0 0.0
  %2892 = vmatprep.subr.mxu0 0.0
  %2893 = vmatpush2.msra.mxu0 0.0
  %2894 = vmatprep.subr.mxu0 0.0
  %2895 = vmatpush2.msra.mxu0 0.0
  %2896 = vmatprep.subr.mxu0 0.0
  %2897 = vmatpush2.msra.mxu0 0.0
  %2898 = vmatprep.subr.mxu0 0.0
  %2899 = vmatpush2.msra.mxu0 0.0
  %2900 = vmatprep.subr.mxu0 0.0
  %2901 = vmatpush2.msra.mxu0 0.0
  %2902 = vmatprep.subr.mxu0 0.0
  %2903 = vmatpush2.msra.mxu0 0.0
  %2904 = vmatprep.subr.mxu0 0.0
  %2905 = vmatpush2.msra.mxu0 0.0
  %2906 = vmatprep.subr.mxu0 0.0
  %2907 = vmatpush2.msra.mxu0 0.0
  %2908 = vmatprep.subr.mxu0 0.0
  %2909 = vmatpush2.msra.mxu0 0.0
  %2910 = vmatprep.subr.mxu0 0.0
  %2911 = vmatpush2.msra.mxu0 0.0
  %2912 = vmatprep.subr.mxu0 0.0
  %2913 = vmatpush2.msra.mxu0 0.0
  %2914 = vmatprep.mubr.f32.mxu0 0.0
  %2915 = vmatmul.mubr.f32.gmra.mxu0 %v2848
  %v2916 = vpop.f32.mrf.mxu0
  %v2917 = vadd.f32 0.0, %v2916
  %v2918 = vpop.f32.mrf.mxu0
  %2919 = vdwg.mxu0
  %2920 = vrot.lane.b32.xlu0 %v1619, 72
  %v2921 = vpop.permute.xlu0 %2920
  %2922 = vrot.lane.b32.xlu0 %v1624, 72
  %v2923 = vpop.permute.xlu0 %2922
  %v2927 = vsel %vm2278, %v2366, 0
  %2929 = vmatprep.subr.mxu0 0.0
  %2930 = vmatpush1.msra.mxu0 0.0
  %2931 = vmatprep.subr.mxu0 0.0
  %2932 = vmatpush1.msra.mxu0 0.0
  %2933 = vmatprep.subr.mxu0 0.0
  %2934 = vmatpush1.msra.mxu0 0.0
  %2935 = vmatprep.subr.mxu0 0.0
  %2936 = vmatpush1.msra.mxu0 0.0
  %2937 = vmatprep.subr.mxu0 0.0
  %2938 = vmatpush1.msra.mxu0 0.0
  %2939 = vmatprep.subr.mxu0 0.0
  %2940 = vmatpush1.msra.mxu0 0.0
  %2941 = vmatprep.subr.mxu0 0.0
  %2942 = vmatpush1.msra.mxu0 0.0
  %2943 = vmatprep.subr.mxu0 0.0
  %2944 = vmatpush1.msra.mxu0 0.0
  %2945 = vmatprep.subr.mxu0 0.0
  %2946 = vmatpush1.msra.mxu0 0.0
  %2947 = vmatprep.subr.mxu0 0.0
  %2948 = vmatpush1.msra.mxu0 0.0
  %2949 = vmatprep.subr.mxu0 0.0
  %2950 = vmatpush1.msra.mxu0 0.0
  %2951 = vmatprep.subr.mxu0 0.0
  %2952 = vmatpush1.msra.mxu0 0.0
  %2953 = vmatprep.subr.mxu0 0.0
  %2954 = vmatpush1.msra.mxu0 0.0
  %2955 = vmatprep.subr.mxu0 0.0
  %2956 = vmatpush1.msra.mxu0 0.0
  %2957 = vmatprep.subr.mxu0 0.0
  %2958 = vmatpush1.msra.mxu0 %v2923
  %2959 = vmatprep.subr.mxu0 0.0
  %2960 = vmatpush1.msra.mxu0 %v2921
  %2961 = vmatprep.subr.mxu0 0.0
  %2962 = vmatpush2.msra.mxu0 0.0
  %2963 = vmatprep.subr.mxu0 0.0
  %2964 = vmatpush2.msra.mxu0 0.0
  %2965 = vmatprep.subr.mxu0 0.0
  %2966 = vmatpush2.msra.mxu0 0.0
  %2967 = vmatprep.subr.mxu0 0.0
  %2968 = vmatpush2.msra.mxu0 0.0
  %2969 = vmatprep.subr.mxu0 0.0
  %2970 = vmatpush2.msra.mxu0 0.0
  %2971 = vmatprep.subr.mxu0 0.0
  %2972 = vmatpush2.msra.mxu0 0.0
  %2973 = vmatprep.subr.mxu0 0.0
  %2974 = vmatpush2.msra.mxu0 0.0
  %2975 = vmatprep.subr.mxu0 0.0
  %2976 = vmatpush2.msra.mxu0 0.0
  %2977 = vmatprep.subr.mxu0 0.0
  %2978 = vmatpush2.msra.mxu0 0.0
  %2979 = vmatprep.subr.mxu0 0.0
  %2980 = vmatpush2.msra.mxu0 0.0
  %2981 = vmatprep.subr.mxu0 0.0
  %2982 = vmatpush2.msra.mxu0 0.0
  %2983 = vmatprep.subr.mxu0 0.0
  %2984 = vmatpush2.msra.mxu0 0.0
  %2985 = vmatprep.subr.mxu0 0.0
  %2986 = vmatpush2.msra.mxu0 0.0
  %2987 = vmatprep.subr.mxu0 0.0
  %2988 = vmatpush2.msra.mxu0 0.0
  %2989 = vmatprep.subr.mxu0 0.0
  %2990 = vmatpush2.msra.mxu0 0.0
  %2991 = vmatprep.subr.mxu0 0.0
  %2992 = vmatpush2.msra.mxu0 0.0
  %2993 = vmatprep.mubr.f32.mxu0 0.0
  %2994 = vmatmul.mubr.f32.gmra.mxu0 %v2927
  %v2995 = vpop.f32.mrf.mxu0
  %v2996 = vadd.f32 0.0, %v2995
  %v2997 = vpop.f32.mrf.mxu0
  %2998 = vdwg.mxu0
  %3001 = vrot.lane.b32.xlu0 %v2601, 8
  %v3002 = vpop.permute.xlu0 %3001
  %3003 = vrot.lane.b32.xlu0 %v2680, 8
  %v3004 = vpop.permute.xlu0 %3003
  %3009 = vrot.lane.b32.xlu0 %v2759, 16
  %v3010 = vpop.permute.xlu0 %3009
  %3011 = vrot.lane.b32.xlu0 %v2838, 16
  %v3012 = vpop.permute.xlu0 %3011
  %3017 = vrot.lane.b32.xlu0 %v2917, 24
  %v3018 = vpop.permute.xlu0 %3017
  %3019 = vrot.lane.b32.xlu0 %v2996, 24
  %v3020 = vpop.permute.xlu0 %3019
  %v3023 = vsel %vm1627, %v2443, %v3002
  %v3024 = vsel %vm1627, %v2522, %v3004
  %v3025 = vsel %vm2278, %v3023, %v3010
  %v3026 = vsel %vm2278, %v3024, %v3012
  %vm3027 = vcmask 195584
  %v3028 = vsel %vm3027, %v3025, %v3018
  %v3029 = vsel %vm3027, %v3026, %v3020
  %v3030 = vld [vmem:[%s5 + $0x58] sm:$0xff]
  %v3031 = vld [vmem:[%s5 + $0x60] sm:$0xff]
  %v3032 = vld [vmem:[%s5 + $0x68] sm:$0xff]
  %v3033 = vld [vmem:[%s5 + $0x70] sm:$0xff]
  %v3034 = vld [vmem:[%s5 + $0xa] sm:$0x1]
  %v3035 = vlaneseq
  %v3036 = vshrl.u32 %v3035, 7
  %v3037 = vsub.s32 0, %v3036
  %v3038 = vrot.slane %v3034, %v3037
  %v3040 = vsel %vm805, %v3028, 0
  %v3043 = vsel %vm805, %v3029, 0
  %3045 = vmatprep.subr.mxu0 0.0
  %3046 = vmatpush1.msra.mxu0 0.0
  %3047 = vmatprep.subr.mxu0 0.0
  %3048 = vmatpush1.msra.mxu0 0.0
  %3049 = vmatprep.subr.mxu0 0.0
  %3050 = vmatpush1.msra.mxu0 0.0
  %3051 = vmatprep.subr.mxu0 0.0
  %3052 = vmatpush1.msra.mxu0 0.0
  %3053 = vmatprep.subr.mxu0 0.0
  %3054 = vmatpush1.msra.mxu0 0.0
  %3055 = vmatprep.subr.mxu0 0.0
  %3056 = vmatpush1.msra.mxu0 0.0
  %3057 = vmatprep.subr.mxu0 0.0
  %3058 = vmatpush1.msra.mxu0 0.0
  %3059 = vmatprep.subr.mxu0 0.0
  %3060 = vmatpush1.msra.mxu0 0.0
  %3061 = vmatprep.subr.mxu0 0.0
  %3062 = vmatpush1.msra.mxu0 0.0
  %3063 = vmatprep.subr.mxu0 0.0
  %3064 = vmatpush1.msra.mxu0 0.0
  %3065 = vmatprep.subr.mxu0 0.0
  %3066 = vmatpush1.msra.mxu0 0.0
  %3067 = vmatprep.subr.mxu0 0.0
  %3068 = vmatpush1.msra.mxu0 0.0
  %3069 = vmatprep.subr.mxu0 0.0
  %3070 = vmatpush1.msra.mxu0 %v3033
  %3071 = vmatprep.subr.mxu0 0.0
  %3072 = vmatpush1.msra.mxu0 %v3032
  %3073 = vmatprep.subr.mxu0 0.0
  %3074 = vmatpush1.msra.mxu0 %v3031
  %3075 = vmatprep.subr.mxu0 0.0
  %3076 = vmatpush1.msra.mxu0 %v3030
  %3077 = vmatprep.subr.mxu0 0.0
  %3078 = vmatpush2.msra.mxu0 0.0
  %3079 = vmatprep.subr.mxu0 0.0
  %3080 = vmatpush2.msra.mxu0 0.0
  %3081 = vmatprep.subr.mxu0 0.0
  %3082 = vmatpush2.msra.mxu0 0.0
  %3083 = vmatprep.subr.mxu0 0.0
  %3084 = vmatpush2.msra.mxu0 0.0
  %3085 = vmatprep.subr.mxu0 0.0
  %3086 = vmatpush2.msra.mxu0 0.0
  %3087 = vmatprep.subr.mxu0 0.0
  %3088 = vmatpush2.msra.mxu0 0.0
  %3089 = vmatprep.subr.mxu0 0.0
  %3090 = vmatpush2.msra.mxu0 0.0
  %3091 = vmatprep.subr.mxu0 0.0
  %3092 = vmatpush2.msra.mxu0 0.0
  %3093 = vmatprep.subr.mxu0 0.0
  %3094 = vmatpush2.msra.mxu0 0.0
  %3095 = vmatprep.subr.mxu0 0.0
  %3096 = vmatpush2.msra.mxu0 0.0
  %3097 = vmatprep.subr.mxu0 0.0
  %3098 = vmatpush2.msra.mxu0 0.0
  %3099 = vmatprep.subr.mxu0 0.0
  %3100 = vmatpush2.msra.mxu0 0.0
  %3101 = vmatprep.subr.mxu0 0.0
  %3102 = vmatpush2.msra.mxu0 0.0
  %3103 = vmatprep.subr.mxu0 0.0
  %3104 = vmatpush2.msra.mxu0 0.0
  %3105 = vmatprep.subr.mxu0 0.0
  %3106 = vmatpush2.msra.mxu0 0.0
  %3107 = vmatprep.subr.mxu0 0.0
  %3108 = vmatpush2.msra.mxu0 0.0
  %3109 = vmatprep.mubr.f32.mxu0 0.0
  %3110 = vmatmul.mubr.f32.gmra.mxu0 %v3040
  %v3111 = vpop.f32.mrf.mxu0
  %v3112 = vadd.f32 %v3038, %v3111
  %v3113 = vpop.f32.mrf.mxu0
  %3114 = vmatprep.mubr.f32.mxu0 0.0
  %3115 = vmatmul.mubr.f32.gmra.mxu0 %v3043
  %v3116 = vpop.f32.mrf.mxu0
  %v3117 = vadd.f32 %v3038, %v3116
  %v3118 = vpop.f32.mrf.mxu0
  %3119 = vdwg.mxu0
  %v3120 = vadd.f32 %v3112, %v1425
  %v3121 = vadd.f32 %v3117, %v1426
  %v3122 = vsel %vm805, %v3120, 0.0
  %3123 = vadd.xlane.f32.xlu0 %v3122
  %v3124 = vpop.xlane.xlu0 %3123
  %v3125 = vsel %vm805, %v3121, 0.0
  %3126 = vadd.xlane.f32.xlu0 %v3125
  %v3127 = vpop.xlane.xlu0 %3126
  %v3128 = vmul.f32 %v3124, %v818
  %v3129 = vmul.f32 %v3127, %v818
  %v3130 = vsub.f32 %v3120, %v3128
  %v3131 = vsub.f32 %v3121, %v3129
  %v3132 = vmul.f32 %v3130, %v3130
  %v3133 = vmul.f32 %v3131, %v3131
  %v3134 = vsel %vm805, %v3132, 0.0
  %3135 = vadd.xlane.f32.xlu0 %v3134
  %v3136 = vpop.xlane.xlu0 %3135
  %v3137 = vsel %vm805, %v3133, 0.0
  %3138 = vadd.xlane.f32.xlu0 %v3137
  %v3139 = vpop.xlane.xlu0 %3138
  %v3140 = vmul.f32 %v3136, %v818
  %v3141 = vmul.f32 %v3139, %v818
  %v3142 = vadd.f32 %v3140, 1e-05
  %v3143 = vadd.f32 %v3141, 1e-05
  %v3144 = vrsqrt.pop %v3142
  %v3145 = vrsqrt.pop %v3143
  %v3146 = vmul.f32 %v3130, %v3144
  %v3147 = vmul.f32 %v3131, %v3145
  %v3148 = vlaneseq
  %v3149 = vshrl.u32 %v3148, 7
  %v3150 = vsub.s32 0, %v3149
  %v3151 = vrot.slane %v1427, %v3150
  %v3152 = vmul.f32 %v3146, %v3151
  %v3153 = vmul.f32 %v3147, %v3151
  %v3154 = vlaneseq
  %v3155 = vshrl.u32 %v3154, 7
  %v3156 = vsub.s32 0, %v3155
  %v3157 = vrot.slane %v1428, %v3156
  %v3158 = vadd.f32 %v3152, %v3157
  %v3159 = vadd.f32 %v3153, %v3157
  %v3160 = vld [vmem:[%s5 + $0x78] sm:$0xff]
  %v3161 = vld [vmem:[%s5 + $0x80] sm:$0xff]
  %v3162 = vld [vmem:[%s5 + $0x88] sm:$0xff]
  %v3163 = vld [vmem:[%s5 + $0x90] sm:$0xff]
  %v3164 = vld [vmem:[%s5 + $0xb] sm:$0x1]
  %v3165 = vlaneseq
  %v3166 = vshrl.u32 %v3165, 7
  %v3167 = vsub.s32 0, %v3166
  %v3168 = vrot.slane %v3164, %v3167
  %v3170 = vsel %vm805, %v3158, 0
  %v3173 = vsel %vm805, %v3159, 0
  %3175 = vmatprep.subr.mxu0 0.0
  %3176 = vmatpush1.msra.mxu0 0.0
  %3177 = vmatprep.subr.mxu0 0.0
  %3178 = vmatpush1.msra.mxu0 0.0
  %3179 = vmatprep.subr.mxu0 0.0
  %3180 = vmatpush1.msra.mxu0 0.0
  %3181 = vmatprep.subr.mxu0 0.0
  %3182 = vmatpush1.msra.mxu0 0.0
  %3183 = vmatprep.subr.mxu0 0.0
  %3184 = vmatpush1.msra.mxu0 0.0
  %3185 = vmatprep.subr.mxu0 0.0
  %3186 = vmatpush1.msra.mxu0 0.0
  %3187 = vmatprep.subr.mxu0 0.0
  %3188 = vmatpush1.msra.mxu0 0.0
  %3189 = vmatprep.subr.mxu0 0.0
  %3190 = vmatpush1.msra.mxu0 0.0
  %3191 = vmatprep.subr.mxu0 0.0
  %3192 = vmatpush1.msra.mxu0 0.0
  %3193 = vmatprep.subr.mxu0 0.0
  %3194 = vmatpush1.msra.mxu0 0.0
  %3195 = vmatprep.subr.mxu0 0.0
  %3196 = vmatpush1.msra.mxu0 0.0
  %3197 = vmatprep.subr.mxu0 0.0
  %3198 = vmatpush1.msra.mxu0 0.0
  %3199 = vmatprep.subr.mxu0 0.0
  %3200 = vmatpush1.msra.mxu0 %v3163
  %3201 = vmatprep.subr.mxu0 0.0
  %3202 = vmatpush1.msra.mxu0 %v3162
  %3203 = vmatprep.subr.mxu0 0.0
  %3204 = vmatpush1.msra.mxu0 %v3161
  %3205 = vmatprep.subr.mxu0 0.0
  %3206 = vmatpush1.msra.mxu0 %v3160
  %3207 = vmatprep.subr.mxu0 0.0
  %3208 = vmatpush2.msra.mxu0 0.0
  %3209 = vmatprep.subr.mxu0 0.0
  %3210 = vmatpush2.msra.mxu0 0.0
  %3211 = vmatprep.subr.mxu0 0.0
  %3212 = vmatpush2.msra.mxu0 0.0
  %3213 = vmatprep.subr.mxu0 0.0
  %3214 = vmatpush2.msra.mxu0 0.0
  %3215 = vmatprep.subr.mxu0 0.0
  %3216 = vmatpush2.msra.mxu0 0.0
  %3217 = vmatprep.subr.mxu0 0.0
  %3218 = vmatpush2.msra.mxu0 0.0
  %3219 = vmatprep.subr.mxu0 0.0
  %3220 = vmatpush2.msra.mxu0 0.0
  %3221 = vmatprep.subr.mxu0 0.0
  %3222 = vmatpush2.msra.mxu0 0.0
  %3223 = vmatprep.subr.mxu0 0.0
  %3224 = vmatpush2.msra.mxu0 0.0
  %3225 = vmatprep.subr.mxu0 0.0
  %3226 = vmatpush2.msra.mxu0 0.0
  %3227 = vmatprep.subr.mxu0 0.0
  %3228 = vmatpush2.msra.mxu0 0.0
  %3229 = vmatprep.subr.mxu0 0.0
  %3230 = vmatpush2.msra.mxu0 0.0
  %3231 = vmatprep.subr.mxu0 0.0
  %3232 = vmatpush2.msra.mxu0 0.0
  %3233 = vmatprep.subr.mxu0 0.0
  %3234 = vmatpush2.msra.mxu0 0.0
  %3235 = vmatprep.subr.mxu0 0.0
  %3236 = vmatpush2.msra.mxu0 0.0
  %3237 = vmatprep.subr.mxu0 0.0
  %3238 = vmatpush2.msra.mxu0 0.0
  %3239 = vmatprep.mubr.f32.mxu0 0.0
  %3240 = vmatmul.mubr.f32.gmra.mxu0 %v3170
  %v3241 = vpop.f32.mrf.mxu0
  %v3242 = vadd.f32 %v3168, %v3241
  %v3243 = vpop.f32.mrf.mxu0
  %3244 = vmatprep.mubr.f32.mxu0 0.0
  %3245 = vmatmul.mubr.f32.gmra.mxu0 %v3173
  %v3246 = vpop.f32.mrf.mxu0
  %v3247 = vadd.f32 %v3168, %v3246
  %v3248 = vpop.f32.mrf.mxu0
  %3249 = vdwg.mxu0
  %v3250 = vmul.f32 %v3242, 0.35355338
  %v3251 = vmul.f32 %v3247, 0.35355338
  %v3252 = vld [vmem:[%s5 + $0x98] sm:$0xff]
  %v3253 = vld [vmem:[%s5 + $0xa0] sm:$0xff]
  %v3254 = vld [vmem:[%s5 + $0xa8] sm:$0xff]
  %v3255 = vld [vmem:[%s5 + $0xb0] sm:$0xff]
  %v3256 = vld [vmem:[%s5 + $0xc] sm:$0x1]
  %v3257 = vlaneseq
  %v3258 = vshrl.u32 %v3257, 7
  %v3259 = vsub.s32 0, %v3258
  %v3260 = vrot.slane %v3256, %v3259
  %3261 = vmatprep.subr.mxu0 0.0
  %3262 = vmatpush1.msra.mxu0 0.0
  %3263 = vmatprep.subr.mxu0 0.0
  %3264 = vmatpush1.msra.mxu0 0.0
  %3265 = vmatprep.subr.mxu0 0.0
  %3266 = vmatpush1.msra.mxu0 0.0
  %3267 = vmatprep.subr.mxu0 0.0
  %3268 = vmatpush1.msra.mxu0 0.0
  %3269 = vmatprep.subr.mxu0 0.0
  %3270 = vmatpush1.msra.mxu0 0.0
  %3271 = vmatprep.subr.mxu0 0.0
  %3272 = vmatpush1.msra.mxu0 0.0
  %3273 = vmatprep.subr.mxu0 0.0
  %3274 = vmatpush1.msra.mxu0 0.0
  %3275 = vmatprep.subr.mxu0 0.0
  %3276 = vmatpush1.msra.mxu0 0.0
  %3277 = vmatprep.subr.mxu0 0.0
  %3278 = vmatpush1.msra.mxu0 0.0
  %3279 = vmatprep.subr.mxu0 0.0
  %3280 = vmatpush1.msra.mxu0 0.0
  %3281 = vmatprep.subr.mxu0 0.0
  %3282 = vmatpush1.msra.mxu0 0.0
  %3283 = vmatprep.subr.mxu0 0.0
  %3284 = vmatpush1.msra.mxu0 0.0
  %3285 = vmatprep.subr.mxu0 0.0
  %3286 = vmatpush1.msra.mxu0 %v3255
  %3287 = vmatprep.subr.mxu0 0.0
  %3288 = vmatpush1.msra.mxu0 %v3254
  %3289 = vmatprep.subr.mxu0 0.0
  %3290 = vmatpush1.msra.mxu0 %v3253
  %3291 = vmatprep.subr.mxu0 0.0
  %3292 = vmatpush1.msra.mxu0 %v3252
  %3293 = vmatprep.subr.mxu0 0.0
  %3294 = vmatpush2.msra.mxu0 0.0
  %3295 = vmatprep.subr.mxu0 0.0
  %3296 = vmatpush2.msra.mxu0 0.0
  %3297 = vmatprep.subr.mxu0 0.0
  %3298 = vmatpush2.msra.mxu0 0.0
  %3299 = vmatprep.subr.mxu0 0.0
  %3300 = vmatpush2.msra.mxu0 0.0
  %3301 = vmatprep.subr.mxu0 0.0
  %3302 = vmatpush2.msra.mxu0 0.0
  %3303 = vmatprep.subr.mxu0 0.0
  %3304 = vmatpush2.msra.mxu0 0.0
  %3305 = vmatprep.subr.mxu0 0.0
  %3306 = vmatpush2.msra.mxu0 0.0
  %3307 = vmatprep.subr.mxu0 0.0
  %3308 = vmatpush2.msra.mxu0 0.0
  %3309 = vmatprep.subr.mxu0 0.0
  %3310 = vmatpush2.msra.mxu0 0.0
  %3311 = vmatprep.subr.mxu0 0.0
  %3312 = vmatpush2.msra.mxu0 0.0
  %3313 = vmatprep.subr.mxu0 0.0
  %3314 = vmatpush2.msra.mxu0 0.0
  %3315 = vmatprep.subr.mxu0 0.0
  %3316 = vmatpush2.msra.mxu0 0.0
  %3317 = vmatprep.subr.mxu0 0.0
  %3318 = vmatpush2.msra.mxu0 0.0
  %3319 = vmatprep.subr.mxu0 0.0
  %3320 = vmatpush2.msra.mxu0 0.0
  %3321 = vmatprep.subr.mxu0 0.0
  %3322 = vmatpush2.msra.mxu0 0.0
  %3323 = vmatprep.subr.mxu0 0.0
  %3324 = vmatpush2.msra.mxu0 0.0
  %3325 = vmatprep.mubr.f32.mxu0 0.0
  %3326 = vmatmul.mubr.f32.gmra.mxu0 %v1531
  %v3327 = vpop.f32.mrf.mxu0
  %v3328 = vadd.f32 %v3260, %v3327
  %v3329 = vpop.f32.mrf.mxu0
  %3330 = vmatprep.mubr.f32.mxu0 0.0
  %3331 = vmatmul.mubr.f32.gmra.mxu0 %v1534
  %v3332 = vpop.f32.mrf.mxu0
  %v3333 = vadd.f32 %v3260, %v3332
  %v3334 = vpop.f32.mrf.mxu0
  %3335 = vmatprep.mubr.f32.mxu0 0.0
  %3336 = vmatmul.mubr.f32.gmra.mxu0 %v1537
  %v3337 = vpop.f32.mrf.mxu0
  %v3338 = vadd.f32 %v3260, %v3337
  %v3339 = vpop.f32.mrf.mxu0
  %3340 = vmatprep.mubr.f32.mxu0 0.0
  %3341 = vmatmul.mubr.f32.gmra.mxu0 %v1540
  %v3342 = vpop.f32.mrf.mxu0
  %v3343 = vadd.f32 %v3260, %v3342
  %v3344 = vpop.f32.mrf.mxu0
  %3345 = vdwg.mxu0
  %v3347 = vsel %vm1627, %v3250, 0
  %v3350 = vsel %vm1627, %v3328, 0
  %v3353 = vsel %vm1627, %v3333, 0
  %3355 = vmatprep.subr.mxu0 0.0
  %3356 = vmatpush1.xpose.msra.mxu0 0.0
  %3357 = vmatprep.subr.mxu0 0.0
  %3358 = vmatpush1.xpose.msra.mxu0 0.0
  %3359 = vmatprep.subr.mxu0 0.0
  %3360 = vmatpush1.xpose.msra.mxu0 0.0
  %3361 = vmatprep.subr.mxu0 0.0
  %3362 = vmatpush1.xpose.msra.mxu0 0.0
  %3363 = vmatprep.subr.mxu0 0.0
  %3364 = vmatpush1.xpose.msra.mxu0 0.0
  %3365 = vmatprep.subr.mxu0 0.0
  %3366 = vmatpush1.xpose.msra.mxu0 0.0
  %3367 = vmatprep.subr.mxu0 0.0
  %3368 = vmatpush1.xpose.msra.mxu0 0.0
  %3369 = vmatprep.subr.mxu0 0.0
  %3370 = vmatpush1.xpose.msra.mxu0 0.0
  %3371 = vmatprep.subr.mxu0 0.0
  %3372 = vmatpush1.xpose.msra.mxu0 0.0
  %3373 = vmatprep.subr.mxu0 0.0
  %3374 = vmatpush1.xpose.msra.mxu0 0.0
  %3375 = vmatprep.subr.mxu0 0.0
  %3376 = vmatpush1.xpose.msra.mxu0 0.0
  %3377 = vmatprep.subr.mxu0 0.0
  %3378 = vmatpush1.xpose.msra.mxu0 0.0
  %3379 = vmatprep.subr.mxu0 0.0
  %3380 = vmatpush1.xpose.msra.mxu0 0.0
  %3381 = vmatprep.subr.mxu0 0.0
  %3382 = vmatpush1.xpose.msra.mxu0 0.0
  %3383 = vmatprep.subr.mxu0 0.0
  %3384 = vmatpush1.xpose.msra.mxu0 %v3353
  %3385 = vmatprep.subr.mxu0 0.0
  %3386 = vmatpush1.xpose.msra.mxu0 %v3350
  %3387 = vmatprep.subr.mxu0 0.0
  %3388 = vmatpush2.xpose.msra.mxu0 0.0
  %3389 = vmatprep.subr.mxu0 0.0
  %3390 = vmatpush2.xpose.msra.mxu0 0.0
  %3391 = vmatprep.subr.mxu0 0.0
  %3392 = vmatpush2.xpose.msra.mxu0 0.0
  %3393 = vmatprep.subr.mxu0 0.0
  %3394 = vmatpush2.xpose.msra.mxu0 0.0
  %3395 = vmatprep.subr.mxu0 0.0
  %3396 = vmatpush2.xpose.msra.mxu0 0.0
  %3397 = vmatprep.subr.mxu0 0.0
  %3398 = vmatpush2.xpose.msra.mxu0 0.0
  %3399 = vmatprep.subr.mxu0 0.0
  %3400 = vmatpush2.xpose.msra.mxu0 0.0
  %3401 = vmatprep.subr.mxu0 0.0
  %3402 = vmatpush2.xpose.msra.mxu0 0.0
  %3403 = vmatprep.subr.mxu0 0.0
  %3404 = vmatpush2.xpose.msra.mxu0 0.0
  %3405 = vmatprep.subr.mxu0 0.0
  %3406 = vmatpush2.xpose.msra.mxu0 0.0
  %3407 = vmatprep.subr.mxu0 0.0
  %3408 = vmatpush2.xpose.msra.mxu0 0.0
  %3409 = vmatprep.subr.mxu0 0.0
  %3410 = vmatpush2.xpose.msra.mxu0 0.0
  %3411 = vmatprep.subr.mxu0 0.0
  %3412 = vmatpush2.xpose.msra.mxu0 0.0
  %3413 = vmatprep.subr.mxu0 0.0
  %3414 = vmatpush2.xpose.msra.mxu0 0.0
  %3415 = vmatprep.subr.mxu0 0.0
  %3416 = vmatpush2.xpose.msra.mxu0 0.0
  %3417 = vmatprep.subr.mxu0 0.0
  %3418 = vmatpush2.xpose.msra.mxu0 0.0
  %3419 = vmatprep.mubr.f32.mxu0 0.0
  %3420 = vmatmul.mubr.f32.gmra.mxu0 %v3347
  %v3421 = vpop.f32.mrf.mxu0
  %v3422 = vadd.f32 0.0, %v3421
  %v3423 = vpop.f32.mrf.mxu0
  %3424 = vdwg.mxu0
  %v3426 = vsel %vm1627, %v3251, 0
  %v3429 = vsel %vm1627, %v3338, 0
  %v3432 = vsel %vm1627, %v3343, 0
  %3434 = vmatprep.subr.mxu0 0.0
  %3435 = vmatpush1.xpose.msra.mxu0 0.0
  %3436 = vmatprep.subr.mxu0 0.0
  %3437 = vmatpush1.xpose.msra.mxu0 0.0
  %3438 = vmatprep.subr.mxu0 0.0
  %3439 = vmatpush1.xpose.msra.mxu0 0.0
  %3440 = vmatprep.subr.mxu0 0.0
  %3441 = vmatpush1.xpose.msra.mxu0 0.0
  %3442 = vmatprep.subr.mxu0 0.0
  %3443 = vmatpush1.xpose.msra.mxu0 0.0
  %3444 = vmatprep.subr.mxu0 0.0
  %3445 = vmatpush1.xpose.msra.mxu0 0.0
  %3446 = vmatprep.subr.mxu0 0.0
  %3447 = vmatpush1.xpose.msra.mxu0 0.0
  %3448 = vmatprep.subr.mxu0 0.0
  %3449 = vmatpush1.xpose.msra.mxu0 0.0
  %3450 = vmatprep.subr.mxu0 0.0
  %3451 = vmatpush1.xpose.msra.mxu0 0.0
  %3452 = vmatprep.subr.mxu0 0.0
  %3453 = vmatpush1.xpose.msra.mxu0 0.0
  %3454 = vmatprep.subr.mxu0 0.0
  %3455 = vmatpush1.xpose.msra.mxu0 0.0
  %3456 = vmatprep.subr.mxu0 0.0
  %3457 = vmatpush1.xpose.msra.mxu0 0.0
  %3458 = vmatprep.subr.mxu0 0.0
  %3459 = vmatpush1.xpose.msra.mxu0 0.0
  %3460 = vmatprep.subr.mxu0 0.0
  %3461 = vmatpush1.xpose.msra.mxu0 0.0
  %3462 = vmatprep.subr.mxu0 0.0
  %3463 = vmatpush1.xpose.msra.mxu0 %v3432
  %3464 = vmatprep.subr.mxu0 0.0
  %3465 = vmatpush1.xpose.msra.mxu0 %v3429
  %3466 = vmatprep.subr.mxu0 0.0
  %3467 = vmatpush2.xpose.msra.mxu0 0.0
  %3468 = vmatprep.subr.mxu0 0.0
  %3469 = vmatpush2.xpose.msra.mxu0 0.0
  %3470 = vmatprep.subr.mxu0 0.0
  %3471 = vmatpush2.xpose.msra.mxu0 0.0
  %3472 = vmatprep.subr.mxu0 0.0
  %3473 = vmatpush2.xpose.msra.mxu0 0.0
  %3474 = vmatprep.subr.mxu0 0.0
  %3475 = vmatpush2.xpose.msra.mxu0 0.0
  %3476 = vmatprep.subr.mxu0 0.0
  %3477 = vmatpush2.xpose.msra.mxu0 0.0
  %3478 = vmatprep.subr.mxu0 0.0
  %3479 = vmatpush2.xpose.msra.mxu0 0.0
  %3480 = vmatprep.subr.mxu0 0.0
  %3481 = vmatpush2.xpose.msra.mxu0 0.0
  %3482 = vmatprep.subr.mxu0 0.0
  %3483 = vmatpush2.xpose.msra.mxu0 0.0
  %3484 = vmatprep.subr.mxu0 0.0
  %3485 = vmatpush2.xpose.msra.mxu0 0.0
  %3486 = vmatprep.subr.mxu0 0.0
  %3487 = vmatpush2.xpose.msra.mxu0 0.0
  %3488 = vmatprep.subr.mxu0 0.0
  %3489 = vmatpush2.xpose.msra.mxu0 0.0
  %3490 = vmatprep.subr.mxu0 0.0
  %3491 = vmatpush2.xpose.msra.mxu0 0.0
  %3492 = vmatprep.subr.mxu0 0.0
  %3493 = vmatpush2.xpose.msra.mxu0 0.0
  %3494 = vmatprep.subr.mxu0 0.0
  %3495 = vmatpush2.xpose.msra.mxu0 0.0
  %3496 = vmatprep.subr.mxu0 0.0
  %3497 = vmatpush2.xpose.msra.mxu0 0.0
  %3498 = vmatprep.mubr.f32.mxu0 0.0
  %3499 = vmatmul.mubr.f32.gmra.mxu0 %v3426
  %v3500 = vpop.f32.mrf.mxu0
  %v3501 = vadd.f32 0.0, %v3500
  %v3502 = vpop.f32.mrf.mxu0
  %3503 = vdwg.mxu0
  %3504 = vrot.lane.b32.xlu0 %v3250, 120
  %v3505 = vpop.permute.xlu0 %3504
  %3506 = vrot.lane.b32.xlu0 %v3328, 120
  %v3507 = vpop.permute.xlu0 %3506
  %3508 = vrot.lane.b32.xlu0 %v3333, 120
  %v3509 = vpop.permute.xlu0 %3508
  %v3510 = vsel %vm1627, %v3505, 0
  %v3512 = vsel %vm1627, %v3507, 0
  %v3514 = vsel %vm1627, %v3509, 0
  %3516 = vmatprep.subr.mxu0 0.0
  %3517 = vmatpush1.xpose.msra.mxu0 0.0
  %3518 = vmatprep.subr.mxu0 0.0
  %3519 = vmatpush1.xpose.msra.mxu0 0.0
  %3520 = vmatprep.subr.mxu0 0.0
  %3521 = vmatpush1.xpose.msra.mxu0 0.0
  %3522 = vmatprep.subr.mxu0 0.0
  %3523 = vmatpush1.xpose.msra.mxu0 0.0
  %3524 = vmatprep.subr.mxu0 0.0
  %3525 = vmatpush1.xpose.msra.mxu0 0.0
  %3526 = vmatprep.subr.mxu0 0.0
  %3527 = vmatpush1.xpose.msra.mxu0 0.0
  %3528 = vmatprep.subr.mxu0 0.0
  %3529 = vmatpush1.xpose.msra.mxu0 0.0
  %3530 = vmatprep.subr.mxu0 0.0
  %3531 = vmatpush1.xpose.msra.mxu0 0.0
  %3532 = vmatprep.subr.mxu0 0.0
  %3533 = vmatpush1.xpose.msra.mxu0 0.0
  %3534 = vmatprep.subr.mxu0 0.0
  %3535 = vmatpush1.xpose.msra.mxu0 0.0
  %3536 = vmatprep.subr.mxu0 0.0
  %3537 = vmatpush1.xpose.msra.mxu0 0.0
  %3538 = vmatprep.subr.mxu0 0.0
  %3539 = vmatpush1.xpose.msra.mxu0 0.0
  %3540 = vmatprep.subr.mxu0 0.0
  %3541 = vmatpush1.xpose.msra.mxu0 0.0
  %3542 = vmatprep.subr.mxu0 0.0
  %3543 = vmatpush1.xpose.msra.mxu0 0.0
  %3544 = vmatprep.subr.mxu0 0.0
  %3545 = vmatpush1.xpose.msra.mxu0 %v3514
  %3546 = vmatprep.subr.mxu0 0.0
  %3547 = vmatpush1.xpose.msra.mxu0 %v3512
  %3548 = vmatprep.subr.mxu0 0.0
  %3549 = vmatpush2.xpose.msra.mxu0 0.0
  %3550 = vmatprep.subr.mxu0 0.0
  %3551 = vmatpush2.xpose.msra.mxu0 0.0
  %3552 = vmatprep.subr.mxu0 0.0
  %3553 = vmatpush2.xpose.msra.mxu0 0.0
  %3554 = vmatprep.subr.mxu0 0.0
  %3555 = vmatpush2.xpose.msra.mxu0 0.0
  %3556 = vmatprep.subr.mxu0 0.0
  %3557 = vmatpush2.xpose.msra.mxu0 0.0
  %3558 = vmatprep.subr.mxu0 0.0
  %3559 = vmatpush2.xpose.msra.mxu0 0.0
  %3560 = vmatprep.subr.mxu0 0.0
  %3561 = vmatpush2.xpose.msra.mxu0 0.0
  %3562 = vmatprep.subr.mxu0 0.0
  %3563 = vmatpush2.xpose.msra.mxu0 0.0
  %3564 = vmatprep.subr.mxu0 0.0
  %3565 = vmatpush2.xpose.msra.mxu0 0.0
  %3566 = vmatprep.subr.mxu0 0.0
  %3567 = vmatpush2.xpose.msra.mxu0 0.0
  %3568 = vmatprep.subr.mxu0 0.0
  %3569 = vmatpush2.xpose.msra.mxu0 0.0
  %3570 = vmatprep.subr.mxu0 0.0
  %3571 = vmatpush2.xpose.msra.mxu0 0.0
  %3572 = vmatprep.subr.mxu0 0.0
  %3573 = vmatpush2.xpose.msra.mxu0 0.0
  %3574 = vmatprep.subr.mxu0 0.0
  %3575 = vmatpush2.xpose.msra.mxu0 0.0
  %3576 = vmatprep.subr.mxu0 0.0
  %3577 = vmatpush2.xpose.msra.mxu0 0.0
  %3578 = vmatprep.subr.mxu0 0.0
  %3579 = vmatpush2.xpose.msra.mxu0 0.0
  %3580 = vmatprep.mubr.f32.mxu0 0.0
  %3581 = vmatmul.mubr.f32.gmra.mxu0 %v3510
  %v3582 = vpop.f32.mrf.mxu0
  %v3583 = vadd.f32 0.0, %v3582
  %v3584 = vpop.f32.mrf.mxu0
  %3585 = vdwg.mxu0
  %3586 = vrot.lane.b32.xlu0 %v3251, 120
  %v3587 = vpop.permute.xlu0 %3586
  %3588 = vrot.lane.b32.xlu0 %v3338, 120
  %v3589 = vpop.permute.xlu0 %3588
  %3590 = vrot.lane.b32.xlu0 %v3343, 120
  %v3591 = vpop.permute.xlu0 %3590
  %v3592 = vsel %vm1627, %v3587, 0
  %v3594 = vsel %vm1627, %v3589, 0
  %v3596 = vsel %vm1627, %v3591, 0
  %3598 = vmatprep.subr.mxu0 0.0
  %3599 = vmatpush1.xpose.msra.mxu0 0.0
  %3600 = vmatprep.subr.mxu0 0.0
  %3601 = vmatpush1.xpose.msra.mxu0 0.0
  %3602 = vmatprep.subr.mxu0 0.0
  %3603 = vmatpush1.xpose.msra.mxu0 0.0
  %3604 = vmatprep.subr.mxu0 0.0
  %3605 = vmatpush1.xpose.msra.mxu0 0.0
  %3606 = vmatprep.subr.mxu0 0.0
  %3607 = vmatpush1.xpose.msra.mxu0 0.0
  %3608 = vmatprep.subr.mxu0 0.0
  %3609 = vmatpush1.xpose.msra.mxu0 0.0
  %3610 = vmatprep.subr.mxu0 0.0
  %3611 = vmatpush1.xpose.msra.mxu0 0.0
  %3612 = vmatprep.subr.mxu0 0.0
  %3613 = vmatpush1.xpose.msra.mxu0 0.0
  %3614 = vmatprep.subr.mxu0 0.0
  %3615 = vmatpush1.xpose.msra.mxu0 0.0
  %3616 = vmatprep.subr.mxu0 0.0
  %3617 = vmatpush1.xpose.msra.mxu0 0.0
  %3618 = vmatprep.subr.mxu0 0.0
  %3619 = vmatpush1.xpose.msra.mxu0 0.0
  %3620 = vmatprep.subr.mxu0 0.0
  %3621 = vmatpush1.xpose.msra.mxu0 0.0
  %3622 = vmatprep.subr.mxu0 0.0
  %3623 = vmatpush1.xpose.msra.mxu0 0.0
  %3624 = vmatprep.subr.mxu0 0.0
  %3625 = vmatpush1.xpose.msra.mxu0 0.0
  %3626 = vmatprep.subr.mxu0 0.0
  %3627 = vmatpush1.xpose.msra.mxu0 %v3596
  %3628 = vmatprep.subr.mxu0 0.0
  %3629 = vmatpush1.xpose.msra.mxu0 %v3594
  %3630 = vmatprep.subr.mxu0 0.0
  %3631 = vmatpush2.xpose.msra.mxu0 0.0
  %3632 = vmatprep.subr.mxu0 0.0
  %3633 = vmatpush2.xpose.msra.mxu0 0.0
  %3634 = vmatprep.subr.mxu0 0.0
  %3635 = vmatpush2.xpose.msra.mxu0 0.0
  %3636 = vmatprep.subr.mxu0 0.0
  %3637 = vmatpush2.xpose.msra.mxu0 0.0
  %3638 = vmatprep.subr.mxu0 0.0
  %3639 = vmatpush2.xpose.msra.mxu0 0.0
  %3640 = vmatprep.subr.mxu0 0.0
  %3641 = vmatpush2.xpose.msra.mxu0 0.0
  %3642 = vmatprep.subr.mxu0 0.0
  %3643 = vmatpush2.xpose.msra.mxu0 0.0
  %3644 = vmatprep.subr.mxu0 0.0
  %3645 = vmatpush2.xpose.msra.mxu0 0.0
  %3646 = vmatprep.subr.mxu0 0.0
  %3647 = vmatpush2.xpose.msra.mxu0 0.0
  %3648 = vmatprep.subr.mxu0 0.0
  %3649 = vmatpush2.xpose.msra.mxu0 0.0
  %3650 = vmatprep.subr.mxu0 0.0
  %3651 = vmatpush2.xpose.msra.mxu0 0.0
  %3652 = vmatprep.subr.mxu0 0.0
  %3653 = vmatpush2.xpose.msra.mxu0 0.0
  %3654 = vmatprep.subr.mxu0 0.0
  %3655 = vmatpush2.xpose.msra.mxu0 0.0
  %3656 = vmatprep.subr.mxu0 0.0
  %3657 = vmatpush2.xpose.msra.mxu0 0.0
  %3658 = vmatprep.subr.mxu0 0.0
  %3659 = vmatpush2.xpose.msra.mxu0 0.0
  %3660 = vmatprep.subr.mxu0 0.0
  %3661 = vmatpush2.xpose.msra.mxu0 0.0
  %3662 = vmatprep.mubr.f32.mxu0 0.0
  %3663 = vmatmul.mubr.f32.gmra.mxu0 %v3592
  %v3664 = vpop.f32.mrf.mxu0
  %v3665 = vadd.f32 0.0, %v3664
  %v3666 = vpop.f32.mrf.mxu0
  %3667 = vdwg.mxu0
  %3668 = vrot.lane.b32.xlu0 %v3250, 112
  %v3669 = vpop.permute.xlu0 %3668
  %3670 = vrot.lane.b32.xlu0 %v3328, 112
  %v3671 = vpop.permute.xlu0 %3670
  %3672 = vrot.lane.b32.xlu0 %v3333, 112
  %v3673 = vpop.permute.xlu0 %3672
  %v3674 = vsel %vm1627, %v3669, 0
  %v3676 = vsel %vm1627, %v3671, 0
  %v3678 = vsel %vm1627, %v3673, 0
  %3680 = vmatprep.subr.mxu0 0.0
  %3681 = vmatpush1.xpose.msra.mxu0 0.0
  %3682 = vmatprep.subr.mxu0 0.0
  %3683 = vmatpush1.xpose.msra.mxu0 0.0
  %3684 = vmatprep.subr.mxu0 0.0
  %3685 = vmatpush1.xpose.msra.mxu0 0.0
  %3686 = vmatprep.subr.mxu0 0.0
  %3687 = vmatpush1.xpose.msra.mxu0 0.0
  %3688 = vmatprep.subr.mxu0 0.0
  %3689 = vmatpush1.xpose.msra.mxu0 0.0
  %3690 = vmatprep.subr.mxu0 0.0
  %3691 = vmatpush1.xpose.msra.mxu0 0.0
  %3692 = vmatprep.subr.mxu0 0.0
  %3693 = vmatpush1.xpose.msra.mxu0 0.0
  %3694 = vmatprep.subr.mxu0 0.0
  %3695 = vmatpush1.xpose.msra.mxu0 0.0
  %3696 = vmatprep.subr.mxu0 0.0
  %3697 = vmatpush1.xpose.msra.mxu0 0.0
  %3698 = vmatprep.subr.mxu0 0.0
  %3699 = vmatpush1.xpose.msra.mxu0 0.0
  %3700 = vmatprep.subr.mxu0 0.0
  %3701 = vmatpush1.xpose.msra.mxu0 0.0
  %3702 = vmatprep.subr.mxu0 0.0
  %3703 = vmatpush1.xpose.msra.mxu0 0.0
  %3704 = vmatprep.subr.mxu0 0.0
  %3705 = vmatpush1.xpose.msra.mxu0 0.0
  %3706 = vmatprep.subr.mxu0 0.0
  %3707 = vmatpush1.xpose.msra.mxu0 0.0
  %3708 = vmatprep.subr.mxu0 0.0
  %3709 = vmatpush1.xpose.msra.mxu0 %v3678
  %3710 = vmatprep.subr.mxu0 0.0
  %3711 = vmatpush1.xpose.msra.mxu0 %v3676
  %3712 = vmatprep.subr.mxu0 0.0
  %3713 = vmatpush2.xpose.msra.mxu0 0.0
  %3714 = vmatprep.subr.mxu0 0.0
  %3715 = vmatpush2.xpose.msra.mxu0 0.0
  %3716 = vmatprep.subr.mxu0 0.0
  %3717 = vmatpush2.xpose.msra.mxu0 0.0
  %3718 = vmatprep.subr.mxu0 0.0
  %3719 = vmatpush2.xpose.msra.mxu0 0.0
  %3720 = vmatprep.subr.mxu0 0.0
  %3721 = vmatpush2.xpose.msra.mxu0 0.0
  %3722 = vmatprep.subr.mxu0 0.0
  %3723 = vmatpush2.xpose.msra.mxu0 0.0
  %3724 = vmatprep.subr.mxu0 0.0
  %3725 = vmatpush2.xpose.msra.mxu0 0.0
  %3726 = vmatprep.subr.mxu0 0.0
  %3727 = vmatpush2.xpose.msra.mxu0 0.0
  %3728 = vmatprep.subr.mxu0 0.0
  %3729 = vmatpush2.xpose.msra.mxu0 0.0
  %3730 = vmatprep.subr.mxu0 0.0
  %3731 = vmatpush2.xpose.msra.mxu0 0.0
  %3732 = vmatprep.subr.mxu0 0.0
  %3733 = vmatpush2.xpose.msra.mxu0 0.0
  %3734 = vmatprep.subr.mxu0 0.0
  %3735 = vmatpush2.xpose.msra.mxu0 0.0
  %3736 = vmatprep.subr.mxu0 0.0
  %3737 = vmatpush2.xpose.msra.mxu0 0.0
  %3738 = vmatprep.subr.mxu0 0.0
  %3739 = vmatpush2.xpose.msra.mxu0 0.0
  %3740 = vmatprep.subr.mxu0 0.0
  %3741 = vmatpush2.xpose.msra.mxu0 0.0
  %3742 = vmatprep.subr.mxu0 0.0
  %3743 = vmatpush2.xpose.msra.mxu0 0.0
  %3744 = vmatprep.mubr.f32.mxu0 0.0
  %3745 = vmatmul.mubr.f32.gmra.mxu0 %v3674
  %v3746 = vpop.f32.mrf.mxu0
  %v3747 = vadd.f32 0.0, %v3746
  %v3748 = vpop.f32.mrf.mxu0
  %3749 = vdwg.mxu0
  %3750 = vrot.lane.b32.xlu0 %v3251, 112
  %v3751 = vpop.permute.xlu0 %3750
  %3752 = vrot.lane.b32.xlu0 %v3338, 112
  %v3753 = vpop.permute.xlu0 %3752
  %3754 = vrot.lane.b32.xlu0 %v3343, 112
  %v3755 = vpop.permute.xlu0 %3754
  %v3756 = vsel %vm1627, %v3751, 0
  %v3758 = vsel %vm1627, %v3753, 0
  %v3760 = vsel %vm1627, %v3755, 0
  %3762 = vmatprep.subr.mxu0 0.0
  %3763 = vmatpush1.xpose.msra.mxu0 0.0
  %3764 = vmatprep.subr.mxu0 0.0
  %3765 = vmatpush1.xpose.msra.mxu0 0.0
  %3766 = vmatprep.subr.mxu0 0.0
  %3767 = vmatpush1.xpose.msra.mxu0 0.0
  %3768 = vmatprep.subr.mxu0 0.0
  %3769 = vmatpush1.xpose.msra.mxu0 0.0
  %3770 = vmatprep.subr.mxu0 0.0
  %3771 = vmatpush1.xpose.msra.mxu0 0.0
  %3772 = vmatprep.subr.mxu0 0.0
  %3773 = vmatpush1.xpose.msra.mxu0 0.0
  %3774 = vmatprep.subr.mxu0 0.0
  %3775 = vmatpush1.xpose.msra.mxu0 0.0
  %3776 = vmatprep.subr.mxu0 0.0
  %3777 = vmatpush1.xpose.msra.mxu0 0.0
  %3778 = vmatprep.subr.mxu0 0.0
  %3779 = vmatpush1.xpose.msra.mxu0 0.0
  %3780 = vmatprep.subr.mxu0 0.0
  %3781 = vmatpush1.xpose.msra.mxu0 0.0
  %3782 = vmatprep.subr.mxu0 0.0
  %3783 = vmatpush1.xpose.msra.mxu0 0.0
  %3784 = vmatprep.subr.mxu0 0.0
  %3785 = vmatpush1.xpose.msra.mxu0 0.0
  %3786 = vmatprep.subr.mxu0 0.0
  %3787 = vmatpush1.xpose.msra.mxu0 0.0
  %3788 = vmatprep.subr.mxu0 0.0
  %3789 = vmatpush1.xpose.msra.mxu0 0.0
  %3790 = vmatprep.subr.mxu0 0.0
  %3791 = vmatpush1.xpose.msra.mxu0 %v3760
  %3792 = vmatprep.subr.mxu0 0.0
  %3793 = vmatpush1.xpose.msra.mxu0 %v3758
  %3794 = vmatprep.subr.mxu0 0.0
  %3795 = vmatpush2.xpose.msra.mxu0 0.0
  %3796 = vmatprep.subr.mxu0 0.0
  %3797 = vmatpush2.xpose.msra.mxu0 0.0
  %3798 = vmatprep.subr.mxu0 0.0
  %3799 = vmatpush2.xpose.msra.mxu0 0.0
  %3800 = vmatprep.subr.mxu0 0.0
  %3801 = vmatpush2.xpose.msra.mxu0 0.0
  %3802 = vmatprep.subr.mxu0 0.0
  %3803 = vmatpush2.xpose.msra.mxu0 0.0
  %3804 = vmatprep.subr.mxu0 0.0
  %3805 = vmatpush2.xpose.msra.mxu0 0.0
  %3806 = vmatprep.subr.mxu0 0.0
  %3807 = vmatpush2.xpose.msra.mxu0 0.0
  %3808 = vmatprep.subr.mxu0 0.0
  %3809 = vmatpush2.xpose.msra.mxu0 0.0
  %3810 = vmatprep.subr.mxu0 0.0
  %3811 = vmatpush2.xpose.msra.mxu0 0.0
  %3812 = vmatprep.subr.mxu0 0.0
  %3813 = vmatpush2.xpose.msra.mxu0 0.0
  %3814 = vmatprep.subr.mxu0 0.0
  %3815 = vmatpush2.xpose.msra.mxu0 0.0
  %3816 = vmatprep.subr.mxu0 0.0
  %3817 = vmatpush2.xpose.msra.mxu0 0.0
  %3818 = vmatprep.subr.mxu0 0.0
  %3819 = vmatpush2.xpose.msra.mxu0 0.0
  %3820 = vmatprep.subr.mxu0 0.0
  %3821 = vmatpush2.xpose.msra.mxu0 0.0
  %3822 = vmatprep.subr.mxu0 0.0
  %3823 = vmatpush2.xpose.msra.mxu0 0.0
  %3824 = vmatprep.subr.mxu0 0.0
  %3825 = vmatpush2.xpose.msra.mxu0 0.0
  %3826 = vmatprep.mubr.f32.mxu0 0.0
  %3827 = vmatmul.mubr.f32.gmra.mxu0 %v3756
  %v3828 = vpop.f32.mrf.mxu0
  %v3829 = vadd.f32 0.0, %v3828
  %v3830 = vpop.f32.mrf.mxu0
  %3831 = vdwg.mxu0
  %3832 = vrot.lane.b32.xlu0 %v3250, 104
  %v3833 = vpop.permute.xlu0 %3832
  %3834 = vrot.lane.b32.xlu0 %v3328, 104
  %v3835 = vpop.permute.xlu0 %3834
  %3836 = vrot.lane.b32.xlu0 %v3333, 104
  %v3837 = vpop.permute.xlu0 %3836
  %v3838 = vsel %vm1627, %v3833, 0
  %v3840 = vsel %vm1627, %v3835, 0
  %v3842 = vsel %vm1627, %v3837, 0
  %3844 = vmatprep.subr.mxu0 0.0
  %3845 = vmatpush1.xpose.msra.mxu0 0.0
  %3846 = vmatprep.subr.mxu0 0.0
  %3847 = vmatpush1.xpose.msra.mxu0 0.0
  %3848 = vmatprep.subr.mxu0 0.0
  %3849 = vmatpush1.xpose.msra.mxu0 0.0
  %3850 = vmatprep.subr.mxu0 0.0
  %3851 = vmatpush1.xpose.msra.mxu0 0.0
  %3852 = vmatprep.subr.mxu0 0.0
  %3853 = vmatpush1.xpose.msra.mxu0 0.0
  %3854 = vmatprep.subr.mxu0 0.0
  %3855 = vmatpush1.xpose.msra.mxu0 0.0
  %3856 = vmatprep.subr.mxu0 0.0
  %3857 = vmatpush1.xpose.msra.mxu0 0.0
  %3858 = vmatprep.subr.mxu0 0.0
  %3859 = vmatpush1.xpose.msra.mxu0 0.0
  %3860 = vmatprep.subr.mxu0 0.0
  %3861 = vmatpush1.xpose.msra.mxu0 0.0
  %3862 = vmatprep.subr.mxu0 0.0
  %3863 = vmatpush1.xpose.msra.mxu0 0.0
  %3864 = vmatprep.subr.mxu0 0.0
  %3865 = vmatpush1.xpose.msra.mxu0 0.0
  %3866 = vmatprep.subr.mxu0 0.0
  %3867 = vmatpush1.xpose.msra.mxu0 0.0
  %3868 = vmatprep.subr.mxu0 0.0
  %3869 = vmatpush1.xpose.msra.mxu0 0.0
  %3870 = vmatprep.subr.mxu0 0.0
  %3871 = vmatpush1.xpose.msra.mxu0 0.0
  %3872 = vmatprep.subr.mxu0 0.0
  %3873 = vmatpush1.xpose.msra.mxu0 %v3842
  %3874 = vmatprep.subr.mxu0 0.0
  %3875 = vmatpush1.xpose.msra.mxu0 %v3840
  %3876 = vmatprep.subr.mxu0 0.0
  %3877 = vmatpush2.xpose.msra.mxu0 0.0
  %3878 = vmatprep.subr.mxu0 0.0
  %3879 = vmatpush2.xpose.msra.mxu0 0.0
  %3880 = vmatprep.subr.mxu0 0.0
  %3881 = vmatpush2.xpose.msra.mxu0 0.0
  %3882 = vmatprep.subr.mxu0 0.0
  %3883 = vmatpush2.xpose.msra.mxu0 0.0
  %3884 = vmatprep.subr.mxu0 0.0
  %3885 = vmatpush2.xpose.msra.mxu0 0.0
  %3886 = vmatprep.subr.mxu0 0.0
  %3887 = vmatpush2.xpose.msra.mxu0 0.0
  %3888 = vmatprep.subr.mxu0 0.0
  %3889 = vmatpush2.xpose.msra.mxu0 0.0
  %3890 = vmatprep.subr.mxu0 0.0
  %3891 = vmatpush2.xpose.msra.mxu0 0.0
  %3892 = vmatprep.subr.mxu0 0.0
  %3893 = vmatpush2.xpose.msra.mxu0 0.0
  %3894 = vmatprep.subr.mxu0 0.0
  %3895 = vmatpush2.xpose.msra.mxu0 0.0
  %3896 = vmatprep.subr.mxu0 0.0
  %3897 = vmatpush2.xpose.msra.mxu0 0.0
  %3898 = vmatprep.subr.mxu0 0.0
  %3899 = vmatpush2.xpose.msra.mxu0 0.0
  %3900 = vmatprep.subr.mxu0 0.0
  %3901 = vmatpush2.xpose.msra.mxu0 0.0
  %3902 = vmatprep.subr.mxu0 0.0
  %3903 = vmatpush2.xpose.msra.mxu0 0.0
  %3904 = vmatprep.subr.mxu0 0.0
  %3905 = vmatpush2.xpose.msra.mxu0 0.0
  %3906 = vmatprep.subr.mxu0 0.0
  %3907 = vmatpush2.xpose.msra.mxu0 0.0
  %3908 = vmatprep.mubr.f32.mxu0 0.0
  %3909 = vmatmul.mubr.f32.gmra.mxu0 %v3838
  %v3910 = vpop.f32.mrf.mxu0
  %v3911 = vadd.f32 0.0, %v3910
  %v3912 = vpop.f32.mrf.mxu0
  %3913 = vdwg.mxu0
  %3914 = vrot.lane.b32.xlu0 %v3251, 104
  %v3915 = vpop.permute.xlu0 %3914
  %3916 = vrot.lane.b32.xlu0 %v3338, 104
  %v3917 = vpop.permute.xlu0 %3916
  %3918 = vrot.lane.b32.xlu0 %v3343, 104
  %v3919 = vpop.permute.xlu0 %3918
  %v3920 = vsel %vm1627, %v3915, 0
  %v3922 = vsel %vm1627, %v3917, 0
  %v3924 = vsel %vm1627, %v3919, 0
  %3926 = vmatprep.subr.mxu0 0.0
  %3927 = vmatpush1.xpose.msra.mxu0 0.0
  %3928 = vmatprep.subr.mxu0 0.0
  %3929 = vmatpush1.xpose.msra.mxu0 0.0
  %3930 = vmatprep.subr.mxu0 0.0
  %3931 = vmatpush1.xpose.msra.mxu0 0.0
  %3932 = vmatprep.subr.mxu0 0.0
  %3933 = vmatpush1.xpose.msra.mxu0 0.0
  %3934 = vmatprep.subr.mxu0 0.0
  %3935 = vmatpush1.xpose.msra.mxu0 0.0
  %3936 = vmatprep.subr.mxu0 0.0
  %3937 = vmatpush1.xpose.msra.mxu0 0.0
  %3938 = vmatprep.subr.mxu0 0.0
  %3939 = vmatpush1.xpose.msra.mxu0 0.0
  %3940 = vmatprep.subr.mxu0 0.0
  %3941 = vmatpush1.xpose.msra.mxu0 0.0
  %3942 = vmatprep.subr.mxu0 0.0
  %3943 = vmatpush1.xpose.msra.mxu0 0.0
  %3944 = vmatprep.subr.mxu0 0.0
  %3945 = vmatpush1.xpose.msra.mxu0 0.0
  %3946 = vmatprep.subr.mxu0 0.0
  %3947 = vmatpush1.xpose.msra.mxu0 0.0
  %3948 = vmatprep.subr.mxu0 0.0
  %3949 = vmatpush1.xpose.msra.mxu0 0.0
  %3950 = vmatprep.subr.mxu0 0.0
  %3951 = vmatpush1.xpose.msra.mxu0 0.0
  %3952 = vmatprep.subr.mxu0 0.0
  %3953 = vmatpush1.xpose.msra.mxu0 0.0
  %3954 = vmatprep.subr.mxu0 0.0
  %3955 = vmatpush1.xpose.msra.mxu0 %v3924
  %3956 = vmatprep.subr.mxu0 0.0
  %3957 = vmatpush1.xpose.msra.mxu0 %v3922
  %3958 = vmatprep.subr.mxu0 0.0
  %3959 = vmatpush2.xpose.msra.mxu0 0.0
  %3960 = vmatprep.subr.mxu0 0.0
  %3961 = vmatpush2.xpose.msra.mxu0 0.0
  %3962 = vmatprep.subr.mxu0 0.0
  %3963 = vmatpush2.xpose.msra.mxu0 0.0
  %3964 = vmatprep.subr.mxu0 0.0
  %3965 = vmatpush2.xpose.msra.mxu0 0.0
  %3966 = vmatprep.subr.mxu0 0.0
  %3967 = vmatpush2.xpose.msra.mxu0 0.0
  %3968 = vmatprep.subr.mxu0 0.0
  %3969 = vmatpush2.xpose.msra.mxu0 0.0
  %3970 = vmatprep.subr.mxu0 0.0
  %3971 = vmatpush2.xpose.msra.mxu0 0.0
  %3972 = vmatprep.subr.mxu0 0.0
  %3973 = vmatpush2.xpose.msra.mxu0 0.0
  %3974 = vmatprep.subr.mxu0 0.0
  %3975 = vmatpush2.xpose.msra.mxu0 0.0
  %3976 = vmatprep.subr.mxu0 0.0
  %3977 = vmatpush2.xpose.msra.mxu0 0.0
  %3978 = vmatprep.subr.mxu0 0.0
  %3979 = vmatpush2.xpose.msra.mxu0 0.0
  %3980 = vmatprep.subr.mxu0 0.0
  %3981 = vmatpush2.xpose.msra.mxu0 0.0
  %3982 = vmatprep.subr.mxu0 0.0
  %3983 = vmatpush2.xpose.msra.mxu0 0.0
  %3984 = vmatprep.subr.mxu0 0.0
  %3985 = vmatpush2.xpose.msra.mxu0 0.0
  %3986 = vmatprep.subr.mxu0 0.0
  %3987 = vmatpush2.xpose.msra.mxu0 0.0
  %3988 = vmatprep.subr.mxu0 0.0
  %3989 = vmatpush2.xpose.msra.mxu0 0.0
  %3990 = vmatprep.mubr.f32.mxu0 0.0
  %3991 = vmatmul.mubr.f32.gmra.mxu0 %v3920
  %v3992 = vpop.f32.mrf.mxu0
  %v3993 = vadd.f32 0.0, %v3992
  %v3994 = vpop.f32.mrf.mxu0
  %3995 = vdwg.mxu0
  %v3996 = vsel %vm2278, %v3422, -inf
  %3997 = vmax.xlane.f32.xlu0 %v3996
  %v3998 = vpop.xlane.xlu0 %3997
  %v3999 = vsel %vm2278, %v3583, -inf
  %4000 = vmax.xlane.f32.xlu0 %v3999
  %v4001 = vpop.xlane.xlu0 %4000
  %v4002 = vsel %vm2278, %v3747, -inf
  %4003 = vmax.xlane.f32.xlu0 %v4002
  %v4004 = vpop.xlane.xlu0 %4003
  %v4005 = vsel %vm2278, %v3911, -inf
  %4006 = vmax.xlane.f32.xlu0 %v4005
  %v4007 = vpop.xlane.xlu0 %4006
  %v4008 = vsel %vm2278, %v3501, -inf
  %4009 = vmax.xlane.f32.xlu0 %v4008
  %v4010 = vpop.xlane.xlu0 %4009
  %v4011 = vsel %vm2278, %v3665, -inf
  %4012 = vmax.xlane.f32.xlu0 %v4011
  %v4013 = vpop.xlane.xlu0 %4012
  %v4014 = vsel %vm2278, %v3829, -inf
  %4015 = vmax.xlane.f32.xlu0 %v4014
  %v4016 = vpop.xlane.xlu0 %4015
  %v4017 = vsel %vm2278, %v3993, -inf
  %4018 = vmax.xlane.f32.xlu0 %v4017
  %v4019 = vpop.xlane.xlu0 %4018
  %v4020 = vsub.f32 %v3422, %v3998
  %v4021 = vsub.f32 %v3583, %v4001
  %v4022 = vsub.f32 %v3747, %v4004
  %v4023 = vsub.f32 %v3911, %v4007
  %v4024 = vsub.f32 %v3501, %v4010
  %v4025 = vsub.f32 %v3665, %v4013
  %v4026 = vsub.f32 %v3829, %v4016
  %v4027 = vsub.f32 %v3993, %v4019
  %v4028 = vmul.f32 %v4020, 1.442695
  %v4029 = vpow.pop %v4028
  %v4030 = vmul.f32 %v4021, 1.442695
  %v4031 = vpow.pop %v4030
  %v4032 = vmul.f32 %v4022, 1.442695
  %v4033 = vpow.pop %v4032
  %v4034 = vmul.f32 %v4023, 1.442695
  %v4035 = vpow.pop %v4034
  %v4036 = vmul.f32 %v4024, 1.442695
  %v4037 = vpow.pop %v4036
  %v4038 = vmul.f32 %v4025, 1.442695
  %v4039 = vpow.pop %v4038
  %v4040 = vmul.f32 %v4026, 1.442695
  %v4041 = vpow.pop %v4040
  %v4042 = vmul.f32 %v4027, 1.442695
  %v4043 = vpow.pop %v4042
  %v4044 = vsel %vm2278, %v4029, 0.0
  %4045 = vadd.xlane.f32.xlu0 %v4044
  %v4046 = vpop.xlane.xlu0 %4045
  %v4047 = vsel %vm2278, %v4031, 0.0
  %4048 = vadd.xlane.f32.xlu0 %v4047
  %v4049 = vpop.xlane.xlu0 %4048
  %v4050 = vsel %vm2278, %v4033, 0.0
  %4051 = vadd.xlane.f32.xlu0 %v4050
  %v4052 = vpop.xlane.xlu0 %4051
  %v4053 = vsel %vm2278, %v4035, 0.0
  %4054 = vadd.xlane.f32.xlu0 %v4053
  %v4055 = vpop.xlane.xlu0 %4054
  %v4056 = vsel %vm2278, %v4037, 0.0
  %4057 = vadd.xlane.f32.xlu0 %v4056
  %v4058 = vpop.xlane.xlu0 %4057
  %v4059 = vsel %vm2278, %v4039, 0.0
  %4060 = vadd.xlane.f32.xlu0 %v4059
  %v4061 = vpop.xlane.xlu0 %4060
  %v4062 = vsel %vm2278, %v4041, 0.0
  %4063 = vadd.xlane.f32.xlu0 %v4062
  %v4064 = vpop.xlane.xlu0 %4063
  %v4065 = vsel %vm2278, %v4043, 0.0
  %4066 = vadd.xlane.f32.xlu0 %v4065
  %v4067 = vpop.xlane.xlu0 %4066
  %v4068 = vrcp.pop %v4046
  %v4069 = vrcp.pop %v4049
  %v4070 = vrcp.pop %v4052
  %v4071 = vrcp.pop %v4055
  %v4072 = vrcp.pop %v4058
  %v4073 = vrcp.pop %v4061
  %v4074 = vrcp.pop %v4064
  %v4075 = vrcp.pop %v4067
  %v4076 = vmul.f32 %v4029, %v4068
  %v4077 = vmul.f32 %v4031, %v4069
  %v4078 = vmul.f32 %v4033, %v4070
  %v4079 = vmul.f32 %v4035, %v4071
  %v4080 = vmul.f32 %v4037, %v4072
  %v4081 = vmul.f32 %v4039, %v4073
  %v4082 = vmul.f32 %v4041, %v4074
  %v4083 = vmul.f32 %v4043, %v4075
  %4084 = vrot.lane.b32.xlu0 %v3328, 96
  %v4085 = vpop.permute.xlu0 %4084
  %4086 = vrot.lane.b32.xlu0 %v3333, 96
  %v4087 = vpop.permute.xlu0 %4086
  %v4091 = vsel %vm2278, %v4076, 0
  %4093 = vmatprep.subr.mxu0 0.0
  %4094 = vmatpush1.msra.mxu0 0.0
  %4095 = vmatprep.subr.mxu0 0.0
  %4096 = vmatpush1.msra.mxu0 0.0
  %4097 = vmatprep.subr.mxu0 0.0
  %4098 = vmatpush1.msra.mxu0 0.0
  %4099 = vmatprep.subr.mxu0 0.0
  %4100 = vmatpush1.msra.mxu0 0.0
  %4101 = vmatprep.subr.mxu0 0.0
  %4102 = vmatpush1.msra.mxu0 0.0
  %4103 = vmatprep.subr.mxu0 0.0
  %4104 = vmatpush1.msra.mxu0 0.0
  %4105 = vmatprep.subr.mxu0 0.0
  %4106 = vmatpush1.msra.mxu0 0.0
  %4107 = vmatprep.subr.mxu0 0.0
  %4108 = vmatpush1.msra.mxu0 0.0
  %4109 = vmatprep.subr.mxu0 0.0
  %4110 = vmatpush1.msra.mxu0 0.0
  %4111 = vmatprep.subr.mxu0 0.0
  %4112 = vmatpush1.msra.mxu0 0.0
  %4113 = vmatprep.subr.mxu0 0.0
  %4114 = vmatpush1.msra.mxu0 0.0
  %4115 = vmatprep.subr.mxu0 0.0
  %4116 = vmatpush1.msra.mxu0 0.0
  %4117 = vmatprep.subr.mxu0 0.0
  %4118 = vmatpush1.msra.mxu0 0.0
  %4119 = vmatprep.subr.mxu0 0.0
  %4120 = vmatpush1.msra.mxu0 0.0
  %4121 = vmatprep.subr.mxu0 0.0
  %4122 = vmatpush1.msra.mxu0 %v4087
  %4123 = vmatprep.subr.mxu0 0.0
  %4124 = vmatpush1.msra.mxu0 %v4085
  %4125 = vmatprep.subr.mxu0 0.0
  %4126 = vmatpush2.msra.mxu0 0.0
  %4127 = vmatprep.subr.mxu0 0.0
  %4128 = vmatpush2.msra.mxu0 0.0
  %4129 = vmatprep.subr.mxu0 0.0
  %4130 = vmatpush2.msra.mxu0 0.0
  %4131 = vmatprep.subr.mxu0 0.0
  %4132 = vmatpush2.msra.mxu0 0.0
  %4133 = vmatprep.subr.mxu0 0.0
  %4134 = vmatpush2.msra.mxu0 0.0
  %4135 = vmatprep.subr.mxu0 0.0
  %4136 = vmatpush2.msra.mxu0 0.0
  %4137 = vmatprep.subr.mxu0 0.0
  %4138 = vmatpush2.msra.mxu0 0.0
  %4139 = vmatprep.subr.mxu0 0.0
  %4140 = vmatpush2.msra.mxu0 0.0
  %4141 = vmatprep.subr.mxu0 0.0
  %4142 = vmatpush2.msra.mxu0 0.0
  %4143 = vmatprep.subr.mxu0 0.0
  %4144 = vmatpush2.msra.mxu0 0.0
  %4145 = vmatprep.subr.mxu0 0.0
  %4146 = vmatpush2.msra.mxu0 0.0
  %4147 = vmatprep.subr.mxu0 0.0
  %4148 = vmatpush2.msra.mxu0 0.0
  %4149 = vmatprep.subr.mxu0 0.0
  %4150 = vmatpush2.msra.mxu0 0.0
  %4151 = vmatprep.subr.mxu0 0.0
  %4152 = vmatpush2.msra.mxu0 0.0
  %4153 = vmatprep.subr.mxu0 0.0
  %4154 = vmatpush2.msra.mxu0 0.0
  %4155 = vmatprep.subr.mxu0 0.0
  %4156 = vmatpush2.msra.mxu0 0.0
  %4157 = vmatprep.mubr.f32.mxu0 0.0
  %4158 = vmatmul.mubr.f32.gmra.mxu0 %v4091
  %v4159 = vpop.f32.mrf.mxu0
  %v4160 = vadd.f32 0.0, %v4159
  %v4161 = vpop.f32.mrf.mxu0
  %4162 = vdwg.mxu0
  %4163 = vrot.lane.b32.xlu0 %v3338, 96
  %v4164 = vpop.permute.xlu0 %4163
  %4165 = vrot.lane.b32.xlu0 %v3343, 96
  %v4166 = vpop.permute.xlu0 %4165
  %v4170 = vsel %vm2278, %v4080, 0
  %4172 = vmatprep.subr.mxu0 0.0
  %4173 = vmatpush1.msra.mxu0 0.0
  %4174 = vmatprep.subr.mxu0 0.0
  %4175 = vmatpush1.msra.mxu0 0.0
  %4176 = vmatprep.subr.mxu0 0.0
  %4177 = vmatpush1.msra.mxu0 0.0
  %4178 = vmatprep.subr.mxu0 0.0
  %4179 = vmatpush1.msra.mxu0 0.0
  %4180 = vmatprep.subr.mxu0 0.0
  %4181 = vmatpush1.msra.mxu0 0.0
  %4182 = vmatprep.subr.mxu0 0.0
  %4183 = vmatpush1.msra.mxu0 0.0
  %4184 = vmatprep.subr.mxu0 0.0
  %4185 = vmatpush1.msra.mxu0 0.0
  %4186 = vmatprep.subr.mxu0 0.0
  %4187 = vmatpush1.msra.mxu0 0.0
  %4188 = vmatprep.subr.mxu0 0.0
  %4189 = vmatpush1.msra.mxu0 0.0
  %4190 = vmatprep.subr.mxu0 0.0
  %4191 = vmatpush1.msra.mxu0 0.0
  %4192 = vmatprep.subr.mxu0 0.0
  %4193 = vmatpush1.msra.mxu0 0.0
  %4194 = vmatprep.subr.mxu0 0.0
  %4195 = vmatpush1.msra.mxu0 0.0
  %4196 = vmatprep.subr.mxu0 0.0
  %4197 = vmatpush1.msra.mxu0 0.0
  %4198 = vmatprep.subr.mxu0 0.0
  %4199 = vmatpush1.msra.mxu0 0.0
  %4200 = vmatprep.subr.mxu0 0.0
  %4201 = vmatpush1.msra.mxu0 %v4166
  %4202 = vmatprep.subr.mxu0 0.0
  %4203 = vmatpush1.msra.mxu0 %v4164
  %4204 = vmatprep.subr.mxu0 0.0
  %4205 = vmatpush2.msra.mxu0 0.0
  %4206 = vmatprep.subr.mxu0 0.0
  %4207 = vmatpush2.msra.mxu0 0.0
  %4208 = vmatprep.subr.mxu0 0.0
  %4209 = vmatpush2.msra.mxu0 0.0
  %4210 = vmatprep.subr.mxu0 0.0
  %4211 = vmatpush2.msra.mxu0 0.0
  %4212 = vmatprep.subr.mxu0 0.0
  %4213 = vmatpush2.msra.mxu0 0.0
  %4214 = vmatprep.subr.mxu0 0.0
  %4215 = vmatpush2.msra.mxu0 0.0
  %4216 = vmatprep.subr.mxu0 0.0
  %4217 = vmatpush2.msra.mxu0 0.0
  %4218 = vmatprep.subr.mxu0 0.0
  %4219 = vmatpush2.msra.mxu0 0.0
  %4220 = vmatprep.subr.mxu0 0.0
  %4221 = vmatpush2.msra.mxu0 0.0
  %4222 = vmatprep.subr.mxu0 0.0
  %4223 = vmatpush2.msra.mxu0 0.0
  %4224 = vmatprep.subr.mxu0 0.0
  %4225 = vmatpush2.msra.mxu0 0.0
  %4226 = vmatprep.subr.mxu0 0.0
  %4227 = vmatpush2.msra.mxu0 0.0
  %4228 = vmatprep.subr.mxu0 0.0
  %4229 = vmatpush2.msra.mxu0 0.0
  %4230 = vmatprep.subr.mxu0 0.0
  %4231 = vmatpush2.msra.mxu0 0.0
  %4232 = vmatprep.subr.mxu0 0.0
  %4233 = vmatpush2.msra.mxu0 0.0
  %4234 = vmatprep.subr.mxu0 0.0
  %4235 = vmatpush2.msra.mxu0 0.0
  %4236 = vmatprep.mubr.f32.mxu0 0.0
  %4237 = vmatmul.mubr.f32.gmra.mxu0 %v4170
  %v4238 = vpop.f32.mrf.mxu0
  %v4239 = vadd.f32 0.0, %v4238
  %v4240 = vpop.f32.mrf.mxu0
  %4241 = vdwg.mxu0
  %4242 = vrot.lane.b32.xlu0 %v3328, 88
  %v4243 = vpop.permute.xlu0 %4242
  %4244 = vrot.lane.b32.xlu0 %v3333, 88
  %v4245 = vpop.permute.xlu0 %4244
  %v4249 = vsel %vm2278, %v4077, 0
  %4251 = vmatprep.subr.mxu0 0.0
  %4252 = vmatpush1.msra.mxu0 0.0
  %4253 = vmatprep.subr.mxu0 0.0
  %4254 = vmatpush1.msra.mxu0 0.0
  %4255 = vmatprep.subr.mxu0 0.0
  %4256 = vmatpush1.msra.mxu0 0.0
  %4257 = vmatprep.subr.mxu0 0.0
  %4258 = vmatpush1.msra.mxu0 0.0
  %4259 = vmatprep.subr.mxu0 0.0
  %4260 = vmatpush1.msra.mxu0 0.0
  %4261 = vmatprep.subr.mxu0 0.0
  %4262 = vmatpush1.msra.mxu0 0.0
  %4263 = vmatprep.subr.mxu0 0.0
  %4264 = vmatpush1.msra.mxu0 0.0
  %4265 = vmatprep.subr.mxu0 0.0
  %4266 = vmatpush1.msra.mxu0 0.0
  %4267 = vmatprep.subr.mxu0 0.0
  %4268 = vmatpush1.msra.mxu0 0.0
  %4269 = vmatprep.subr.mxu0 0.0
  %4270 = vmatpush1.msra.mxu0 0.0
  %4271 = vmatprep.subr.mxu0 0.0
  %4272 = vmatpush1.msra.mxu0 0.0
  %4273 = vmatprep.subr.mxu0 0.0
  %4274 = vmatpush1.msra.mxu0 0.0
  %4275 = vmatprep.subr.mxu0 0.0
  %4276 = vmatpush1.msra.mxu0 0.0
  %4277 = vmatprep.subr.mxu0 0.0
  %4278 = vmatpush1.msra.mxu0 0.0
  %4279 = vmatprep.subr.mxu0 0.0
  %4280 = vmatpush1.msra.mxu0 %v4245
  %4281 = vmatprep.subr.mxu0 0.0
  %4282 = vmatpush1.msra.mxu0 %v4243
  %4283 = vmatprep.subr.mxu0 0.0
  %4284 = vmatpush2.msra.mxu0 0.0
  %4285 = vmatprep.subr.mxu0 0.0
  %4286 = vmatpush2.msra.mxu0 0.0
  %4287 = vmatprep.subr.mxu0 0.0
  %4288 = vmatpush2.msra.mxu0 0.0
  %4289 = vmatprep.subr.mxu0 0.0
  %4290 = vmatpush2.msra.mxu0 0.0
  %4291 = vmatprep.subr.mxu0 0.0
  %4292 = vmatpush2.msra.mxu0 0.0
  %4293 = vmatprep.subr.mxu0 0.0
  %4294 = vmatpush2.msra.mxu0 0.0
  %4295 = vmatprep.subr.mxu0 0.0
  %4296 = vmatpush2.msra.mxu0 0.0
  %4297 = vmatprep.subr.mxu0 0.0
  %4298 = vmatpush2.msra.mxu0 0.0
  %4299 = vmatprep.subr.mxu0 0.0
  %4300 = vmatpush2.msra.mxu0 0.0
  %4301 = vmatprep.subr.mxu0 0.0
  %4302 = vmatpush2.msra.mxu0 0.0
  %4303 = vmatprep.subr.mxu0 0.0
  %4304 = vmatpush2.msra.mxu0 0.0
  %4305 = vmatprep.subr.mxu0 0.0
  %4306 = vmatpush2.msra.mxu0 0.0
  %4307 = vmatprep.subr.mxu0 0.0
  %4308 = vmatpush2.msra.mxu0 0.0
  %4309 = vmatprep.subr.mxu0 0.0
  %4310 = vmatpush2.msra.mxu0 0.0
  %4311 = vmatprep.subr.mxu0 0.0
  %4312 = vmatpush2.msra.mxu0 0.0
  %4313 = vmatprep.subr.mxu0 0.0
  %4314 = vmatpush2.msra.mxu0 0.0
  %4315 = vmatprep.mubr.f32.mxu0 0.0
  %4316 = vmatmul.mubr.f32.gmra.mxu0 %v4249
  %v4317 = vpop.f32.mrf.mxu0
  %v4318 = vadd.f32 0.0, %v4317
  %v4319 = vpop.f32.mrf.mxu0
  %4320 = vdwg.mxu0
  %4321 = vrot.lane.b32.xlu0 %v3338, 88
  %v4322 = vpop.permute.xlu0 %4321
  %4323 = vrot.lane.b32.xlu0 %v3343, 88
  %v4324 = vpop.permute.xlu0 %4323
  %v4328 = vsel %vm2278, %v4081, 0
  %4330 = vmatprep.subr.mxu0 0.0
  %4331 = vmatpush1.msra.mxu0 0.0
  %4332 = vmatprep.subr.mxu0 0.0
  %4333 = vmatpush1.msra.mxu0 0.0
  %4334 = vmatprep.subr.mxu0 0.0
  %4335 = vmatpush1.msra.mxu0 0.0
  %4336 = vmatprep.subr.mxu0 0.0
  %4337 = vmatpush1.msra.mxu0 0.0
  %4338 = vmatprep.subr.mxu0 0.0
  %4339 = vmatpush1.msra.mxu0 0.0
  %4340 = vmatprep.subr.mxu0 0.0
  %4341 = vmatpush1.msra.mxu0 0.0
  %4342 = vmatprep.subr.mxu0 0.0
  %4343 = vmatpush1.msra.mxu0 0.0
  %4344 = vmatprep.subr.mxu0 0.0
  %4345 = vmatpush1.msra.mxu0 0.0
  %4346 = vmatprep.subr.mxu0 0.0
  %4347 = vmatpush1.msra.mxu0 0.0
  %4348 = vmatprep.subr.mxu0 0.0
  %4349 = vmatpush1.msra.mxu0 0.0
  %4350 = vmatprep.subr.mxu0 0.0
  %4351 = vmatpush1.msra.mxu0 0.0
  %4352 = vmatprep.subr.mxu0 0.0
  %4353 = vmatpush1.msra.mxu0 0.0
  %4354 = vmatprep.subr.mxu0 0.0
  %4355 = vmatpush1.msra.mxu0 0.0
  %4356 = vmatprep.subr.mxu0 0.0
  %4357 = vmatpush1.msra.mxu0 0.0
  %4358 = vmatprep.subr.mxu0 0.0
  %4359 = vmatpush1.msra.mxu0 %v4324
  %4360 = vmatprep.subr.mxu0 0.0
  %4361 = vmatpush1.msra.mxu0 %v4322
  %4362 = vmatprep.subr.mxu0 0.0
  %4363 = vmatpush2.msra.mxu0 0.0
  %4364 = vmatprep.subr.mxu0 0.0
  %4365 = vmatpush2.msra.mxu0 0.0
  %4366 = vmatprep.subr.mxu0 0.0
  %4367 = vmatpush2.msra.mxu0 0.0
  %4368 = vmatprep.subr.mxu0 0.0
  %4369 = vmatpush2.msra.mxu0 0.0
  %4370 = vmatprep.subr.mxu0 0.0
  %4371 = vmatpush2.msra.mxu0 0.0
  %4372 = vmatprep.subr.mxu0 0.0
  %4373 = vmatpush2.msra.mxu0 0.0
  %4374 = vmatprep.subr.mxu0 0.0
  %4375 = vmatpush2.msra.mxu0 0.0
  %4376 = vmatprep.subr.mxu0 0.0
  %4377 = vmatpush2.msra.mxu0 0.0
  %4378 = vmatprep.subr.mxu0 0.0
  %4379 = vmatpush2.msra.mxu0 0.0
  %4380 = vmatprep.subr.mxu0 0.0
  %4381 = vmatpush2.msra.mxu0 0.0
  %4382 = vmatprep.subr.mxu0 0.0
  %4383 = vmatpush2.msra.mxu0 0.0
  %4384 = vmatprep.subr.mxu0 0.0
  %4385 = vmatpush2.msra.mxu0 0.0
  %4386 = vmatprep.subr.mxu0 0.0
  %4387 = vmatpush2.msra.mxu0 0.0
  %4388 = vmatprep.subr.mxu0 0.0
  %4389 = vmatpush2.msra.mxu0 0.0
  %4390 = vmatprep.subr.mxu0 0.0
  %4391 = vmatpush2.msra.mxu0 0.0
  %4392 = vmatprep.subr.mxu0 0.0
  %4393 = vmatpush2.msra.mxu0 0.0
  %4394 = vmatprep.mubr.f32.mxu0 0.0
  %4395 = vmatmul.mubr.f32.gmra.mxu0 %v4328
  %v4396 = vpop.f32.mrf.mxu0
  %v4397 = vadd.f32 0.0, %v4396
  %v4398 = vpop.f32.mrf.mxu0
  %4399 = vdwg.mxu0
  %4400 = vrot.lane.b32.xlu0 %v3328, 80
  %v4401 = vpop.permute.xlu0 %4400
  %4402 = vrot.lane.b32.xlu0 %v3333, 80
  %v4403 = vpop.permute.xlu0 %4402
  %v4407 = vsel %vm2278, %v4078, 0
  %4409 = vmatprep.subr.mxu0 0.0
  %4410 = vmatpush1.msra.mxu0 0.0
  %4411 = vmatprep.subr.mxu0 0.0
  %4412 = vmatpush1.msra.mxu0 0.0
  %4413 = vmatprep.subr.mxu0 0.0
  %4414 = vmatpush1.msra.mxu0 0.0
  %4415 = vmatprep.subr.mxu0 0.0
  %4416 = vmatpush1.msra.mxu0 0.0
  %4417 = vmatprep.subr.mxu0 0.0
  %4418 = vmatpush1.msra.mxu0 0.0
  %4419 = vmatprep.subr.mxu0 0.0
  %4420 = vmatpush1.msra.mxu0 0.0
  %4421 = vmatprep.subr.mxu0 0.0
  %4422 = vmatpush1.msra.mxu0 0.0
  %4423 = vmatprep.subr.mxu0 0.0
  %4424 = vmatpush1.msra.mxu0 0.0
  %4425 = vmatprep.subr.mxu0 0.0
  %4426 = vmatpush1.msra.mxu0 0.0
  %4427 = vmatprep.subr.mxu0 0.0
  %4428 = vmatpush1.msra.mxu0 0.0
  %4429 = vmatprep.subr.mxu0 0.0
  %4430 = vmatpush1.msra.mxu0 0.0
  %4431 = vmatprep.subr.mxu0 0.0
  %4432 = vmatpush1.msra.mxu0 0.0
  %4433 = vmatprep.subr.mxu0 0.0
  %4434 = vmatpush1.msra.mxu0 0.0
  %4435 = vmatprep.subr.mxu0 0.0
  %4436 = vmatpush1.msra.mxu0 0.0
  %4437 = vmatprep.subr.mxu0 0.0
  %4438 = vmatpush1.msra.mxu0 %v4403
  %4439 = vmatprep.subr.mxu0 0.0
  %4440 = vmatpush1.msra.mxu0 %v4401
  %4441 = vmatprep.subr.mxu0 0.0
  %4442 = vmatpush2.msra.mxu0 0.0
  %4443 = vmatprep.subr.mxu0 0.0
  %4444 = vmatpush2.msra.mxu0 0.0
  %4445 = vmatprep.subr.mxu0 0.0
  %4446 = vmatpush2.msra.mxu0 0.0
  %4447 = vmatprep.subr.mxu0 0.0
  %4448 = vmatpush2.msra.mxu0 0.0
  %4449 = vmatprep.subr.mxu0 0.0
  %4450 = vmatpush2.msra.mxu0 0.0
  %4451 = vmatprep.subr.mxu0 0.0
  %4452 = vmatpush2.msra.mxu0 0.0
  %4453 = vmatprep.subr.mxu0 0.0
  %4454 = vmatpush2.msra.mxu0 0.0
  %4455 = vmatprep.subr.mxu0 0.0
  %4456 = vmatpush2.msra.mxu0 0.0
  %4457 = vmatprep.subr.mxu0 0.0
  %4458 = vmatpush2.msra.mxu0 0.0
  %4459 = vmatprep.subr.mxu0 0.0
  %4460 = vmatpush2.msra.mxu0 0.0
  %4461 = vmatprep.subr.mxu0 0.0
  %4462 = vmatpush2.msra.mxu0 0.0
  %4463 = vmatprep.subr.mxu0 0.0
  %4464 = vmatpush2.msra.mxu0 0.0
  %4465 = vmatprep.subr.mxu0 0.0
  %4466 = vmatpush2.msra.mxu0 0.0
  %4467 = vmatprep.subr.mxu0 0.0
  %4468 = vmatpush2.msra.mxu0 0.0
  %4469 = vmatprep.subr.mxu0 0.0
  %4470 = vmatpush2.msra.mxu0 0.0
  %4471 = vmatprep.subr.mxu0 0.0
  %4472 = vmatpush2.msra.mxu0 0.0
  %4473 = vmatprep.mubr.f32.mxu0 0.0
  %4474 = vmatmul.mubr.f32.gmra.mxu0 %v4407
  %v4475 = vpop.f32.mrf.mxu0
  %v4476 = vadd.f32 0.0, %v4475
  %v4477 = vpop.f32.mrf.mxu0
  %4478 = vdwg.mxu0
  %4479 = vrot.lane.b32.xlu0 %v3338, 80
  %v4480 = vpop.permute.xlu0 %4479
  %4481 = vrot.lane.b32.xlu0 %v3343, 80
  %v4482 = vpop.permute.xlu0 %4481
  %v4486 = vsel %vm2278, %v4082, 0
  %4488 = vmatprep.subr.mxu0 0.0
  %4489 = vmatpush1.msra.mxu0 0.0
  %4490 = vmatprep.subr.mxu0 0.0
  %4491 = vmatpush1.msra.mxu0 0.0
  %4492 = vmatprep.subr.mxu0 0.0
  %4493 = vmatpush1.msra.mxu0 0.0
  %4494 = vmatprep.subr.mxu0 0.0
  %4495 = vmatpush1.msra.mxu0 0.0
  %4496 = vmatprep.subr.mxu0 0.0
  %4497 = vmatpush1.msra.mxu0 0.0
  %4498 = vmatprep.subr.mxu0 0.0
  %4499 = vmatpush1.msra.mxu0 0.0
  %4500 = vmatprep.subr.mxu0 0.0
  %4501 = vmatpush1.msra.mxu0 0.0
  %4502 = vmatprep.subr.mxu0 0.0
  %4503 = vmatpush1.msra.mxu0 0.0
  %4504 = vmatprep.subr.mxu0 0.0
  %4505 = vmatpush1.msra.mxu0 0.0
  %4506 = vmatprep.subr.mxu0 0.0
  %4507 = vmatpush1.msra.mxu0 0.0
  %4508 = vmatprep.subr.mxu0 0.0
  %4509 = vmatpush1.msra.mxu0 0.0
  %4510 = vmatprep.subr.mxu0 0.0
  %4511 = vmatpush1.msra.mxu0 0.0
  %4512 = vmatprep.subr.mxu0 0.0
  %4513 = vmatpush1.msra.mxu0 0.0
  %4514 = vmatprep.subr.mxu0 0.0
  %4515 = vmatpush1.msra.mxu0 0.0
  %4516 = vmatprep.subr.mxu0 0.0
  %4517 = vmatpush1.msra.mxu0 %v4482
  %4518 = vmatprep.subr.mxu0 0.0
  %4519 = vmatpush1.msra.mxu0 %v4480
  %4520 = vmatprep.subr.mxu0 0.0
  %4521 = vmatpush2.msra.mxu0 0.0
  %4522 = vmatprep.subr.mxu0 0.0
  %4523 = vmatpush2.msra.mxu0 0.0
  %4524 = vmatprep.subr.mxu0 0.0
  %4525 = vmatpush2.msra.mxu0 0.0
  %4526 = vmatprep.subr.mxu0 0.0
  %4527 = vmatpush2.msra.mxu0 0.0
  %4528 = vmatprep.subr.mxu0 0.0
  %4529 = vmatpush2.msra.mxu0 0.0
  %4530 = vmatprep.subr.mxu0 0.0
  %4531 = vmatpush2.msra.mxu0 0.0
  %4532 = vmatprep.subr.mxu0 0.0
  %4533 = vmatpush2.msra.mxu0 0.0
  %4534 = vmatprep.subr.mxu0 0.0
  %4535 = vmatpush2.msra.mxu0 0.0
  %4536 = vmatprep.subr.mxu0 0.0
  %4537 = vmatpush2.msra.mxu0 0.0
  %4538 = vmatprep.subr.mxu0 0.0
  %4539 = vmatpush2.msra.mxu0 0.0
  %4540 = vmatprep.subr.mxu0 0.0
  %4541 = vmatpush2.msra.mxu0 0.0
  %4542 = vmatprep.subr.mxu0 0.0
  %4543 = vmatpush2.msra.mxu0 0.0
  %4544 = vmatprep.subr.mxu0 0.0
  %4545 = vmatpush2.msra.mxu0 0.0
  %4546 = vmatprep.subr.mxu0 0.0
  %4547 = vmatpush2.msra.mxu0 0.0
  %4548 = vmatprep.subr.mxu0 0.0
  %4549 = vmatpush2.msra.mxu0 0.0
  %4550 = vmatprep.subr.mxu0 0.0
  %4551 = vmatpush2.msra.mxu0 0.0
  %4552 = vmatprep.mubr.f32.mxu0 0.0
  %4553 = vmatmul.mubr.f32.gmra.mxu0 %v4486
  %v4554 = vpop.f32.mrf.mxu0
  %v4555 = vadd.f32 0.0, %v4554
  %v4556 = vpop.f32.mrf.mxu0
  %4557 = vdwg.mxu0
  %4558 = vrot.lane.b32.xlu0 %v3328, 72
  %v4559 = vpop.permute.xlu0 %4558
  %4560 = vrot.lane.b32.xlu0 %v3333, 72
  %v4561 = vpop.permute.xlu0 %4560
  %v4565 = vsel %vm2278, %v4079, 0
  %4567 = vmatprep.subr.mxu0 0.0
  %4568 = vmatpush1.msra.mxu0 0.0
  %4569 = vmatprep.subr.mxu0 0.0
  %4570 = vmatpush1.msra.mxu0 0.0
  %4571 = vmatprep.subr.mxu0 0.0
  %4572 = vmatpush1.msra.mxu0 0.0
  %4573 = vmatprep.subr.mxu0 0.0
  %4574 = vmatpush1.msra.mxu0 0.0
  %4575 = vmatprep.subr.mxu0 0.0
  %4576 = vmatpush1.msra.mxu0 0.0
  %4577 = vmatprep.subr.mxu0 0.0
  %4578 = vmatpush1.msra.mxu0 0.0
  %4579 = vmatprep.subr.mxu0 0.0
  %4580 = vmatpush1.msra.mxu0 0.0
  %4581 = vmatprep.subr.mxu0 0.0
  %4582 = vmatpush1.msra.mxu0 0.0
  %4583 = vmatprep.subr.mxu0 0.0
  %4584 = vmatpush1.msra.mxu0 0.0
  %4585 = vmatprep.subr.mxu0 0.0
  %4586 = vmatpush1.msra.mxu0 0.0
  %4587 = vmatprep.subr.mxu0 0.0
  %4588 = vmatpush1.msra.mxu0 0.0
  %4589 = vmatprep.subr.mxu0 0.0
  %4590 = vmatpush1.msra.mxu0 0.0
  %4591 = vmatprep.subr.mxu0 0.0
  %4592 = vmatpush1.msra.mxu0 0.0
  %4593 = vmatprep.subr.mxu0 0.0
  %4594 = vmatpush1.msra.mxu0 0.0
  %4595 = vmatprep.subr.mxu0 0.0
  %4596 = vmatpush1.msra.mxu0 %v4561
  %4597 = vmatprep.subr.mxu0 0.0
  %4598 = vmatpush1.msra.mxu0 %v4559
  %4599 = vmatprep.subr.mxu0 0.0
  %4600 = vmatpush2.msra.mxu0 0.0
  %4601 = vmatprep.subr.mxu0 0.0
  %4602 = vmatpush2.msra.mxu0 0.0
  %4603 = vmatprep.subr.mxu0 0.0
  %4604 = vmatpush2.msra.mxu0 0.0
  %4605 = vmatprep.subr.mxu0 0.0
  %4606 = vmatpush2.msra.mxu0 0.0
  %4607 = vmatprep.subr.mxu0 0.0
  %4608 = vmatpush2.msra.mxu0 0.0
  %4609 = vmatprep.subr.mxu0 0.0
  %4610 = vmatpush2.msra.mxu0 0.0
  %4611 = vmatprep.subr.mxu0 0.0
  %4612 = vmatpush2.msra.mxu0 0.0
  %4613 = vmatprep.subr.mxu0 0.0
  %4614 = vmatpush2.msra.mxu0 0.0
  %4615 = vmatprep.subr.mxu0 0.0
  %4616 = vmatpush2.msra.mxu0 0.0
  %4617 = vmatprep.subr.mxu0 0.0
  %4618 = vmatpush2.msra.mxu0 0.0
  %4619 = vmatprep.subr.mxu0 0.0
  %4620 = vmatpush2.msra.mxu0 0.0
  %4621 = vmatprep.subr.mxu0 0.0
  %4622 = vmatpush2.msra.mxu0 0.0
  %4623 = vmatprep.subr.mxu0 0.0
  %4624 = vmatpush2.msra.mxu0 0.0
  %4625 = vmatprep.subr.mxu0 0.0
  %4626 = vmatpush2.msra.mxu0 0.0
  %4627 = vmatprep.subr.mxu0 0.0
  %4628 = vmatpush2.msra.mxu0 0.0
  %4629 = vmatprep.subr.mxu0 0.0
  %4630 = vmatpush2.msra.mxu0 0.0
  %4631 = vmatprep.mubr.f32.mxu0 0.0
  %4632 = vmatmul.mubr.f32.gmra.mxu0 %v4565
  %v4633 = vpop.f32.mrf.mxu0
  %v4634 = vadd.f32 0.0, %v4633
  %v4635 = vpop.f32.mrf.mxu0
  %4636 = vdwg.mxu0
  %4637 = vrot.lane.b32.xlu0 %v3338, 72
  %v4638 = vpop.permute.xlu0 %4637
  %4639 = vrot.lane.b32.xlu0 %v3343, 72
  %v4640 = vpop.permute.xlu0 %4639
  %v4644 = vsel %vm2278, %v4083, 0
  %4646 = vmatprep.subr.mxu0 0.0
  %4647 = vmatpush1.msra.mxu0 0.0
  %4648 = vmatprep.subr.mxu0 0.0
  %4649 = vmatpush1.msra.mxu0 0.0
  %4650 = vmatprep.subr.mxu0 0.0
  %4651 = vmatpush1.msra.mxu0 0.0
  %4652 = vmatprep.subr.mxu0 0.0
  %4653 = vmatpush1.msra.mxu0 0.0
  %4654 = vmatprep.subr.mxu0 0.0
  %4655 = vmatpush1.msra.mxu0 0.0
  %4656 = vmatprep.subr.mxu0 0.0
  %4657 = vmatpush1.msra.mxu0 0.0
  %4658 = vmatprep.subr.mxu0 0.0
  %4659 = vmatpush1.msra.mxu0 0.0
  %4660 = vmatprep.subr.mxu0 0.0
  %4661 = vmatpush1.msra.mxu0 0.0
  %4662 = vmatprep.subr.mxu0 0.0
  %4663 = vmatpush1.msra.mxu0 0.0
  %4664 = vmatprep.subr.mxu0 0.0
  %4665 = vmatpush1.msra.mxu0 0.0
  %4666 = vmatprep.subr.mxu0 0.0
  %4667 = vmatpush1.msra.mxu0 0.0
  %4668 = vmatprep.subr.mxu0 0.0
  %4669 = vmatpush1.msra.mxu0 0.0
  %4670 = vmatprep.subr.mxu0 0.0
  %4671 = vmatpush1.msra.mxu0 0.0
  %4672 = vmatprep.subr.mxu0 0.0
  %4673 = vmatpush1.msra.mxu0 0.0
  %4674 = vmatprep.subr.mxu0 0.0
  %4675 = vmatpush1.msra.mxu0 %v4640
  %4676 = vmatprep.subr.mxu0 0.0
  %4677 = vmatpush1.msra.mxu0 %v4638
  %4678 = vmatprep.subr.mxu0 0.0
  %4679 = vmatpush2.msra.mxu0 0.0
  %4680 = vmatprep.subr.mxu0 0.0
  %4681 = vmatpush2.msra.mxu0 0.0
  %4682 = vmatprep.subr.mxu0 0.0
  %4683 = vmatpush2.msra.mxu0 0.0
  %4684 = vmatprep.subr.mxu0 0.0
  %4685 = vmatpush2.msra.mxu0 0.0
  %4686 = vmatprep.subr.mxu0 0.0
  %4687 = vmatpush2.msra.mxu0 0.0
  %4688 = vmatprep.subr.mxu0 0.0
  %4689 = vmatpush2.msra.mxu0 0.0
  %4690 = vmatprep.subr.mxu0 0.0
  %4691 = vmatpush2.msra.mxu0 0.0
  %4692 = vmatprep.subr.mxu0 0.0
  %4693 = vmatpush2.msra.mxu0 0.0
  %4694 = vmatprep.subr.mxu0 0.0
  %4695 = vmatpush2.msra.mxu0 0.0
  %4696 = vmatprep.subr.mxu0 0.0
  %4697 = vmatpush2.msra.mxu0 0.0
  %4698 = vmatprep.subr.mxu0 0.0
  %4699 = vmatpush2.msra.mxu0 0.0
  %4700 = vmatprep.subr.mxu0 0.0
  %4701 = vmatpush2.msra.mxu0 0.0
  %4702 = vmatprep.subr.mxu0 0.0
  %4703 = vmatpush2.msra.mxu0 0.0
  %4704 = vmatprep.subr.mxu0 0.0
  %4705 = vmatpush2.msra.mxu0 0.0
  %4706 = vmatprep.subr.mxu0 0.0
  %4707 = vmatpush2.msra.mxu0 0.0
  %4708 = vmatprep.subr.mxu0 0.0
  %4709 = vmatpush2.msra.mxu0 0.0
  %4710 = vmatprep.mubr.f32.mxu0 0.0
  %4711 = vmatmul.mubr.f32.gmra.mxu0 %v4644
  %v4712 = vpop.f32.mrf.mxu0
  %v4713 = vadd.f32 0.0, %v4712
  %v4714 = vpop.f32.mrf.mxu0
  %4715 = vdwg.mxu0
  %4718 = vrot.lane.b32.xlu0 %v4318, 8
  %v4719 = vpop.permute.xlu0 %4718
  %4720 = vrot.lane.b32.xlu0 %v4397, 8
  %v4721 = vpop.permute.xlu0 %4720
  %4726 = vrot.lane.b32.xlu0 %v4476, 16
  %v4727 = vpop.permute.xlu0 %4726
  %4728 = vrot.lane.b32.xlu0 %v4555, 16
  %v4729 = vpop.permute.xlu0 %4728
  %4734 = vrot.lane.b32.xlu0 %v4634, 24
  %v4735 = vpop.permute.xlu0 %4734
  %4736 = vrot.lane.b32.xlu0 %v4713, 24
  %v4737 = vpop.permute.xlu0 %4736
  %v4740 = vsel %vm1627, %v4160, %v4719
  %v4741 = vsel %vm1627, %v4239, %v4721
  %v4742 = vsel %vm2278, %v4740, %v4727
  %v4743 = vsel %vm2278, %v4741, %v4729
  %v4744 = vsel %vm3027, %v4742, %v4735
  %v4745 = vsel %vm3027, %v4743, %v4737
  %v4746 = vld [vmem:[%s5 + $0xb8] sm:$0xff]
  %v4747 = vld [vmem:[%s5 + $0xc0] sm:$0xff]
  %v4748 = vld [vmem:[%s5 + $0xc8] sm:$0xff]
  %v4749 = vld [vmem:[%s5 + $0xd0] sm:$0xff]
  %v4750 = vld [vmem:[%s5 + $0xd] sm:$0x1]
  %v4751 = vlaneseq
  %v4752 = vshrl.u32 %v4751, 7
  %v4753 = vsub.s32 0, %v4752
  %v4754 = vrot.slane %v4750, %v4753
  %v4756 = vsel %vm805, %v4744, 0
  %v4759 = vsel %vm805, %v4745, 0
  %4761 = vmatprep.subr.mxu0 0.0
  %4762 = vmatpush1.msra.mxu0 0.0
  %4763 = vmatprep.subr.mxu0 0.0
  %4764 = vmatpush1.msra.mxu0 0.0
  %4765 = vmatprep.subr.mxu0 0.0
  %4766 = vmatpush1.msra.mxu0 0.0
  %4767 = vmatprep.subr.mxu0 0.0
  %4768 = vmatpush1.msra.mxu0 0.0
  %4769 = vmatprep.subr.mxu0 0.0
  %4770 = vmatpush1.msra.mxu0 0.0
  %4771 = vmatprep.subr.mxu0 0.0
  %4772 = vmatpush1.msra.mxu0 0.0
  %4773 = vmatprep.subr.mxu0 0.0
  %4774 = vmatpush1.msra.mxu0 0.0
  %4775 = vmatprep.subr.mxu0 0.0
  %4776 = vmatpush1.msra.mxu0 0.0
  %4777 = vmatprep.subr.mxu0 0.0
  %4778 = vmatpush1.msra.mxu0 0.0
  %4779 = vmatprep.subr.mxu0 0.0
  %4780 = vmatpush1.msra.mxu0 0.0
  %4781 = vmatprep.subr.mxu0 0.0
  %4782 = vmatpush1.msra.mxu0 0.0
  %4783 = vmatprep.subr.mxu0 0.0
  %4784 = vmatpush1.msra.mxu0 0.0
  %4785 = vmatprep.subr.mxu0 0.0
  %4786 = vmatpush1.msra.mxu0 %v4749
  %4787 = vmatprep.subr.mxu0 0.0
  %4788 = vmatpush1.msra.mxu0 %v4748
  %4789 = vmatprep.subr.mxu0 0.0
  %4790 = vmatpush1.msra.mxu0 %v4747
  %4791 = vmatprep.subr.mxu0 0.0
  %4792 = vmatpush1.msra.mxu0 %v4746
  %4793 = vmatprep.subr.mxu0 0.0
  %4794 = vmatpush2.msra.mxu0 0.0
  %4795 = vmatprep.subr.mxu0 0.0
  %4796 = vmatpush2.msra.mxu0 0.0
  %4797 = vmatprep.subr.mxu0 0.0
  %4798 = vmatpush2.msra.mxu0 0.0
  %4799 = vmatprep.subr.mxu0 0.0
  %4800 = vmatpush2.msra.mxu0 0.0
  %4801 = vmatprep.subr.mxu0 0.0
  %4802 = vmatpush2.msra.mxu0 0.0
  %4803 = vmatprep.subr.mxu0 0.0
  %4804 = vmatpush2.msra.mxu0 0.0
  %4805 = vmatprep.subr.mxu0 0.0
  %4806 = vmatpush2.msra.mxu0 0.0
  %4807 = vmatprep.subr.mxu0 0.0
  %4808 = vmatpush2.msra.mxu0 0.0
  %4809 = vmatprep.subr.mxu0 0.0
  %4810 = vmatpush2.msra.mxu0 0.0
  %4811 = vmatprep.subr.mxu0 0.0
  %4812 = vmatpush2.msra.mxu0 0.0
  %4813 = vmatprep.subr.mxu0 0.0
  %4814 = vmatpush2.msra.mxu0 0.0
  %4815 = vmatprep.subr.mxu0 0.0
  %4816 = vmatpush2.msra.mxu0 0.0
  %4817 = vmatprep.subr.mxu0 0.0
  %4818 = vmatpush2.msra.mxu0 0.0
  %4819 = vmatprep.subr.mxu0 0.0
  %4820 = vmatpush2.msra.mxu0 0.0
  %4821 = vmatprep.subr.mxu0 0.0
  %4822 = vmatpush2.msra.mxu0 0.0
  %4823 = vmatprep.subr.mxu0 0.0
  %4824 = vmatpush2.msra.mxu0 0.0
  %4825 = vmatprep.mubr.f32.mxu0 0.0
  %4826 = vmatmul.mubr.f32.gmra.mxu0 %v4756
  %v4827 = vpop.f32.mrf.mxu0
  %v4828 = vadd.f32 %v4754, %v4827
  %v4829 = vpop.f32.mrf.mxu0
  %4830 = vmatprep.mubr.f32.mxu0 0.0
  %4831 = vmatmul.mubr.f32.gmra.mxu0 %v4759
  %v4832 = vpop.f32.mrf.mxu0
  %v4833 = vadd.f32 %v4754, %v4832
  %v4834 = vpop.f32.mrf.mxu0
  %4835 = vdwg.mxu0
  %v4836 = vadd.f32 %v4828, %v3158
  %v4837 = vadd.f32 %v4833, %v3159
  %v4838 = vsel %vm805, %v4836, 0.0
  %4839 = vadd.xlane.f32.xlu0 %v4838
  %v4840 = vpop.xlane.xlu0 %4839
  %v4841 = vsel %vm805, %v4837, 0.0
  %4842 = vadd.xlane.f32.xlu0 %v4841
  %v4843 = vpop.xlane.xlu0 %4842
  %v4844 = vmul.f32 %v4840, %v818
  %v4845 = vmul.f32 %v4843, %v818
  %v4846 = vsub.f32 %v4836, %v4844
  %v4847 = vsub.f32 %v4837, %v4845
  %v4848 = vmul.f32 %v4846, %v4846
  %v4849 = vmul.f32 %v4847, %v4847
  %v4850 = vsel %vm805, %v4848, 0.0
  %4851 = vadd.xlane.f32.xlu0 %v4850
  %v4852 = vpop.xlane.xlu0 %4851
  %v4853 = vsel %vm805, %v4849, 0.0
  %4854 = vadd.xlane.f32.xlu0 %v4853
  %v4855 = vpop.xlane.xlu0 %4854
  %v4856 = vmul.f32 %v4852, %v818
  %v4857 = vmul.f32 %v4855, %v818
  %v4858 = vadd.f32 %v4856, 1e-05
  %v4859 = vadd.f32 %v4857, 1e-05
  %v4860 = vrsqrt.pop %v4858
  %v4861 = vrsqrt.pop %v4859
  %v4862 = vmul.f32 %v4846, %v4860
  %v4863 = vmul.f32 %v4847, %v4861
  %v4864 = vmul.f32 %v4862, %v3151
  %v4865 = vmul.f32 %v4863, %v3151
  %v4866 = vadd.f32 %v4864, %v3157
  %v4867 = vadd.f32 %v4865, %v3157
  %v4868 = vld [vmem:[%s5 + $0xe] sm:$0x1]
  %v4869 = vld [vmem:[%s5 + $0xf] sm:$0x1]
  %v4870 = vsel %vm805, %v4866, 0.0
  %4871 = vadd.xlane.f32.xlu0 %v4870
  %v4872 = vpop.xlane.xlu0 %4871
  %v4873 = vsel %vm805, %v4867, 0.0
  %4874 = vadd.xlane.f32.xlu0 %v4873
  %v4875 = vpop.xlane.xlu0 %4874
  %v4876 = vmul.f32 %v4872, %v818
  %v4877 = vmul.f32 %v4875, %v818
  %v4878 = vsub.f32 %v4866, %v4876
  %v4879 = vsub.f32 %v4867, %v4877
  %v4880 = vmul.f32 %v4878, %v4878
  %v4881 = vmul.f32 %v4879, %v4879
  %v4882 = vsel %vm805, %v4880, 0.0
  %4883 = vadd.xlane.f32.xlu0 %v4882
  %v4884 = vpop.xlane.xlu0 %4883
  %v4885 = vsel %vm805, %v4881, 0.0
  %4886 = vadd.xlane.f32.xlu0 %v4885
  %v4887 = vpop.xlane.xlu0 %4886
  %v4888 = vmul.f32 %v4884, %v818
  %v4889 = vmul.f32 %v4887, %v818
  %v4890 = vadd.f32 %v4888, 1e-05
  %v4891 = vadd.f32 %v4889, 1e-05
  %v4892 = vrsqrt.pop %v4890
  %v4893 = vrsqrt.pop %v4891
  %v4894 = vmul.f32 %v4878, %v4892
  %v4895 = vmul.f32 %v4879, %v4893
  %v4896 = vlaneseq
  %v4897 = vshrl.u32 %v4896, 7
  %v4898 = vsub.s32 0, %v4897
  %v4899 = vrot.slane %v4868, %v4898
  %v4900 = vmul.f32 %v4894, %v4899
  %v4901 = vmul.f32 %v4895, %v4899
  %v4902 = vlaneseq
  %v4903 = vshrl.u32 %v4902, 7
  %v4904 = vsub.s32 0, %v4903
  %v4905 = vrot.slane %v4869, %v4904
  %v4906 = vadd.f32 %v4900, %v4905
  %v4907 = vadd.f32 %v4901, %v4905
  %v4908 = vld [vmem:[%s5 + $0xd8] sm:$0xff]
  %v4909 = vld [vmem:[%s5 + $0xe0] sm:$0xff]
  %v4910 = vld [vmem:[%s5 + $0xe8] sm:$0xff]
  %v4911 = vld [vmem:[%s5 + $0xf0] sm:$0xff]
  %v4912 = vld [vmem:[%s5 + $0x10] sm:$0x1]
  %v4913 = vlaneseq
  %v4914 = vshrl.u32 %v4913, 7
  %v4915 = vsub.s32 0, %v4914
  %v4916 = vrot.slane %v4912, %v4915
  %v4918 = vsel %vm805, %v4906, 0
  %v4921 = vsel %vm805, %v4907, 0
  %4923 = vmatprep.subr.mxu0 0.0
  %4924 = vmatpush1.msra.mxu0 0.0
  %4925 = vmatprep.subr.mxu0 0.0
  %4926 = vmatpush1.msra.mxu0 0.0
  %4927 = vmatprep.subr.mxu0 0.0
  %4928 = vmatpush1.msra.mxu0 0.0
  %4929 = vmatprep.subr.mxu0 0.0
  %4930 = vmatpush1.msra.mxu0 0.0
  %4931 = vmatprep.subr.mxu0 0.0
  %4932 = vmatpush1.msra.mxu0 0.0
  %4933 = vmatprep.subr.mxu0 0.0
  %4934 = vmatpush1.msra.mxu0 0.0
  %4935 = vmatprep.subr.mxu0 0.0
  %4936 = vmatpush1.msra.mxu0 0.0
  %4937 = vmatprep.subr.mxu0 0.0
  %4938 = vmatpush1.msra.mxu0 0.0
  %4939 = vmatprep.subr.mxu0 0.0
  %4940 = vmatpush1.msra.mxu0 0.0
  %4941 = vmatprep.subr.mxu0 0.0
  %4942 = vmatpush1.msra.mxu0 0.0
  %4943 = vmatprep.subr.mxu0 0.0
  %4944 = vmatpush1.msra.mxu0 0.0
  %4945 = vmatprep.subr.mxu0 0.0
  %4946 = vmatpush1.msra.mxu0 0.0
  %4947 = vmatprep.subr.mxu0 0.0
  %4948 = vmatpush1.msra.mxu0 %v4911
  %4949 = vmatprep.subr.mxu0 0.0
  %4950 = vmatpush1.msra.mxu0 %v4910
  %4951 = vmatprep.subr.mxu0 0.0
  %4952 = vmatpush1.msra.mxu0 %v4909
  %4953 = vmatprep.subr.mxu0 0.0
  %4954 = vmatpush1.msra.mxu0 %v4908
  %4955 = vmatprep.subr.mxu0 0.0
  %4956 = vmatpush2.msra.mxu0 0.0
  %4957 = vmatprep.subr.mxu0 0.0
  %4958 = vmatpush2.msra.mxu0 0.0
  %4959 = vmatprep.subr.mxu0 0.0
  %4960 = vmatpush2.msra.mxu0 0.0
  %4961 = vmatprep.subr.mxu0 0.0
  %4962 = vmatpush2.msra.mxu0 0.0
  %4963 = vmatprep.subr.mxu0 0.0
  %4964 = vmatpush2.msra.mxu0 0.0
  %4965 = vmatprep.subr.mxu0 0.0
  %4966 = vmatpush2.msra.mxu0 0.0
  %4967 = vmatprep.subr.mxu0 0.0
  %4968 = vmatpush2.msra.mxu0 0.0
  %4969 = vmatprep.subr.mxu0 0.0
  %4970 = vmatpush2.msra.mxu0 0.0
  %4971 = vmatprep.subr.mxu0 0.0
  %4972 = vmatpush2.msra.mxu0 0.0
  %4973 = vmatprep.subr.mxu0 0.0
  %4974 = vmatpush2.msra.mxu0 0.0
  %4975 = vmatprep.subr.mxu0 0.0
  %4976 = vmatpush2.msra.mxu0 0.0
  %4977 = vmatprep.subr.mxu0 0.0
  %4978 = vmatpush2.msra.mxu0 0.0
  %4979 = vmatprep.subr.mxu0 0.0
  %4980 = vmatpush2.msra.mxu0 0.0
  %4981 = vmatprep.subr.mxu0 0.0
  %4982 = vmatpush2.msra.mxu0 0.0
  %4983 = vmatprep.subr.mxu0 0.0
  %4984 = vmatpush2.msra.mxu0 0.0
  %4985 = vmatprep.subr.mxu0 0.0
  %4986 = vmatpush2.msra.mxu0 0.0
  %4987 = vmatprep.mubr.f32.mxu0 0.0
  %4988 = vmatmul.mubr.f32.gmra.mxu0 %v4918
  %v4989 = vpop.f32.mrf.mxu0
  %v4990 = vadd.f32 %v4916, %v4989
  %v4991 = vpop.f32.mrf.mxu0
  %4992 = vmatprep.mubr.f32.mxu0 0.0
  %4993 = vmatmul.mubr.f32.gmra.mxu0 %v4921
  %v4994 = vpop.f32.mrf.mxu0
  %v4995 = vadd.f32 %v4916, %v4994
  %v4996 = vpop.f32.mrf.mxu0
  %4997 = vdwg.mxu0
  %v4998 = vmul.f32 %v4990, 0.5
  %v4999 = vmul.f32 %v4995, 0.5
  %v5000 = vmul.f32 %v4990, 0.70710677
  %v5001 = vmul.f32 %v4995, 0.70710677
  %v5002 = verf.f32.pop %v5000
  %v5003 = verf.f32.pop %v5001
  %v5004 = vadd.f32 %v5002, 1.0
  %v5005 = vadd.f32 %v5003, 1.0
  %v5006 = vmul.f32 %v4998, %v5004
  %v5007 = vmul.f32 %v4999, %v5005
  %v5008 = vld [vmem:[%s5 + $0x11] sm:$0x1]
  %v5009 = vld [vmem:[%s5 + $0x12] sm:$0x1]
  %5010 = vadd.xlane.f32.xlu0 %v5006
  %v5011 = vpop.xlane.xlu0 %5010
  %5012 = vadd.xlane.f32.xlu0 %v5007
  %v5013 = vpop.xlane.xlu0 %5012
  %v5014 = vrcp.pop 128.0
  %v5015 = vmul.f32 %v5011, %v5014
  %v5016 = vmul.f32 %v5013, %v5014
  %v5017 = vsub.f32 %v5006, %v5015
  %v5018 = vsub.f32 %v5007, %v5016
  %v5019 = vmul.f32 %v5017, %v5017
  %v5020 = vmul.f32 %v5018, %v5018
  %5021 = vadd.xlane.f32.xlu0 %v5019
  %v5022 = vpop.xlane.xlu0 %5021
  %5023 = vadd.xlane.f32.xlu0 %v5020
  %v5024 = vpop.xlane.xlu0 %5023
  %v5025 = vmul.f32 %v5022, %v5014
  %v5026 = vmul.f32 %v5024, %v5014
  %v5027 = vadd.f32 %v5025, 1e-05
  %v5028 = vadd.f32 %v5026, 1e-05
  %v5029 = vrsqrt.pop %v5027
  %v5030 = vrsqrt.pop %v5028
  %v5031 = vmul.f32 %v5017, %v5029
  %v5032 = vmul.f32 %v5018, %v5030
  %v5033 = vlaneseq
  %v5034 = vshrl.u32 %v5033, 7
  %v5035 = vsub.s32 0, %v5034
  %v5036 = vrot.slane %v5008, %v5035
  %v5037 = vmul.f32 %v5031, %v5036
  %v5038 = vmul.f32 %v5032, %v5036
  %v5039 = vlaneseq
  %v5040 = vshrl.u32 %v5039, 7
  %v5041 = vsub.s32 0, %v5040
  %v5042 = vrot.slane %v5009, %v5041
  %v5043 = vadd.f32 %v5037, %v5042
  %v5044 = vadd.f32 %v5038, %v5042
  %v5045 = vld [vmem:[%s5 + $0xf8] sm:$0xff]
  %v5046 = vld [vmem:[%s5 + $0x100] sm:$0xff]
  %v5047 = vld [vmem:[%s5 + $0x108] sm:$0xff]
  %v5048 = vld [vmem:[%s5 + $0x110] sm:$0xff]
  %v5049 = vld [vmem:[%s5 + $0x118] sm:$0xff]
  %v5050 = vld [vmem:[%s5 + $0x120] sm:$0xff]
  %v5051 = vld [vmem:[%s5 + $0x128] sm:$0xff]
  %v5052 = vld [vmem:[%s5 + $0x130] sm:$0xff]
  %v5053 = vld [vmem:[%s5 + $0x138] sm:$0xff]
  %v5054 = vld [vmem:[%s5 + $0x140] sm:$0xff]
  %v5055 = vld [vmem:[%s5 + $0x148] sm:$0xff]
  %v5056 = vld [vmem:[%s5 + $0x150] sm:$0xff]
  %v5057 = vld [vmem:[%s5 + $0x158] sm:$0xff]
  %v5058 = vld [vmem:[%s5 + $0x160] sm:$0xff]
  %v5059 = vld [vmem:[%s5 + $0x168] sm:$0xff]
  %v5060 = vld [vmem:[%s5 + $0x170] sm:$0xff]
  %v5061 = vld [vmem:[%s5 + $0x13] sm:$0x1]
  %v5062 = vlaneseq
  %v5063 = vshrl.u32 %v5062, 7
  %v5064 = vsub.s32 0, %v5063
  %v5065 = vrot.slane %v5061, %v5064
  %5066 = vmatprep.subr.mxu0 0.0
  %5067 = vmatpush1.msra.mxu0 %v5060
  %5068 = vmatprep.subr.mxu0 0.0
  %5069 = vmatpush1.msra.mxu0 %v5059
  %5070 = vmatprep.subr.mxu0 0.0
  %5071 = vmatpush1.msra.mxu0 %v5058
  %5072 = vmatprep.subr.mxu0 0.0
  %5073 = vmatpush1.msra.mxu0 %v5057
  %5074 = vmatprep.subr.mxu0 0.0
  %5075 = vmatpush1.msra.mxu0 %v5056
  %5076 = vmatprep.subr.mxu0 0.0
  %5077 = vmatpush1.msra.mxu0 %v5055
  %5078 = vmatprep.subr.mxu0 0.0
  %5079 = vmatpush1.msra.mxu0 %v5054
  %5080 = vmatprep.subr.mxu0 0.0
  %5081 = vmatpush1.msra.mxu0 %v5053
  %5082 = vmatprep.subr.mxu0 0.0
  %5083 = vmatpush1.msra.mxu0 %v5052
  %5084 = vmatprep.subr.mxu0 0.0
  %5085 = vmatpush1.msra.mxu0 %v5051
  %5086 = vmatprep.subr.mxu0 0.0
  %5087 = vmatpush1.msra.mxu0 %v5050
  %5088 = vmatprep.subr.mxu0 0.0
  %5089 = vmatpush1.msra.mxu0 %v5049
  %5090 = vmatprep.subr.mxu0 0.0
  %5091 = vmatpush1.msra.mxu0 %v5048
  %5092 = vmatprep.subr.mxu0 0.0
  %5093 = vmatpush1.msra.mxu0 %v5047
  %5094 = vmatprep.subr.mxu0 0.0
  %5095 = vmatpush1.msra.mxu0 %v5046
  %5096 = vmatprep.subr.mxu0 0.0
  %5097 = vmatpush1.msra.mxu0 %v5045
  %5098 = vmatprep.subr.mxu0 0.0
  %5099 = vmatpush2.msra.mxu0 0.0
  %5100 = vmatprep.subr.mxu0 0.0
  %5101 = vmatpush2.msra.mxu0 0.0
  %5102 = vmatprep.subr.mxu0 0.0
  %5103 = vmatpush2.msra.mxu0 0.0
  %5104 = vmatprep.subr.mxu0 0.0
  %5105 = vmatpush2.msra.mxu0 0.0
  %5106 = vmatprep.subr.mxu0 0.0
  %5107 = vmatpush2.msra.mxu0 0.0
  %5108 = vmatprep.subr.mxu0 0.0
  %5109 = vmatpush2.msra.mxu0 0.0
  %5110 = vmatprep.subr.mxu0 0.0
  %5111 = vmatpush2.msra.mxu0 0.0
  %5112 = vmatprep.subr.mxu0 0.0
  %5113 = vmatpush2.msra.mxu0 0.0
  %5114 = vmatprep.subr.mxu0 0.0
  %5115 = vmatpush2.msra.mxu0 0.0
  %5116 = vmatprep.subr.mxu0 0.0
  %5117 = vmatpush2.msra.mxu0 0.0
  %5118 = vmatprep.subr.mxu0 0.0
  %5119 = vmatpush2.msra.mxu0 0.0
  %5120 = vmatprep.subr.mxu0 0.0
  %5121 = vmatpush2.msra.mxu0 0.0
  %5122 = vmatprep.subr.mxu0 0.0
  %5123 = vmatpush2.msra.mxu0 0.0
  %5124 = vmatprep.subr.mxu0 0.0
  %5125 = vmatpush2.msra.mxu0 0.0
  %5126 = vmatprep.subr.mxu0 0.0
  %5127 = vmatpush2.msra.mxu0 0.0
  %5128 = vmatprep.subr.mxu0 0.0
  %5129 = vmatpush2.msra.mxu0 0.0
  %5130 = vmatprep.mubr.f32.mxu0 0.0
  %5131 = vmatmul.mubr.f32.gmra.mxu0 %v5043
  %v5132 = vpop.f32.mrf.mxu0
  %v5133 = vadd.f32 %v5065, %v5132
  %v5134 = vpop.f32.mrf.mxu0
  %5135 = vmatprep.mubr.f32.mxu0 0.0
  %5136 = vmatmul.mubr.f32.gmra.mxu0 %v5044
  %v5137 = vpop.f32.mrf.mxu0
  %v5138 = vadd.f32 %v5065, %v5137
  %v5139 = vpop.f32.mrf.mxu0
  %5140 = vdwg.mxu0
  %v5141 = vld [vmem:[%s2] sm:$0x3]
  %v5142 = vcvt.s32.f32 %v5141
  %v5144 = vsel %vm1627, %v5142, 0
  %5146 = vmatprep.subr.mxu0 0.0
  %5147 = vmatpush1.msra.mxu0 0.0
  %5148 = vmatprep.subr.mxu0 0.0
  %5149 = vmatpush1.msra.mxu0 0.0
  %5150 = vmatprep.subr.mxu0 0.0
  %5151 = vmatpush1.msra.mxu0 0.0
  %5152 = vmatprep.subr.mxu0 0.0
  %5153 = vmatpush1.msra.mxu0 0.0
  %5154 = vmatprep.subr.mxu0 0.0
  %5155 = vmatpush1.msra.mxu0 0.0
  %5156 = vmatprep.subr.mxu0 0.0
  %5157 = vmatpush1.msra.mxu0 0.0
  %5158 = vmatprep.subr.mxu0 0.0
  %5159 = vmatpush1.msra.mxu0 0.0
  %5160 = vmatprep.subr.mxu0 0.0
  %5161 = vmatpush1.msra.mxu0 0.0
  %5162 = vmatprep.subr.mxu0 0.0
  %5163 = vmatpush1.msra.mxu0 0.0
  %5164 = vmatprep.subr.mxu0 0.0
  %5165 = vmatpush1.msra.mxu0 0.0
  %5166 = vmatprep.subr.mxu0 0.0
  %5167 = vmatpush1.msra.mxu0 0.0
  %5168 = vmatprep.subr.mxu0 0.0
  %5169 = vmatpush1.msra.mxu0 0.0
  %5170 = vmatprep.subr.mxu0 0.0
  %5171 = vmatpush1.msra.mxu0 0.0
  %5172 = vmatprep.subr.mxu0 0.0
  %5173 = vmatpush1.msra.mxu0 0.0
  %5174 = vmatprep.subr.mxu0 0.0
  %5175 = vmatpush1.msra.mxu0 0.0
  %5176 = vmatprep.subr.mxu0 0.0
  %5177 = vmatpush1.msra.mxu0 %v5133
  %5178 = vmatprep.subr.mxu0 0.0
  %5179 = vmatpush2.msra.mxu0 0.0
  %5180 = vmatprep.subr.mxu0 0.0
  %5181 = vmatpush2.msra.mxu0 0.0
  %5182 = vmatprep.subr.mxu0 0.0
  %5183 = vmatpush2.msra.mxu0 0.0
  %5184 = vmatprep.subr.mxu0 0.0
  %5185 = vmatpush2.msra.mxu0 0.0
  %5186 = vmatprep.subr.mxu0 0.0
  %5187 = vmatpush2.msra.mxu0 0.0
  %5188 = vmatprep.subr.mxu0 0.0
  %5189 = vmatpush2.msra.mxu0 0.0
  %5190 = vmatprep.subr.mxu0 0.0
  %5191 = vmatpush2.msra.mxu0 0.0
  %5192 = vmatprep.subr.mxu0 0.0
  %5193 = vmatpush2.msra.mxu0 0.0
  %5194 = vmatprep.subr.mxu0 0.0
  %5195 = vmatpush2.msra.mxu0 0.0
  %5196 = vmatprep.subr.mxu0 0.0
  %5197 = vmatpush2.msra.mxu0 0.0
  %5198 = vmatprep.subr.mxu0 0.0
  %5199 = vmatpush2.msra.mxu0 0.0
  %5200 = vmatprep.subr.mxu0 0.0
  %5201 = vmatpush2.msra.mxu0 0.0
  %5202 = vmatprep.subr.mxu0 0.0
  %5203 = vmatpush2.msra.mxu0 0.0
  %5204 = vmatprep.subr.mxu0 0.0
  %5205 = vmatpush2.msra.mxu0 0.0
  %5206 = vmatprep.subr.mxu0 0.0
  %5207 = vmatpush2.msra.mxu0 0.0
  %5208 = vmatprep.subr.mxu0 0.0
  %5209 = vmatpush2.msra.mxu0 0.0
  %5210 = vmatprep.mubr.f32.mxu0 0.0
  %5211 = vmatmul.mubr.f32.gmra.mxu0 %v5144
  %v5212 = vpop.f32.mrf.mxu0
  %v5213 = vadd.f32 0.0, %v5212
  %v5214 = vpop.f32.mrf.mxu0
  %5215 = vdwg.mxu0
  %vm5216 = vcmask 57344
  %v5217 = vsel %vm5216, %v5142, 0.0
  %5218 = vadd.xlane.f32.xlu0 %v5217
  %v5219 = vpop.xlane.xlu0 %5218
  %v5220 = vrot.slane %v5219, 4
  %v5221 = vadd.f32 %v5219, %v5220
  %v5222 = vrot.slane %v5221, 2
  %v5223 = vadd.f32 %v5221, %v5222
  %v5224 = vrot.slane %v5223, 1
  %v5225 = vadd.f32 %v5223, %v5224
  %s5226 = vtos %v5225
  %s5227 = smax.f32 %s5226, 1.0
  %v5228 = vstv %s5227
  %v5229 = vrcp.pop %v5228
  %v5230 = vmul.f32 %v5213, %v5229
  %v5231 = vrot.slane %v5142, 1
  %v5232 = vsel %vm1627, %v5231, 0
  %5234 = vmatprep.subr.mxu0 0.0
  %5235 = vmatpush1.msra.mxu0 0.0
  %5236 = vmatprep.subr.mxu0 0.0
  %5237 = vmatpush1.msra.mxu0 0.0
  %5238 = vmatprep.subr.mxu0 0.0
  %5239 = vmatpush1.msra.mxu0 0.0
  %5240 = vmatprep.subr.mxu0 0.0
  %5241 = vmatpush1.msra.mxu0 0.0
  %5242 = vmatprep.subr.mxu0 0.0
  %5243 = vmatpush1.msra.mxu0 0.0
  %5244 = vmatprep.subr.mxu0 0.0
  %5245 = vmatpush1.msra.mxu0 0.0
  %5246 = vmatprep.subr.mxu0 0.0
  %5247 = vmatpush1.msra.mxu0 0.0
  %5248 = vmatprep.subr.mxu0 0.0
  %5249 = vmatpush1.msra.mxu0 0.0
  %5250 = vmatprep.subr.mxu0 0.0
  %5251 = vmatpush1.msra.mxu0 0.0
  %5252 = vmatprep.subr.mxu0 0.0
  %5253 = vmatpush1.msra.mxu0 0.0
  %5254 = vmatprep.subr.mxu0 0.0
  %5255 = vmatpush1.msra.mxu0 0.0
  %5256 = vmatprep.subr.mxu0 0.0
  %5257 = vmatpush1.msra.mxu0 0.0
  %5258 = vmatprep.subr.mxu0 0.0
  %5259 = vmatpush1.msra.mxu0 0.0
  %5260 = vmatprep.subr.mxu0 0.0
  %5261 = vmatpush1.msra.mxu0 0.0
  %5262 = vmatprep.subr.mxu0 0.0
  %5263 = vmatpush1.msra.mxu0 0.0
  %5264 = vmatprep.subr.mxu0 0.0
  %5265 = vmatpush1.msra.mxu0 %v5138
  %5266 = vmatprep.subr.mxu0 0.0
  %5267 = vmatpush2.msra.mxu0 0.0
  %5268 = vmatprep.subr.mxu0 0.0
  %5269 = vmatpush2.msra.mxu0 0.0
  %5270 = vmatprep.subr.mxu0 0.0
  %5271 = vmatpush2.msra.mxu0 0.0
  %5272 = vmatprep.subr.mxu0 0.0
  %5273 = vmatpush2.msra.mxu0 0.0
  %5274 = vmatprep.subr.mxu0 0.0
  %5275 = vmatpush2.msra.mxu0 0.0
  %5276 = vmatprep.subr.mxu0 0.0
  %5277 = vmatpush2.msra.mxu0 0.0
  %5278 = vmatprep.subr.mxu0 0.0
  %5279 = vmatpush2.msra.mxu0 0.0
  %5280 = vmatprep.subr.mxu0 0.0
  %5281 = vmatpush2.msra.mxu0 0.0
  %5282 = vmatprep.subr.mxu0 0.0
  %5283 = vmatpush2.msra.mxu0 0.0
  %5284 = vmatprep.subr.mxu0 0.0
  %5285 = vmatpush2.msra.mxu0 0.0
  %5286 = vmatprep.subr.mxu0 0.0
  %5287 = vmatpush2.msra.mxu0 0.0
  %5288 = vmatprep.subr.mxu0 0.0
  %5289 = vmatpush2.msra.mxu0 0.0
  %5290 = vmatprep.subr.mxu0 0.0
  %5291 = vmatpush2.msra.mxu0 0.0
  %5292 = vmatprep.subr.mxu0 0.0
  %5293 = vmatpush2.msra.mxu0 0.0
  %5294 = vmatprep.subr.mxu0 0.0
  %5295 = vmatpush2.msra.mxu0 0.0
  %5296 = vmatprep.subr.mxu0 0.0
  %5297 = vmatpush2.msra.mxu0 0.0
  %5298 = vmatprep.mubr.f32.mxu0 0.0
  %5299 = vmatmul.mubr.f32.gmra.mxu0 %v5232
  %v5300 = vpop.f32.mrf.mxu0
  %v5301 = vadd.f32 0.0, %v5300
  %v5302 = vpop.f32.mrf.mxu0
  %5303 = vdwg.mxu0
  %v5305 = vsel %vm5216, %v5231, 0.0
  %5306 = vadd.xlane.f32.xlu0 %v5305
  %v5307 = vpop.xlane.xlu0 %5306
  %v5308 = vrot.slane %v5307, 4
  %v5309 = vadd.f32 %v5307, %v5308
  %v5310 = vrot.slane %v5309, 2
  %v5311 = vadd.f32 %v5309, %v5310
  %v5312 = vrot.slane %v5311, 1
  %v5313 = vadd.f32 %v5311, %v5312
  %s5314 = vtos %v5313
  %s5315 = smax.f32 %s5314, 1.0
  %v5316 = vstv %s5315
  %v5317 = vrcp.pop %v5316
  %v5318 = vmul.f32 %v5301, %v5317
  %v5320 = vrot.slane %v5318, 7
  %vm5322 = vcmask 1040384
  %v5323 = vsel %vm5322, %v5230, %v5320
  %v5324 = vld [vmem:[%s5 + $0x178] sm:$0xff]
  %v5325 = vld [vmem:[%s5 + $0x180] sm:$0x3]
  %v5326 = vld [vmem:[%s5 + $0x14] sm:$0x1]
  %v5327 = vlaneseq
  %v5328 = vshrl.u32 %v5327, 7
  %v5329 = vsub.s32 0, %v5328
  %v5330 = vrot.slane %v5326, %v5329
  %vm5331 = vcmask 80896
  %v5333 = vsel %vm5331, %v5323, 0
  %vm5335 = vcmask 1041408
  %v5337 = vsel %vm5335, %v5325, 0
  %5339 = vmatprep.subr.mxu0 0.0
  %5340 = vmatpush1.msra.mxu0 0.0
  %5341 = vmatprep.subr.mxu0 0.0
  %5342 = vmatpush1.msra.mxu0 0.0
  %5343 = vmatprep.subr.mxu0 0.0
  %5344 = vmatpush1.msra.mxu0 0.0
  %5345 = vmatprep.subr.mxu0 0.0
  %5346 = vmatpush1.msra.mxu0 0.0
  %5347 = vmatprep.subr.mxu0 0.0
  %5348 = vmatpush1.msra.mxu0 0.0
  %5349 = vmatprep.subr.mxu0 0.0
  %5350 = vmatpush1.msra.mxu0 0.0
  %5351 = vmatprep.subr.mxu0 0.0
  %5352 = vmatpush1.msra.mxu0 0.0
  %5353 = vmatprep.subr.mxu0 0.0
  %5354 = vmatpush1.msra.mxu0 0.0
  %5355 = vmatprep.subr.mxu0 0.0
  %5356 = vmatpush1.msra.mxu0 0.0
  %5357 = vmatprep.subr.mxu0 0.0
  %5358 = vmatpush1.msra.mxu0 0.0
  %5359 = vmatprep.subr.mxu0 0.0
  %5360 = vmatpush1.msra.mxu0 0.0
  %5361 = vmatprep.subr.mxu0 0.0
  %5362 = vmatpush1.msra.mxu0 0.0
  %5363 = vmatprep.subr.mxu0 0.0
  %5364 = vmatpush1.msra.mxu0 0.0
  %5365 = vmatprep.subr.mxu0 0.0
  %5366 = vmatpush1.msra.mxu0 0.0
  %5367 = vmatprep.subr.mxu0 0.0
  %5368 = vmatpush1.msra.mxu0 %v5337
  %5369 = vmatprep.subr.mxu0 0.0
  %5370 = vmatpush1.msra.mxu0 %v5324
  %5371 = vmatprep.subr.mxu0 0.0
  %5372 = vmatpush2.msra.mxu0 0.0
  %5373 = vmatprep.subr.mxu0 0.0
  %5374 = vmatpush2.msra.mxu0 0.0
  %5375 = vmatprep.subr.mxu0 0.0
  %5376 = vmatpush2.msra.mxu0 0.0
  %5377 = vmatprep.subr.mxu0 0.0
  %5378 = vmatpush2.msra.mxu0 0.0
  %5379 = vmatprep.subr.mxu0 0.0
  %5380 = vmatpush2.msra.mxu0 0.0
  %5381 = vmatprep.subr.mxu0 0.0
  %5382 = vmatpush2.msra.mxu0 0.0
  %5383 = vmatprep.subr.mxu0 0.0
  %5384 = vmatpush2.msra.mxu0 0.0
  %5385 = vmatprep.subr.mxu0 0.0
  %5386 = vmatpush2.msra.mxu0 0.0
  %5387 = vmatprep.subr.mxu0 0.0
  %5388 = vmatpush2.msra.mxu0 0.0
  %5389 = vmatprep.subr.mxu0 0.0
  %5390 = vmatpush2.msra.mxu0 0.0
  %5391 = vmatprep.subr.mxu0 0.0
  %5392 = vmatpush2.msra.mxu0 0.0
  %5393 = vmatprep.subr.mxu0 0.0
  %5394 = vmatpush2.msra.mxu0 0.0
  %5395 = vmatprep.subr.mxu0 0.0
  %5396 = vmatpush2.msra.mxu0 0.0
  %5397 = vmatprep.subr.mxu0 0.0
  %5398 = vmatpush2.msra.mxu0 0.0
  %5399 = vmatprep.subr.mxu0 0.0
  %5400 = vmatpush2.msra.mxu0 0.0
  %5401 = vmatprep.subr.mxu0 0.0
  %5402 = vmatpush2.msra.mxu0 0.0
  %5403 = vmatprep.mubr.f32.mxu0 0.0
  %5404 = vmatmul.mubr.f32.gmra.mxu0 %v5333
  %v5405 = vpop.f32.mrf.mxu0
  %v5406 = vadd.f32 %v5330, %v5405
  %v5407 = vpop.f32.mrf.mxu0
  %5408 = vdwg.mxu0
  %v5409 = vld [vmem:[%s5 + $0x15] sm:$0x1]
  %v5410 = vld [vmem:[%s5 + $0x16] sm:$0x1]
  %vm5411 = vcmask 517120
  %v5412 = vsel %vm5411, %v5406, 0.0
  %5413 = vadd.xlane.f32.xlu0 %v5412
  %v5414 = vpop.xlane.xlu0 %5413
  %v5415 = vrcp.pop 64.0
  %v5416 = vmul.f32 %v5414, %v5415
  %v5417 = vsub.f32 %v5406, %v5416
  %v5418 = vmul.f32 %v5417, %v5417
  %v5419 = vsel %vm5411, %v5418, 0.0
  %5420 = vadd.xlane.f32.xlu0 %v5419
  %v5421 = vpop.xlane.xlu0 %5420
  %v5422 = vmul.f32 %v5421, %v5415
  %v5423 = vadd.f32 %v5422, 1e-05
  %v5424 = vrsqrt.pop %v5423
  %v5425 = vmul.f32 %v5417, %v5424
  %v5426 = vlaneseq
  %v5427 = vshrl.u32 %v5426, 7
  %v5428 = vsub.s32 0, %v5427
  %v5429 = vrot.slane %v5409, %v5428
  %v5430 = vmul.f32 %v5425, %v5429
  %v5431 = vlaneseq
  %v5432 = vshrl.u32 %v5431, 7
  %v5433 = vsub.s32 0, %v5432
  %v5434 = vrot.slane %v5410, %v5433
  %v5435 = vadd.f32 %v5430, %v5434
  %v5436 = vmul.f32 %v5435, 0.5
  %v5437 = vmul.f32 %v5435, 0.70710677
  %v5438 = verf.f32.pop %v5437
  %v5439 = vadd.f32 %v5438, 1.0
  %v5440 = vmul.f32 %v5436, %v5439
  %v5441 = vld [vmem:[%s5 + $0x188] sm:$0xff]
  %v5442 = vld [vmem:[%s5 + $0x190] sm:$0xff]
  %v5443 = vld [vmem:[%s5 + $0x198] sm:$0xff]
  %v5444 = vld [vmem:[%s5 + $0x1a0] sm:$0xff]
  %v5445 = vld [vmem:[%s5 + $0x1a8] sm:$0xff]
  %v5446 = vld [vmem:[%s5 + $0x1b0] sm:$0xff]
  %v5447 = vld [vmem:[%s5 + $0x1b8] sm:$0xff]
  %v5448 = vld [vmem:[%s5 + $0x1c0] sm:$0xff]
  %v5449 = vld [vmem:[%s5 + $0x17] sm:$0x1]
  %v5450 = vlaneseq
  %v5451 = vshrl.u32 %v5450, 7
  %v5452 = vsub.s32 0, %v5451
  %v5453 = vrot.slane %v5449, %v5452
  %vm5454 = vcmask 523264
  %v5456 = vsel %vm5454, %v5440, 0
  %5458 = vmatprep.subr.mxu0 0.0
  %5459 = vmatpush1.msra.mxu0 0.0
  %5460 = vmatprep.subr.mxu0 0.0
  %5461 = vmatpush1.msra.mxu0 0.0
  %5462 = vmatprep.subr.mxu0 0.0
  %5463 = vmatpush1.msra.mxu0 0.0
  %5464 = vmatprep.subr.mxu0 0.0
  %5465 = vmatpush1.msra.mxu0 0.0
  %5466 = vmatprep.subr.mxu0 0.0
  %5467 = vmatpush1.msra.mxu0 0.0
  %5468 = vmatprep.subr.mxu0 0.0
  %5469 = vmatpush1.msra.mxu0 0.0
  %5470 = vmatprep.subr.mxu0 0.0
  %5471 = vmatpush1.msra.mxu0 0.0
  %5472 = vmatprep.subr.mxu0 0.0
  %5473 = vmatpush1.msra.mxu0 0.0
  %5474 = vmatprep.subr.mxu0 0.0
  %5475 = vmatpush1.msra.mxu0 %v5448
  %5476 = vmatprep.subr.mxu0 0.0
  %5477 = vmatpush1.msra.mxu0 %v5447
  %5478 = vmatprep.subr.mxu0 0.0
  %5479 = vmatpush1.msra.mxu0 %v5446
  %5480 = vmatprep.subr.mxu0 0.0
  %5481 = vmatpush1.msra.mxu0 %v5445
  %5482 = vmatprep.subr.mxu0 0.0
  %5483 = vmatpush1.msra.mxu0 %v5444
  %5484 = vmatprep.subr.mxu0 0.0
  %5485 = vmatpush1.msra.mxu0 %v5443
  %5486 = vmatprep.subr.mxu0 0.0
  %5487 = vmatpush1.msra.mxu0 %v5442
  %5488 = vmatprep.subr.mxu0 0.0
  %5489 = vmatpush1.msra.mxu0 %v5441
  %5490 = vmatprep.subr.mxu0 0.0
  %5491 = vmatpush2.msra.mxu0 0.0
  %5492 = vmatprep.subr.mxu0 0.0
  %5493 = vmatpush2.msra.mxu0 0.0
  %5494 = vmatprep.subr.mxu0 0.0
  %5495 = vmatpush2.msra.mxu0 0.0
  %5496 = vmatprep.subr.mxu0 0.0
  %5497 = vmatpush2.msra.mxu0 0.0
  %5498 = vmatprep.subr.mxu0 0.0
  %5499 = vmatpush2.msra.mxu0 0.0
  %5500 = vmatprep.subr.mxu0 0.0
  %5501 = vmatpush2.msra.mxu0 0.0
  %5502 = vmatprep.subr.mxu0 0.0
  %5503 = vmatpush2.msra.mxu0 0.0
  %5504 = vmatprep.subr.mxu0 0.0
  %5505 = vmatpush2.msra.mxu0 0.0
  %5506 = vmatprep.subr.mxu0 0.0
  %5507 = vmatpush2.msra.mxu0 0.0
  %5508 = vmatprep.subr.mxu0 0.0
  %5509 = vmatpush2.msra.mxu0 0.0
  %5510 = vmatprep.subr.mxu0 0.0
  %5511 = vmatpush2.msra.mxu0 0.0
  %5512 = vmatprep.subr.mxu0 0.0
  %5513 = vmatpush2.msra.mxu0 0.0
  %5514 = vmatprep.subr.mxu0 0.0
  %5515 = vmatpush2.msra.mxu0 0.0
  %5516 = vmatprep.subr.mxu0 0.0
  %5517 = vmatpush2.msra.mxu0 0.0
  %5518 = vmatprep.subr.mxu0 0.0
  %5519 = vmatpush2.msra.mxu0 0.0
  %5520 = vmatprep.subr.mxu0 0.0
  %5521 = vmatpush2.msra.mxu0 0.0
  %5522 = vmatprep.mubr.f32.mxu0 0.0
  %5523 = vmatmul.mubr.f32.gmra.mxu0 %v5456
  %v5524 = vpop.f32.mrf.mxu0
  %v5525 = vadd.f32 %v5453, %v5524
  %v5526 = vpop.f32.mrf.mxu0
  %5527 = vdwg.mxu0
  %vm5528 = vcmask 1024
  %5529 = vst.msk [vmem:[%s6] sm:$0x3] %vm5528, %v5525
  // Predicated region
  $region26: #{forward.1} parent=0 // pred_check
    _
  $region27: #{forward.1} parent=0 // pred_check_branch
    %5531 = sbr.rel (0) target = $region29
  $region28: #{forward.1} parent=0 // pred_region
    _
  $region29: #{forward.1} parent=0 // pred_fallthru
    _
  // Predicated region
  $region30: #{forward.1} parent=0 // pred_check
    _
  $region31: #{forward.1} parent=0 // pred_check_branch
    %5533 = sbr.rel (0) target = $region33
  $region32: #{forward.1} parent=0 // pred_region
    _
  $region33: #{forward.1} parent=0 // pred_fallthru
    _

</llo_original>
